<compile_context>
chip_gen: v6e
topology: v6e:2x2x1
jax: 0.10.0
libtpu: 0.0.40
codegen_flags: <defaults>
</compile_context>

<pallas_src>
import functools
import math

import jax
import jax.numpy as jnp
from jax import lax
from jax.experimental import pallas as pl
from jax.experimental.pallas import tpu as pltpu

GELU_SCALE = 1.7015043497085571
INV_SQRT2 = 0.7071067811865476
WS_EPS = 1e-4
K = 3      # every stem conv is 3x3
PAD = 8    # spare rows after each wide activation so slab reads stay in-bounds


# ---------------------------------------------------------------------------
# In-kernel helpers
# ---------------------------------------------------------------------------
def _erf(x):
    # Abramowitz & Stegun 7.1.26 rational approximation, |err| < 1.5e-7.
    # abs/exp/mul/add only, so it lowers in Mosaic without an erf primitive.
    ax = jnp.abs(x)
    t = 1.0 / (1.0 + 0.3275911 * ax)
    poly = t * (0.254829592 + t * (-0.284496736 + t * (1.421413741
               + t * (-1.453152027 + t * 1.061405429))))
    y = 1.0 - poly * jnp.exp(-ax * ax)
    return jnp.where(x < 0, -y, y)


def _vpgelu(x):
    # exact (erf-form) gelu, matching F.gelu default, times the VP scale.
    # Kept in f32 per the review's correctness note.
    return (0.5 * x * (1.0 + _erf(x * INV_SQRT2))) * GELU_SCALE


def _conv3x3_s1_wide(src_ref, w_ref, b_ref, *, rows_out, width, cin):
    """Stride-1 3x3 VALID conv on a 'wide' VMEM-resident activation.

    src_ref: (rows_in*width + PAD, cin) f32, row-major with row width `width`.
    w_ref:   (9*cin, cout) bf16, tap-major (tap = kh*3 + kw).
    Returns the (rows_out*width, cout) f32 pre-activation; columns >= width-2
    of each output row are junk that no valid downstream position reads.

    Implemented as 3 contiguous row-band loads + 9 shifted-slab matmuls with
    f32 accumulation (no materialized im2col, no masked single-row stores).
    """
    m = rows_out * width
    cout = w_ref.shape[-1]
    acc = jnp.zeros((m, cout), jnp.float32)
    for kh in range(K):
        band = src_ref[kh * width: kh * width + m + (K - 1), :]     # f32
        for kw in range(K):
            tap = kh * K + kw
            lhs = band[kw:kw + m, :].astype(jnp.bfloat16)            # MXU operand
            acc = acc + jnp.dot(lhs, w_ref[tap * cin:(tap + 1) * cin, :],
                                preferred_element_type=jnp.float32)
    return acc + b_ref[...]


def _stem_kernel(p0_ref, w0_ref, b0_ref, w1_ref, b1_ref, w2_ref, b2_ref,
                 w3_ref, b3_ref, o_ref, a0_ref, a1_ref, a2_ref, *,
                 h0, wd0, h1, h2, h3, wd2, wide3, c0, c1, c2, c3):
    """Fused NFNet stem for one image; all inter-layer data stays in VMEM."""
    m0 = h0 * wd0
    m1 = h1 * wd0
    m2 = h2 * wd0

    # ---- conv0 (stride 2; im2col done in the wrapper) + VPGELU -------------
    y0 = jnp.dot(p0_ref[0], w0_ref[...],
                 preferred_element_type=jnp.float32) + b0_ref[...]
    a0_ref[0:m0, :] = _vpgelu(y0)
    a0_ref[m0:, :] = jnp.zeros((PAD, c0), jnp.float32)   # zero slab spill rows

    # ---- conv1 (stride 1) + VPGELU: 9 shifted-slab matmuls -----------------
    y1 = _conv3x3_s1_wide(a0_ref, w1_ref, b1_ref,
                          rows_out=h1, width=wd0, cin=c0)
    a1_ref[0:m1, :] = _vpgelu(y1)
    a1_ref[m1:, :] = jnp.zeros((PAD, c1), jnp.float32)

    # ---- conv2 (stride 1) + VPGELU ------------------------------------------
    y2 = _conv3x3_s1_wide(a1_ref, w2_ref, b2_ref,
                          rows_out=h2, width=wd0, cin=c1)
    a2_ref[...] = _vpgelu(y2)

    # ---- conv3 (stride 2), no activation ------------------------------------
    # Row loop (fori_loop => constant code size).  Stride-2 rows are picked by
    # the loop; columns are computed at stride 1 and the even ones are selected
    # by the wrapper, so there are no in-kernel strided gathers or per-element
    # stores.  TODO(synk): column-parity (space-to-depth) layout would halve
    # the conv3 MXU work and keep the selection in-kernel.
    def conv3_row(i3, carry):
        acc = jnp.zeros((wide3, c3), jnp.float32)
        for kh in range(K):
            band = a2_ref[pl.ds((2 * i3 + kh) * wd0, wd2), :]       # f32
            for kw in range(K):
                tap = kh * K + kw
                lhs = band[kw:kw + wide3, :].astype(jnp.bfloat16)
                acc = acc + jnp.dot(lhs, w3_ref[tap * c2:(tap + 1) * c2, :],
                                    preferred_element_type=jnp.float32)
        o_ref[0, pl.ds(i3 * wide3, wide3), :] = acc + b3_ref[...]
        return carry

    lax.fori_loop(0, h3, conv3_row, 0)


# ---------------------------------------------------------------------------
# Wrapper-side preprocessing (plain jnp — XLA fuses these trivially)
# ---------------------------------------------------------------------------
def standardize_weight(w_oihw, gain):
    """WSConv2D.standardized_weights (unbiased var, max(var*fan_in, 1e-4))."""
    cout = w_oihw.shape[0]
    fan_in = w_oihw.shape[1] * w_oihw.shape[2] * w_oihw.shape[3]
    w2 = w_oihw.reshape(cout, fan_in).astype(jnp.float32)
    mean = jnp.mean(w2, axis=1, keepdims=True)
    var = jnp.sum((w2 - mean) ** 2, axis=1, keepdims=True) / float(fan_in - 1)
    scale = jax.lax.rsqrt(jnp.maximum(var * float(fan_in), WS_EPS))
    return ((w2 - mean) * scale * gain.reshape(cout, 1)).reshape(w_oihw.shape)


def _tap_major_weight(w_oihw, gain):
    """Standardize in f32, reshape OIHW -> (9*Cin, Cout) tap-major, cast bf16."""
    cout, cin = w_oihw.shape[0], w_oihw.shape[1]
    w_std = standardize_weight(w_oihw, gain)
    w_tap = jnp.transpose(w_std, (2, 3, 1, 0)).reshape(K * K * cin, cout)
    return w_tap.astype(jnp.bfloat16)


def _im2col_input(x_nhwc, stride):
    """Patch-extract the (lane-sparse, Cin=3) input outside the kernel."""
    n, h, w, c = x_nhwc.shape
    ho = (h - K) // stride + 1
    wo = (w - K) // stride + 1
    cols = []
    for kh in range(K):
        for kw in range(K):
            cols.append(jax.lax.slice(
                x_nhwc, (0, kh, kw, 0),
                (n, kh + (ho - 1) * stride + 1, kw + (wo - 1) * stride + 1, c),
                (1, stride, stride, 1)))
    patches = jnp.concatenate(cols, axis=-1)            # (N, Ho, Wo, 9*C)
    return patches.reshape(n, ho * wo, K * K * c), (ho, wo)


# ---------------------------------------------------------------------------
# Public forward (PyTorch I/O layout: NCHW)
# ---------------------------------------------------------------------------
def stem_forward(x_nchw, params):
    (wt0, b0, g0), (wt1, b1, g1), (wt2, b2, g2), (wt3, b3, g3) = params
    c0, c1, c2, c3 = wt0.shape[0], wt1.shape[0], wt2.shape[0], wt3.shape[0]
    cin = wt0.shape[1]
    f0 = K * K * cin

    x = jnp.transpose(x_nchw, (0, 2, 3, 1)).astype(jnp.float32)     # NHWC
    n = x.shape[0]

    # conv0 patches (stride 2) in plain XLA, cast to bf16 for the MXU.
    p0, (h0, wd0) = _im2col_input(x, stride=2)
    p0 = p0.astype(jnp.bfloat16)
    h1, wd1 = h0 - 2, wd0 - 2                      # conv1, stride 1
    h2, wd2 = h1 - 2, wd1 - 2                      # conv2, stride 1
    h3 = (h2 - K) // 2 + 1                         # conv3, stride 2 (valid rows)
    w3sp = (wd2 - K) // 2 + 1                      # conv3 valid cols
    wide3 = wd2 - 2                                # stride-1 cols computed in-kernel

    wm0 = _tap_major_weight(wt0, g0)
    wm1 = _tap_major_weight(wt1, g1)
    wm2 = _tap_major_weight(wt2, g2)
    wm3 = _tap_major_weight(wt3, g3)

    kern = functools.partial(_stem_kernel, h0=h0, wd0=wd0, h1=h1, h2=h2,
                             h3=h3, wd2=wd2, wide3=wide3,
                             c0=c0, c1=c1, c2=c2, c3=c3)

    # VMEM budget: double-buffered blocks + f32 scratch + biggest live values.
    est = (2 * h0 * wd0 * f0 * 2
           + 2 * 2 * (f0 * c0 + K * K * c0 * c1 + K * K * c1 * c2 + K * K * c2 * c3)
           + 2 * 4 * (c0 + c1 + c2 + c3)
           + 2 * h3 * wide3 * c3 * 4
           + 4 * ((h0 * wd0 + PAD) * c0 + (h1 * wd0 + PAD) * c1 + h2 * wd0 * c2)
           + 4 * (h1 * wd0 * c1 + h2 * wd0 * c2))
    vmem_limit = int(min(64 * 2 ** 20, max(32 * 2 ** 20, 2 * est)))

    flops = 2 * n * (h0 * wd0 * f0 * c0
                     + K * K * h1 * wd0 * c0 * c1
                     + K * K * h2 * wd0 * c1 * c2
                     + K * K * h3 * wide3 * c2 * c3)
    transcendentals = n * (h0 * wd0 * c0 + h1 * wd0 * c1 + h2 * wd0 * c2)
    bytes_accessed = (p0.size * 2
                      + (wm0.size + wm1.size + wm2.size + wm3.size) * 2
                      + (c0 + c1 + c2 + c3) * 4
                      + n * h3 * wide3 * c3 * 4)

    out_wide = pl.pallas_call(
        kern,
        out_shape=jax.ShapeDtypeStruct((n, h3 * wide3, c3), jnp.float32),
        grid=(n,),
        in_specs=[
            pl.BlockSpec((1, h0 * wd0, f0), lambda b: (b, 0, 0)),    # p0
            pl.BlockSpec((f0, c0), lambda b: (0, 0)),                # W0
            pl.BlockSpec((1, c0), lambda b: (0, 0)),                 # b0
            pl.BlockSpec((K * K * c0, c1), lambda b: (0, 0)),        # W1
            pl.BlockSpec((1, c1), lambda b: (0, 0)),                 # b1
            pl.BlockSpec((K * K * c1, c2), lambda b: (0, 0)),        # W2
            pl.BlockSpec((1, c2), lambda b: (0, 0)),                 # b2
            pl.BlockSpec((K * K * c2, c3), lambda b: (0, 0)),        # W3
            pl.BlockSpec((1, c3), lambda b: (0, 0)),                 # b3
        ],
        out_specs=pl.BlockSpec((1, h3 * wide3, c3), lambda b: (b, 0, 0)),
        scratch_shapes=[
            pltpu.VMEM((h0 * wd0 + PAD, c0), jnp.float32),   # a0 (wide, + spill)
            pltpu.VMEM((h1 * wd0 + PAD, c1), jnp.float32),   # a1 (wide, + spill)
            pltpu.VMEM((h2 * wd0, c2), jnp.float32),         # a2 (wide)
        ],
        compiler_params=pltpu.CompilerParams(
            dimension_semantics=("parallel",),
            vmem_limit_bytes=vmem_limit),
        cost_estimate=pl.CostEstimate(
            flops=flops, transcendentals=transcendentals,
            bytes_accessed=bytes_accessed),
    )(p0, wm0, b0.reshape(1, c0).astype(jnp.float32),
      wm1, b1.reshape(1, c1).astype(jnp.float32),
      wm2, b2.reshape(1, c2).astype(jnp.float32),
      wm3, b3.reshape(1, c3).astype(jnp.float32))

    # Select the stride-2 (even) columns of conv3's wide rows and go to NCHW.
    out = out_wide.reshape(n, h3, wide3, c3)[:, :, ::2, :][:, :, :w3sp, :]
    return jnp.transpose(out, (0, 3, 1, 2))


# ---------------------------------------------------------------------------
# Parameter init (mirrors module __init__: xavier_normal_ weights, ones gain)
# ---------------------------------------------------------------------------
def init_wsconv(key, cin, cout, k=K):
    kw_, kb = jax.random.split(key)
    fan_in = cin * k * k
    fan_out = cout * k * k
    std = math.sqrt(2.0 / (fan_in + fan_out))          # xavier_normal_
    w = jax.random.normal(kw_, (cout, cin, k, k), jnp.float32) * std
    bound = 1.0 / math.sqrt(fan_in)                    # nn.Conv2d bias default
    b = jax.random.uniform(kb, (cout,), jnp.float32, -bound, bound)
    g = jnp.ones((cout,), jnp.float32)
    return w, b, g


def init_stem_params(key):
    keys = jax.random.split(key, 4)
    return (
        init_wsconv(keys[0], 3, 16),    # conv0, stride 2
        init_wsconv(keys[1], 16, 32),   # conv1, stride 1
        init_wsconv(keys[2], 32, 64),   # conv2, stride 1
        init_wsconv(keys[3], 64, 128),  # conv3, stride 2
    )


# ---------------------------------------------------------------------------
# Pure-JAX references for numerical validation
# ---------------------------------------------------------------------------
def stem_reference(x_nchw, params, matmul_dtype=None):
    """matmul_dtype=None -> full f32 HIGHEST; bf16 -> emulates the kernel's
    bf16-operand / f32-accumulate matmul path (bias + exact GELU in f32)."""
    x = jnp.transpose(x_nchw, (0, 2, 3, 1)).astype(jnp.float32)
    strides = (2, 1, 1, 2)
    acts = (True, True, True, False)
    for (wt, b, g), s, a in zip(params, strides, acts):
        w_hwio = jnp.transpose(standardize_weight(wt, g), (2, 3, 1, 0))
        if matmul_dtype is None:
            lhs, rhs, prec = x, w_hwio, jax.lax.Precision.HIGHEST
        else:
            lhs, rhs, prec = x.astype(matmul_dtype), w_hwio.astype(matmul_dtype), None
        y = jax.lax.conv_general_dilated(
            lhs, rhs, window_strides=(s, s), padding="VALID",
            dimension_numbers=("NHWC", "HWIO", "NHWC"),
            precision=prec, preferred_element_type=jnp.float32) + b
        x = (jax.nn.gelu(y, approximate=False) * GELU_SCALE) if a else y
    return jnp.transpose(x, (0, 3, 1, 2))


if __name__ == "__main__":
    key = jax.random.PRNGKey(0)
    k_x, k_p = jax.random.split(key)

    x = jax.random.normal(k_x, (2, 3, 16, 16), jnp.float32)   # NCHW like PyTorch
    params = init_stem_params(k_p)

    out = jax.block_until_ready(jax.jit(stem_forward)(x, params))

    # 16 -> conv0(s2): 7 -> conv1: 5 -> conv2: 3 -> conv3(s2): 1
    assert out.shape == (2, 128, 1, 1), out.shape
    assert out.dtype == jnp.float32
    assert bool(jnp.all(jnp.isfinite(out)))

    # Tight check vs a reference that uses the same bf16-operand / f32-accum
    # matmul precision as the kernel, plus a sanity check vs the pure-f32 ref.
    ref16 = jax.block_until_ready(stem_reference(x, params, jnp.bfloat16))
    ref32 = jax.block_until_ready(stem_reference(x, params))
    err16 = float(jnp.max(jnp.abs(out - ref16)))
    err32 = float(jnp.max(jnp.abs(out - ref32)))
    assert err16 < 5e-3, f"max abs err vs bf16-precision reference: {err16}"
    assert err32 < 3e-2, f"max abs err vs f32 reference: {err32}"

    print("KERNEL_OK")
</pallas_src>

<mosaic_0001>
module attributes {stable_mosaic.version = 11 : i64} {
  func.func @_stem_kernel(%arg0: i32, %arg1: memref<1x49x27xbf16, #tpu.memory_space<vmem>>, %arg2: memref<27x16xbf16, #tpu.memory_space<vmem>>, %arg3: memref<1x16xf32, #tpu.memory_space<vmem>>, %arg4: memref<144x32xbf16, #tpu.memory_space<vmem>>, %arg5: memref<1x32xf32, #tpu.memory_space<vmem>>, %arg6: memref<288x64xbf16, #tpu.memory_space<vmem>>, %arg7: memref<1x64xf32, #tpu.memory_space<vmem>>, %arg8: memref<576x128xbf16, #tpu.memory_space<vmem>>, %arg9: memref<1x128xf32, #tpu.memory_space<vmem>>, %arg10: memref<1x1x128xf32, #tpu.memory_space<vmem>>, %arg11: memref<57x16xf32, #tpu.memory_space<vmem>>, %arg12: memref<43x32xf32, #tpu.memory_space<vmem>>, %arg13: memref<21x64xf32, #tpu.memory_space<vmem>>) attributes {dimension_semantics = [#tpu.dimension_semantics<parallel>], iteration_bounds = array<i64: 2>, scalar_prefetch = 0 : i64, scratch_operands = 3 : i64, tpu.core_type = #tpu.core_type<tc>, window_params = [{transform_indices = @transform_0, window_bounds = array<i64: 1, 49, 27>}, {pipeline_mode = #tpu.pipeline_mode<synchronous>, transform_indices = @transform_1, window_bounds = array<i64: 27, 16>}, {pipeline_mode = #tpu.pipeline_mode<synchronous>, transform_indices = @transform_2, window_bounds = array<i64: 1, 16>}, {pipeline_mode = #tpu.pipeline_mode<synchronous>, transform_indices = @transform_3, window_bounds = array<i64: 144, 32>}, {pipeline_mode = #tpu.pipeline_mode<synchronous>, transform_indices = @transform_4, window_bounds = array<i64: 1, 32>}, {pipeline_mode = #tpu.pipeline_mode<synchronous>, transform_indices = @transform_5, window_bounds = array<i64: 288, 64>}, {pipeline_mode = #tpu.pipeline_mode<synchronous>, transform_indices = @transform_6, window_bounds = array<i64: 1, 64>}, {pipeline_mode = #tpu.pipeline_mode<synchronous>, transform_indices = @transform_7, window_bounds = array<i64: 576, 128>}, {pipeline_mode = #tpu.pipeline_mode<synchronous>, transform_indices = @transform_8, window_bounds = array<i64: 1, 128>}, {transform_indices = @transform_9, window_bounds = array<i64: 1, 1, 128>}]} {
    %c0 = arith.constant 0 : index
    %c0_0 = arith.constant 0 : index
    %c0_1 = arith.constant 0 : index
    %0 = vector.load %arg1[%c0, %c0_0, %c0_1] : memref<1x49x27xbf16, #tpu.memory_space<vmem>>, vector<1x49x27xbf16>
    %1 = vector.shape_cast %0 : vector<1x49x27xbf16> to vector<49x27xbf16>
    %c0_2 = arith.constant 0 : index
    %c0_3 = arith.constant 0 : index
    %2 = vector.load %arg2[%c0_2, %c0_3] : memref<27x16xbf16, #tpu.memory_space<vmem>>, vector<27x16xbf16>
    %cst = arith.constant dense<0.000000e+00> : vector<49x16xf32>
    %3 = tpu.matmul %1, %2, %cst {dimension_numbers = #tpu.dot_dimension_numbers<[1], [0], [0], [1], [0, 0, 1, 1], [], []>} : vector<49x27xbf16>, vector<27x16xbf16>, vector<49x16xf32> -> vector<49x16xf32>
    %c0_4 = arith.constant 0 : index
    %c0_5 = arith.constant 0 : index
    %4 = vector.load %arg3[%c0_4, %c0_5] : memref<1x16xf32, #tpu.memory_space<vmem>>, vector<1x16xf32>
    %5 = vector.broadcast %4 : vector<1x16xf32> to vector<49x16xf32>
    %6 = arith.addf %3, %5 : vector<49x16xf32>
    %cst_6 = arith.constant 5.000000e-01 : f32
    %7 = vector.broadcast %cst_6 : f32 to vector<49x16xf32>
    %8 = arith.mulf %7, %6 : vector<49x16xf32>
    %cst_7 = arith.constant 0.707106769 : f32
    %9 = vector.broadcast %cst_7 : f32 to vector<49x16xf32>
    %10 = arith.mulf %6, %9 : vector<49x16xf32>
    %11 = math.absf %10 : vector<49x16xf32>
    %cst_8 = arith.constant 0.327591091 : f32
    %12 = vector.broadcast %cst_8 : f32 to vector<49x16xf32>
    %13 = arith.mulf %12, %11 : vector<49x16xf32>
    %cst_9 = arith.constant 1.000000e+00 : f32
    %14 = vector.broadcast %cst_9 : f32 to vector<49x16xf32>
    %15 = arith.addf %14, %13 : vector<49x16xf32>
    %cst_10 = arith.constant 1.000000e+00 : f32
    %16 = vector.broadcast %cst_10 : f32 to vector<49x16xf32>
    %17 = arith.divf %16, %15 : vector<49x16xf32>
    %cst_11 = arith.constant 1.06140542 : f32
    %18 = vector.broadcast %cst_11 : f32 to vector<49x16xf32>
    %19 = arith.mulf %17, %18 : vector<49x16xf32>
    %cst_12 = arith.constant -1.45315206 : f32
    %20 = vector.broadcast %cst_12 : f32 to vector<49x16xf32>
    %21 = arith.addf %20, %19 : vector<49x16xf32>
    %22 = arith.mulf %17, %21 : vector<49x16xf32>
    %cst_13 = arith.constant 1.42141378 : f32
    %23 = vector.broadcast %cst_13 : f32 to vector<49x16xf32>
    %24 = arith.addf %23, %22 : vector<49x16xf32>
    %25 = arith.mulf %17, %24 : vector<49x16xf32>
    %cst_14 = arith.constant -0.284496725 : f32
    %26 = vector.broadcast %cst_14 : f32 to vector<49x16xf32>
    %27 = arith.addf %26, %25 : vector<49x16xf32>
    %28 = arith.mulf %17, %27 : vector<49x16xf32>
    %cst_15 = arith.constant 0.254829586 : f32
    %29 = vector.broadcast %cst_15 : f32 to vector<49x16xf32>
    %30 = arith.addf %29, %28 : vector<49x16xf32>
    %31 = arith.mulf %17, %30 : vector<49x16xf32>
    %cst_16 = arith.constant 0.000000e+00 : f32
    %32 = vector.broadcast %cst_16 : f32 to vector<49x16xf32>
    %33 = arith.subf %32, %11 : vector<49x16xf32>
    %34 = arith.mulf %33, %11 : vector<49x16xf32>
    %35 = math.exp %34 : vector<49x16xf32>
    %36 = arith.mulf %31, %35 : vector<49x16xf32>
    %cst_17 = arith.constant 1.000000e+00 : f32
    %37 = vector.broadcast %cst_17 : f32 to vector<49x16xf32>
    %38 = arith.subf %37, %36 : vector<49x16xf32>
    %cst_18 = arith.constant 0.000000e+00 : f32
    %39 = vector.broadcast %cst_18 : f32 to vector<49x16xf32>
    %40 = arith.cmpf olt, %10, %39 : vector<49x16xf32>
    %cst_19 = arith.constant 0.000000e+00 : f32
    %41 = vector.broadcast %cst_19 : f32 to vector<49x16xf32>
    %42 = arith.subf %41, %38 : vector<49x16xf32>
    %43 = arith.select %40, %42, %38 : vector<49x16xi1>, vector<49x16xf32>
    %cst_20 = arith.constant 1.000000e+00 : f32
    %44 = vector.broadcast %cst_20 : f32 to vector<49x16xf32>
    %45 = arith.addf %44, %43 : vector<49x16xf32>
    %46 = arith.mulf %8, %45 : vector<49x16xf32>
    %cst_21 = arith.constant 1.70150435 : f32
    %47 = vector.broadcast %cst_21 : f32 to vector<49x16xf32>
    %48 = arith.mulf %46, %47 : vector<49x16xf32>
    %c0_22 = arith.constant 0 : index
    %c0_23 = arith.constant 0 : index
    %49 = vector.load %arg11[%c0_22, %c0_23] : memref<57x16xf32, #tpu.memory_space<vmem>>, vector<49x16xf32>
    tpu.vector_store %arg11[%c0_22, %c0_23], %48 {strides = array<i32>} : memref<57x16xf32, #tpu.memory_space<vmem>>, vector<49x16xf32>,
    %cst_24 = arith.constant 0.000000e+00 : f32
    %50 = vector.broadcast %cst_24 : f32 to vector<8x16xf32>
    %c49 = arith.constant 49 : index
    %c0_25 = arith.constant 0 : index
    %51 = vector.load %arg11[%c49, %c0_25] : memref<57x16xf32, #tpu.memory_space<vmem>>, vector<8x16xf32>
    tpu.vector_store %arg11[%c49, %c0_25], %50 {strides = array<i32>} : memref<57x16xf32, #tpu.memory_space<vmem>>, vector<8x16xf32>,
    %cst_26 = arith.constant 0.000000e+00 : f32
    %52 = vector.broadcast %cst_26 : f32 to vector<35x32xf32>
    %c0_27 = arith.constant 0 : index
    %c0_28 = arith.constant 0 : index
    %53 = vector.load %arg11[%c0_27, %c0_28] : memref<57x16xf32, #tpu.memory_space<vmem>>, vector<37x16xf32>
    %54 = vector.extract_strided_slice %53 {offsets = [0, 0], sizes = [35, 16], strides = [1, 1]} : vector<37x16xf32> to vector<35x16xf32>
    %55 = arith.truncf %54 : vector<35x16xf32> to vector<35x16xbf16>
    %c0_29 = arith.constant 0 : index
    %c0_30 = arith.constant 0 : index
    %56 = vector.load %arg4[%c0_29, %c0_30] : memref<144x32xbf16, #tpu.memory_space<vmem>>, vector<16x32xbf16>
    %cst_31 = arith.constant dense<0.000000e+00> : vector<35x32xf32>
    %57 = tpu.matmul %55, %56, %cst_31 {dimension_numbers = #tpu.dot_dimension_numbers<[1], [0], [0], [1], [0, 0, 1, 1], [], []>} : vector<35x16xbf16>, vector<16x32xbf16>, vector<35x32xf32> -> vector<35x32xf32>
    %58 = arith.addf %52, %57 : vector<35x32xf32>
    %59 = vector.extract_strided_slice %53 {offsets = [1, 0], sizes = [35, 16], strides = [1, 1]} : vector<37x16xf32> to vector<35x16xf32>
    %60 = arith.truncf %59 : vector<35x16xf32> to vector<35x16xbf16>
    %c16 = arith.constant 16 : index
    %c0_32 = arith.constant 0 : index
    %61 = vector.load %arg4[%c16, %c0_32] : memref<144x32xbf16, #tpu.memory_space<vmem>>, vector<16x32xbf16>
    %cst_33 = arith.constant dense<0.000000e+00> : vector<35x32xf32>
    %62 = tpu.matmul %60, %61, %cst_33 {dimension_numbers = #tpu.dot_dimension_numbers<[1], [0], [0], [1], [0, 0, 1, 1], [], []>} : vector<35x16xbf16>, vector<16x32xbf16>, vector<35x32xf32> -> vector<35x32xf32>
    %63 = arith.addf %58, %62 : vector<35x32xf32>
    %64 = vector.extract_strided_slice %53 {offsets = [2, 0], sizes = [35, 16], strides = [1, 1]} : vector<37x16xf32> to vector<35x16xf32>
    %65 = arith.truncf %64 : vector<35x16xf32> to vector<35x16xbf16>
    %c32 = arith.constant 32 : index
    %c0_34 = arith.constant 0 : index
    %66 = vector.load %arg4[%c32, %c0_34] : memref<144x32xbf16, #tpu.memory_space<vmem>>, vector<16x32xbf16>
    %cst_35 = arith.constant dense<0.000000e+00> : vector<35x32xf32>
    %67 = tpu.matmul %65, %66, %cst_35 {dimension_numbers = #tpu.dot_dimension_numbers<[1], [0], [0], [1], [0, 0, 1, 1], [], []>} : vector<35x16xbf16>, vector<16x32xbf16>, vector<35x32xf32> -> vector<35x32xf32>
    %68 = arith.addf %63, %67 : vector<35x32xf32>
    %c7 = arith.constant 7 : index
    %c0_36 = arith.constant 0 : index
    %69 = vector.load %arg11[%c7, %c0_36] : memref<57x16xf32, #tpu.memory_space<vmem>>, vector<37x16xf32>
    %70 = vector.extract_strided_slice %69 {offsets = [0, 0], sizes = [35, 16], strides = [1, 1]} : vector<37x16xf32> to vector<35x16xf32>
    %71 = arith.truncf %70 : vector<35x16xf32> to vector<35x16xbf16>
    %c48 = arith.constant 48 : index
    %c0_37 = arith.constant 0 : index
    %72 = vector.load %arg4[%c48, %c0_37] : memref<144x32xbf16, #tpu.memory_space<vmem>>, vector<16x32xbf16>
    %cst_38 = arith.constant dense<0.000000e+00> : vector<35x32xf32>
    %73 = tpu.matmul %71, %72, %cst_38 {dimension_numbers = #tpu.dot_dimension_numbers<[1], [0], [0], [1], [0, 0, 1, 1], [], []>} : vector<35x16xbf16>, vector<16x32xbf16>, vector<35x32xf32> -> vector<35x32xf32>
    %74 = arith.addf %68, %73 : vector<35x32xf32>
    %75 = vector.extract_strided_slice %69 {offsets = [1, 0], sizes = [35, 16], strides = [1, 1]} : vector<37x16xf32> to vector<35x16xf32>
    %76 = arith.truncf %75 : vector<35x16xf32> to vector<35x16xbf16>
    %c64 = arith.constant 64 : index
    %c0_39 = arith.constant 0 : index
    %77 = vector.load %arg4[%c64, %c0_39] : memref<144x32xbf16, #tpu.memory_space<vmem>>, vector<16x32xbf16>
    %cst_40 = arith.constant dense<0.000000e+00> : vector<35x32xf32>
    %78 = tpu.matmul %76, %77, %cst_40 {dimension_numbers = #tpu.dot_dimension_numbers<[1], [0], [0], [1], [0, 0, 1, 1], [], []>} : vector<35x16xbf16>, vector<16x32xbf16>, vector<35x32xf32> -> vector<35x32xf32>
    %79 = arith.addf %74, %78 : vector<35x32xf32>
    %80 = vector.extract_strided_slice %69 {offsets = [2, 0], sizes = [35, 16], strides = [1, 1]} : vector<37x16xf32> to vector<35x16xf32>
    %81 = arith.truncf %80 : vector<35x16xf32> to vector<35x16xbf16>
    %c80 = arith.constant 80 : index
    %c0_41 = arith.constant 0 : index
    %82 = vector.load %arg4[%c80, %c0_41] : memref<144x32xbf16, #tpu.memory_space<vmem>>, vector<16x32xbf16>
    %cst_42 = arith.constant dense<0.000000e+00> : vector<35x32xf32>
    %83 = tpu.matmul %81, %82, %cst_42 {dimension_numbers = #tpu.dot_dimension_numbers<[1], [0], [0], [1], [0, 0, 1, 1], [], []>} : vector<35x16xbf16>, vector<16x32xbf16>, vector<35x32xf32> -> vector<35x32xf32>
    %84 = arith.addf %79, %83 : vector<35x32xf32>
    %c14 = arith.constant 14 : index
    %c0_43 = arith.constant 0 : index
    %85 = vector.load %arg11[%c14, %c0_43] : memref<57x16xf32, #tpu.memory_space<vmem>>, vector<37x16xf32>
    %86 = vector.extract_strided_slice %85 {offsets = [0, 0], sizes = [35, 16], strides = [1, 1]} : vector<37x16xf32> to vector<35x16xf32>
    %87 = arith.truncf %86 : vector<35x16xf32> to vector<35x16xbf16>
    %c96 = arith.constant 96 : index
    %c0_44 = arith.constant 0 : index
    %88 = vector.load %arg4[%c96, %c0_44] : memref<144x32xbf16, #tpu.memory_space<vmem>>, vector<16x32xbf16>
    %cst_45 = arith.constant dense<0.000000e+00> : vector<35x32xf32>
    %89 = tpu.matmul %87, %88, %cst_45 {dimension_numbers = #tpu.dot_dimension_numbers<[1], [0], [0], [1], [0, 0, 1, 1], [], []>} : vector<35x16xbf16>, vector<16x32xbf16>, vector<35x32xf32> -> vector<35x32xf32>
    %90 = arith.addf %84, %89 : vector<35x32xf32>
    %91 = vector.extract_strided_slice %85 {offsets = [1, 0], sizes = [35, 16], strides = [1, 1]} : vector<37x16xf32> to vector<35x16xf32>
    %92 = arith.truncf %91 : vector<35x16xf32> to vector<35x16xbf16>
    %c112 = arith.constant 112 : index
    %c0_46 = arith.constant 0 : index
    %93 = vector.load %arg4[%c112, %c0_46] : memref<144x32xbf16, #tpu.memory_space<vmem>>, vector<16x32xbf16>
    %cst_47 = arith.constant dense<0.000000e+00> : vector<35x32xf32>
    %94 = tpu.matmul %92, %93, %cst_47 {dimension_numbers = #tpu.dot_dimension_numbers<[1], [0], [0], [1], [0, 0, 1, 1], [], []>} : vector<35x16xbf16>, vector<16x32xbf16>, vector<35x32xf32> -> vector<35x32xf32>
    %95 = arith.addf %90, %94 : vector<35x32xf32>
    %96 = vector.extract_strided_slice %85 {offsets = [2, 0], sizes = [35, 16], strides = [1, 1]} : vector<37x16xf32> to vector<35x16xf32>
    %97 = arith.truncf %96 : vector<35x16xf32> to vector<35x16xbf16>
    %c128 = arith.constant 128 : index
    %c0_48 = arith.constant 0 : index
    %98 = vector.load %arg4[%c128, %c0_48] : memref<144x32xbf16, #tpu.memory_space<vmem>>, vector<16x32xbf16>
    %cst_49 = arith.constant dense<0.000000e+00> : vector<35x32xf32>
    %99 = tpu.matmul %97, %98, %cst_49 {dimension_numbers = #tpu.dot_dimension_numbers<[1], [0], [0], [1], [0, 0, 1, 1], [], []>} : vector<35x16xbf16>, vector<16x32xbf16>, vector<35x32xf32> -> vector<35x32xf32>
    %100 = arith.addf %95, %99 : vector<35x32xf32>
    %c0_50 = arith.constant 0 : index
    %c0_51 = arith.constant 0 : index
    %101 = vector.load %arg5[%c0_50, %c0_51] : memref<1x32xf32, #tpu.memory_space<vmem>>, vector<1x32xf32>
    %102 = vector.broadcast %101 : vector<1x32xf32> to vector<35x32xf32>
    %103 = arith.addf %100, %102 : vector<35x32xf32>
    %cst_52 = arith.constant 5.000000e-01 : f32
    %104 = vector.broadcast %cst_52 : f32 to vector<35x32xf32>
    %105 = arith.mulf %104, %103 : vector<35x32xf32>
    %cst_53 = arith.constant 0.707106769 : f32
    %106 = vector.broadcast %cst_53 : f32 to vector<35x32xf32>
    %107 = arith.mulf %103, %106 : vector<35x32xf32>
    %108 = math.absf %107 : vector<35x32xf32>
    %cst_54 = arith.constant 0.327591091 : f32
    %109 = vector.broadcast %cst_54 : f32 to vector<35x32xf32>
    %110 = arith.mulf %109, %108 : vector<35x32xf32>
    %cst_55 = arith.constant 1.000000e+00 : f32
    %111 = vector.broadcast %cst_55 : f32 to vector<35x32xf32>
    %112 = arith.addf %111, %110 : vector<35x32xf32>
    %cst_56 = arith.constant 1.000000e+00 : f32
    %113 = vector.broadcast %cst_56 : f32 to vector<35x32xf32>
    %114 = arith.divf %113, %112 : vector<35x32xf32>
    %cst_57 = arith.constant 1.06140542 : f32
    %115 = vector.broadcast %cst_57 : f32 to vector<35x32xf32>
    %116 = arith.mulf %114, %115 : vector<35x32xf32>
    %cst_58 = arith.constant -1.45315206 : f32
    %117 = vector.broadcast %cst_58 : f32 to vector<35x32xf32>
    %118 = arith.addf %117, %116 : vector<35x32xf32>
    %119 = arith.mulf %114, %118 : vector<35x32xf32>
    %cst_59 = arith.constant 1.42141378 : f32
    %120 = vector.broadcast %cst_59 : f32 to vector<35x32xf32>
    %121 = arith.addf %120, %119 : vector<35x32xf32>
    %122 = arith.mulf %114, %121 : vector<35x32xf32>
    %cst_60 = arith.constant -0.284496725 : f32
    %123 = vector.broadcast %cst_60 : f32 to vector<35x32xf32>
    %124 = arith.addf %123, %122 : vector<35x32xf32>
    %125 = arith.mulf %114, %124 : vector<35x32xf32>
    %cst_61 = arith.constant 0.254829586 : f32
    %126 = vector.broadcast %cst_61 : f32 to vector<35x32xf32>
    %127 = arith.addf %126, %125 : vector<35x32xf32>
    %128 = arith.mulf %114, %127 : vector<35x32xf32>
    %cst_62 = arith.constant 0.000000e+00 : f32
    %129 = vector.broadcast %cst_62 : f32 to vector<35x32xf32>
    %130 = arith.subf %129, %108 : vector<35x32xf32>
    %131 = arith.mulf %130, %108 : vector<35x32xf32>
    %132 = math.exp %131 : vector<35x32xf32>
    %133 = arith.mulf %128, %132 : vector<35x32xf32>
    %cst_63 = arith.constant 1.000000e+00 : f32
    %134 = vector.broadcast %cst_63 : f32 to vector<35x32xf32>
    %135 = arith.subf %134, %133 : vector<35x32xf32>
    %cst_64 = arith.constant 0.000000e+00 : f32
    %136 = vector.broadcast %cst_64 : f32 to vector<35x32xf32>
    %137 = arith.cmpf olt, %107, %136 : vector<35x32xf32>
    %cst_65 = arith.constant 0.000000e+00 : f32
    %138 = vector.broadcast %cst_65 : f32 to vector<35x32xf32>
    %139 = arith.subf %138, %135 : vector<35x32xf32>
    %140 = arith.select %137, %139, %135 : vector<35x32xi1>, vector<35x32xf32>
    %cst_66 = arith.constant 1.000000e+00 : f32
    %141 = vector.broadcast %cst_66 : f32 to vector<35x32xf32>
    %142 = arith.addf %141, %140 : vector<35x32xf32>
    %143 = arith.mulf %105, %142 : vector<35x32xf32>
    %cst_67 = arith.constant 1.70150435 : f32
    %144 = vector.broadcast %cst_67 : f32 to vector<35x32xf32>
    %145 = arith.mulf %143, %144 : vector<35x32xf32>
    %c0_68 = arith.constant 0 : index
    %c0_69 = arith.constant 0 : index
    %146 = vector.load %arg12[%c0_68, %c0_69] : memref<43x32xf32, #tpu.memory_space<vmem>>, vector<35x32xf32>
    tpu.vector_store %arg12[%c0_68, %c0_69], %145 {strides = array<i32>} : memref<43x32xf32, #tpu.memory_space<vmem>>, vector<35x32xf32>,
    %cst_70 = arith.constant 0.000000e+00 : f32
    %147 = vector.broadcast %cst_70 : f32 to vector<8x32xf32>
    %c35 = arith.constant 35 : index
    %c0_71 = arith.constant 0 : index
    %148 = vector.load %arg12[%c35, %c0_71] : memref<43x32xf32, #tpu.memory_space<vmem>>, vector<8x32xf32>
    tpu.vector_store %arg12[%c35, %c0_71], %147 {strides = array<i32>} : memref<43x32xf32, #tpu.memory_space<vmem>>, vector<8x32xf32>,
    %cst_72 = arith.constant 0.000000e+00 : f32
    %149 = vector.broadcast %cst_72 : f32 to vector<21x64xf32>
    %c0_73 = arith.constant 0 : index
    %c0_74 = arith.constant 0 : index
    %150 = vector.load %arg12[%c0_73, %c0_74] : memref<43x32xf32, #tpu.memory_space<vmem>>, vector<23x32xf32>
    %151 = vector.extract_strided_slice %150 {offsets = [0, 0], sizes = [21, 32], strides = [1, 1]} : vector<23x32xf32> to vector<21x32xf32>
    %152 = arith.truncf %151 : vector<21x32xf32> to vector<21x32xbf16>
    %c0_75 = arith.constant 0 : index
    %c0_76 = arith.constant 0 : index
    %153 = vector.load %arg6[%c0_75, %c0_76] : memref<288x64xbf16, #tpu.memory_space<vmem>>, vector<32x64xbf16>
    %cst_77 = arith.constant dense<0.000000e+00> : vector<21x64xf32>
    %154 = tpu.matmul %152, %153, %cst_77 {dimension_numbers = #tpu.dot_dimension_numbers<[1], [0], [0], [1], [0, 0, 1, 1], [], []>} : vector<21x32xbf16>, vector<32x64xbf16>, vector<21x64xf32> -> vector<21x64xf32>
    %155 = arith.addf %149, %154 : vector<21x64xf32>
    %156 = vector.extract_strided_slice %150 {offsets = [1, 0], sizes = [21, 32], strides = [1, 1]} : vector<23x32xf32> to vector<21x32xf32>
    %157 = arith.truncf %156 : vector<21x32xf32> to vector<21x32xbf16>
    %c32_78 = arith.constant 32 : index
    %c0_79 = arith.constant 0 : index
    %158 = vector.load %arg6[%c32_78, %c0_79] : memref<288x64xbf16, #tpu.memory_space<vmem>>, vector<32x64xbf16>
    %cst_80 = arith.constant dense<0.000000e+00> : vector<21x64xf32>
    %159 = tpu.matmul %157, %158, %cst_80 {dimension_numbers = #tpu.dot_dimension_numbers<[1], [0], [0], [1], [0, 0, 1, 1], [], []>} : vector<21x32xbf16>, vector<32x64xbf16>, vector<21x64xf32> -> vector<21x64xf32>
    %160 = arith.addf %155, %159 : vector<21x64xf32>
    %161 = vector.extract_strided_slice %150 {offsets = [2, 0], sizes = [21, 32], strides = [1, 1]} : vector<23x32xf32> to vector<21x32xf32>
    %162 = arith.truncf %161 : vector<21x32xf32> to vector<21x32xbf16>
    %c64_81 = arith.constant 64 : index
    %c0_82 = arith.constant 0 : index
    %163 = vector.load %arg6[%c64_81, %c0_82] : memref<288x64xbf16, #tpu.memory_space<vmem>>, vector<32x64xbf16>
    %cst_83 = arith.constant dense<0.000000e+00> : vector<21x64xf32>
    %164 = tpu.matmul %162, %163, %cst_83 {dimension_numbers = #tpu.dot_dimension_numbers<[1], [0], [0], [1], [0, 0, 1, 1], [], []>} : vector<21x32xbf16>, vector<32x64xbf16>, vector<21x64xf32> -> vector<21x64xf32>
    %165 = arith.addf %160, %164 : vector<21x64xf32>
    %c7_84 = arith.constant 7 : index
    %c0_85 = arith.constant 0 : index
    %166 = vector.load %arg12[%c7_84, %c0_85] : memref<43x32xf32, #tpu.memory_space<vmem>>, vector<23x32xf32>
    %167 = vector.extract_strided_slice %166 {offsets = [0, 0], sizes = [21, 32], strides = [1, 1]} : vector<23x32xf32> to vector<21x32xf32>
    %168 = arith.truncf %167 : vector<21x32xf32> to vector<21x32xbf16>
    %c96_86 = arith.constant 96 : index
    %c0_87 = arith.constant 0 : index
    %169 = vector.load %arg6[%c96_86, %c0_87] : memref<288x64xbf16, #tpu.memory_space<vmem>>, vector<32x64xbf16>
    %cst_88 = arith.constant dense<0.000000e+00> : vector<21x64xf32>
    %170 = tpu.matmul %168, %169, %cst_88 {dimension_numbers = #tpu.dot_dimension_numbers<[1], [0], [0], [1], [0, 0, 1, 1], [], []>} : vector<21x32xbf16>, vector<32x64xbf16>, vector<21x64xf32> -> vector<21x64xf32>
    %171 = arith.addf %165, %170 : vector<21x64xf32>
    %172 = vector.extract_strided_slice %166 {offsets = [1, 0], sizes = [21, 32], strides = [1, 1]} : vector<23x32xf32> to vector<21x32xf32>
    %173 = arith.truncf %172 : vector<21x32xf32> to vector<21x32xbf16>
    %c128_89 = arith.constant 128 : index
    %c0_90 = arith.constant 0 : index
    %174 = vector.load %arg6[%c128_89, %c0_90] : memref<288x64xbf16, #tpu.memory_space<vmem>>, vector<32x64xbf16>
    %cst_91 = arith.constant dense<0.000000e+00> : vector<21x64xf32>
    %175 = tpu.matmul %173, %174, %cst_91 {dimension_numbers = #tpu.dot_dimension_numbers<[1], [0], [0], [1], [0, 0, 1, 1], [], []>} : vector<21x32xbf16>, vector<32x64xbf16>, vector<21x64xf32> -> vector<21x64xf32>
    %176 = arith.addf %171, %175 : vector<21x64xf32>
    %177 = vector.extract_strided_slice %166 {offsets = [2, 0], sizes = [21, 32], strides = [1, 1]} : vector<23x32xf32> to vector<21x32xf32>
    %178 = arith.truncf %177 : vector<21x32xf32> to vector<21x32xbf16>
    %c160 = arith.constant 160 : index
    %c0_92 = arith.constant 0 : index
    %179 = vector.load %arg6[%c160, %c0_92] : memref<288x64xbf16, #tpu.memory_space<vmem>>, vector<32x64xbf16>
    %cst_93 = arith.constant dense<0.000000e+00> : vector<21x64xf32>
    %180 = tpu.matmul %178, %179, %cst_93 {dimension_numbers = #tpu.dot_dimension_numbers<[1], [0], [0], [1], [0, 0, 1, 1], [], []>} : vector<21x32xbf16>, vector<32x64xbf16>, vector<21x64xf32> -> vector<21x64xf32>
    %181 = arith.addf %176, %180 : vector<21x64xf32>
    %c14_94 = arith.constant 14 : index
    %c0_95 = arith.constant 0 : index
    %182 = vector.load %arg12[%c14_94, %c0_95] : memref<43x32xf32, #tpu.memory_space<vmem>>, vector<23x32xf32>
    %183 = vector.extract_strided_slice %182 {offsets = [0, 0], sizes = [21, 32], strides = [1, 1]} : vector<23x32xf32> to vector<21x32xf32>
    %184 = arith.truncf %183 : vector<21x32xf32> to vector<21x32xbf16>
    %c192 = arith.constant 192 : index
    %c0_96 = arith.constant 0 : index
    %185 = vector.load %arg6[%c192, %c0_96] : memref<288x64xbf16, #tpu.memory_space<vmem>>, vector<32x64xbf16>
    %cst_97 = arith.constant dense<0.000000e+00> : vector<21x64xf32>
    %186 = tpu.matmul %184, %185, %cst_97 {dimension_numbers = #tpu.dot_dimension_numbers<[1], [0], [0], [1], [0, 0, 1, 1], [], []>} : vector<21x32xbf16>, vector<32x64xbf16>, vector<21x64xf32> -> vector<21x64xf32>
    %187 = arith.addf %181, %186 : vector<21x64xf32>
    %188 = vector.extract_strided_slice %182 {offsets = [1, 0], sizes = [21, 32], strides = [1, 1]} : vector<23x32xf32> to vector<21x32xf32>
    %189 = arith.truncf %188 : vector<21x32xf32> to vector<21x32xbf16>
    %c224 = arith.constant 224 : index
    %c0_98 = arith.constant 0 : index
    %190 = vector.load %arg6[%c224, %c0_98] : memref<288x64xbf16, #tpu.memory_space<vmem>>, vector<32x64xbf16>
    %cst_99 = arith.constant dense<0.000000e+00> : vector<21x64xf32>
    %191 = tpu.matmul %189, %190, %cst_99 {dimension_numbers = #tpu.dot_dimension_numbers<[1], [0], [0], [1], [0, 0, 1, 1], [], []>} : vector<21x32xbf16>, vector<32x64xbf16>, vector<21x64xf32> -> vector<21x64xf32>
    %192 = arith.addf %187, %191 : vector<21x64xf32>
    %193 = vector.extract_strided_slice %182 {offsets = [2, 0], sizes = [21, 32], strides = [1, 1]} : vector<23x32xf32> to vector<21x32xf32>
    %194 = arith.truncf %193 : vector<21x32xf32> to vector<21x32xbf16>
    %c256 = arith.constant 256 : index
    %c0_100 = arith.constant 0 : index
    %195 = vector.load %arg6[%c256, %c0_100] : memref<288x64xbf16, #tpu.memory_space<vmem>>, vector<32x64xbf16>
    %cst_101 = arith.constant dense<0.000000e+00> : vector<21x64xf32>
    %196 = tpu.matmul %194, %195, %cst_101 {dimension_numbers = #tpu.dot_dimension_numbers<[1], [0], [0], [1], [0, 0, 1, 1], [], []>} : vector<21x32xbf16>, vector<32x64xbf16>, vector<21x64xf32> -> vector<21x64xf32>
    %197 = arith.addf %192, %196 : vector<21x64xf32>
    %c0_102 = arith.constant 0 : index
    %c0_103 = arith.constant 0 : index
    %198 = vector.load %arg7[%c0_102, %c0_103] : memref<1x64xf32, #tpu.memory_space<vmem>>, vector<1x64xf32>
    %199 = vector.broadcast %198 : vector<1x64xf32> to vector<21x64xf32>
    %200 = arith.addf %197, %199 : vector<21x64xf32>
    %cst_104 = arith.constant 5.000000e-01 : f32
    %201 = vector.broadcast %cst_104 : f32 to vector<21x64xf32>
    %202 = arith.mulf %201, %200 : vector<21x64xf32>
    %cst_105 = arith.constant 0.707106769 : f32
    %203 = vector.broadcast %cst_105 : f32 to vector<21x64xf32>
    %204 = arith.mulf %200, %203 : vector<21x64xf32>
    %205 = math.absf %204 : vector<21x64xf32>
    %cst_106 = arith.constant 0.327591091 : f32
    %206 = vector.broadcast %cst_106 : f32 to vector<21x64xf32>
    %207 = arith.mulf %206, %205 : vector<21x64xf32>
    %cst_107 = arith.constant 1.000000e+00 : f32
    %208 = vector.broadcast %cst_107 : f32 to vector<21x64xf32>
    %209 = arith.addf %208, %207 : vector<21x64xf32>
    %cst_108 = arith.constant 1.000000e+00 : f32
    %210 = vector.broadcast %cst_108 : f32 to vector<21x64xf32>
    %211 = arith.divf %210, %209 : vector<21x64xf32>
    %cst_109 = arith.constant 1.06140542 : f32
    %212 = vector.broadcast %cst_109 : f32 to vector<21x64xf32>
    %213 = arith.mulf %211, %212 : vector<21x64xf32>
    %cst_110 = arith.constant -1.45315206 : f32
    %214 = vector.broadcast %cst_110 : f32 to vector<21x64xf32>
    %215 = arith.addf %214, %213 : vector<21x64xf32>
    %216 = arith.mulf %211, %215 : vector<21x64xf32>
    %cst_111 = arith.constant 1.42141378 : f32
    %217 = vector.broadcast %cst_111 : f32 to vector<21x64xf32>
    %218 = arith.addf %217, %216 : vector<21x64xf32>
    %219 = arith.mulf %211, %218 : vector<21x64xf32>
    %cst_112 = arith.constant -0.284496725 : f32
    %220 = vector.broadcast %cst_112 : f32 to vector<21x64xf32>
    %221 = arith.addf %220, %219 : vector<21x64xf32>
    %222 = arith.mulf %211, %221 : vector<21x64xf32>
    %cst_113 = arith.constant 0.254829586 : f32
    %223 = vector.broadcast %cst_113 : f32 to vector<21x64xf32>
    %224 = arith.addf %223, %222 : vector<21x64xf32>
    %225 = arith.mulf %211, %224 : vector<21x64xf32>
    %cst_114 = arith.constant 0.000000e+00 : f32
    %226 = vector.broadcast %cst_114 : f32 to vector<21x64xf32>
    %227 = arith.subf %226, %205 : vector<21x64xf32>
    %228 = arith.mulf %227, %205 : vector<21x64xf32>
    %229 = math.exp %228 : vector<21x64xf32>
    %230 = arith.mulf %225, %229 : vector<21x64xf32>
    %cst_115 = arith.constant 1.000000e+00 : f32
    %231 = vector.broadcast %cst_115 : f32 to vector<21x64xf32>
    %232 = arith.subf %231, %230 : vector<21x64xf32>
    %cst_116 = arith.constant 0.000000e+00 : f32
    %233 = vector.broadcast %cst_116 : f32 to vector<21x64xf32>
    %234 = arith.cmpf olt, %204, %233 : vector<21x64xf32>
    %cst_117 = arith.constant 0.000000e+00 : f32
    %235 = vector.broadcast %cst_117 : f32 to vector<21x64xf32>
    %236 = arith.subf %235, %232 : vector<21x64xf32>
    %237 = arith.select %234, %236, %232 : vector<21x64xi1>, vector<21x64xf32>
    %cst_118 = arith.constant 1.000000e+00 : f32
    %238 = vector.broadcast %cst_118 : f32 to vector<21x64xf32>
    %239 = arith.addf %238, %237 : vector<21x64xf32>
    %240 = arith.mulf %202, %239 : vector<21x64xf32>
    %cst_119 = arith.constant 1.70150435 : f32
    %241 = vector.broadcast %cst_119 : f32 to vector<21x64xf32>
    %242 = arith.mulf %240, %241 : vector<21x64xf32>
    %c0_120 = arith.constant 0 : index
    %c0_121 = arith.constant 0 : index
    %243 = vector.load %arg13[%c0_120, %c0_121] : memref<21x64xf32, #tpu.memory_space<vmem>>, vector<21x64xf32>
    tpu.vector_store %arg13[%c0_120, %c0_121], %242 {strides = array<i32>} : memref<21x64xf32, #tpu.memory_space<vmem>>, vector<21x64xf32>,
    %c0_i32 = arith.constant 0 : i32
    %cst_122 = arith.constant 0.000000e+00 : f32
    %244 = vector.broadcast %cst_122 : f32 to vector<1x128xf32>
    %c2_i32 = arith.constant 2 : i32
    %245 = arith.muli %c2_i32, %c0_i32 : i32
    %c0_i32_123 = arith.constant 0 : i32
    %246 = arith.addi %245, %c0_i32_123 : i32
    %c7_i32 = arith.constant 7 : i32
    %247 = arith.muli %246, %c7_i32 : i32
    %248 = arith.index_cast %247 : i32 to index
    %c0_124 = arith.constant 0 : index
    %249 = vector.load %arg13[%248, %c0_124] : memref<21x64xf32, #tpu.memory_space<vmem>>, vector<3x64xf32>
    %250 = vector.extract_strided_slice %249 {offsets = [0, 0], sizes = [1, 64], strides = [1, 1]} : vector<3x64xf32> to vector<1x64xf32>
    %251 = arith.truncf %250 : vector<1x64xf32> to vector<1x64xbf16>
    %c0_125 = arith.constant 0 : index
    %c0_126 = arith.constant 0 : index
    %252 = vector.load %arg8[%c0_125, %c0_126] : memref<576x128xbf16, #tpu.memory_space<vmem>>, vector<64x128xbf16>
    %cst_127 = arith.constant dense<0.000000e+00> : vector<1x128xf32>
    %253 = tpu.matmul %251, %252, %cst_127 {dimension_numbers = #tpu.dot_dimension_numbers<[1], [0], [0], [1], [0, 0, 1, 1], [], []>} : vector<1x64xbf16>, vector<64x128xbf16>, vector<1x128xf32> -> vector<1x128xf32>
    %254 = arith.addf %244, %253 : vector<1x128xf32>
    %255 = vector.extract_strided_slice %249 {offsets = [1, 0], sizes = [1, 64], strides = [1, 1]} : vector<3x64xf32> to vector<1x64xf32>
    %256 = arith.truncf %255 : vector<1x64xf32> to vector<1x64xbf16>
    %c64_128 = arith.constant 64 : index
    %c0_129 = arith.constant 0 : index
    %257 = vector.load %arg8[%c64_128, %c0_129] : memref<576x128xbf16, #tpu.memory_space<vmem>>, vector<64x128xbf16>
    %cst_130 = arith.constant dense<0.000000e+00> : vector<1x128xf32>
    %258 = tpu.matmul %256, %257, %cst_130 {dimension_numbers = #tpu.dot_dimension_numbers<[1], [0], [0], [1], [0, 0, 1, 1], [], []>} : vector<1x64xbf16>, vector<64x128xbf16>, vector<1x128xf32> -> vector<1x128xf32>
    %259 = arith.addf %254, %258 : vector<1x128xf32>
    %260 = vector.extract_strided_slice %249 {offsets = [2, 0], sizes = [1, 64], strides = [1, 1]} : vector<3x64xf32> to vector<1x64xf32>
    %261 = arith.truncf %260 : vector<1x64xf32> to vector<1x64xbf16>
    %c128_131 = arith.constant 128 : index
    %c0_132 = arith.constant 0 : index
    %262 = vector.load %arg8[%c128_131, %c0_132] : memref<576x128xbf16, #tpu.memory_space<vmem>>, vector<64x128xbf16>
    %cst_133 = arith.constant dense<0.000000e+00> : vector<1x128xf32>
    %263 = tpu.matmul %261, %262, %cst_133 {dimension_numbers = #tpu.dot_dimension_numbers<[1], [0], [0], [1], [0, 0, 1, 1], [], []>} : vector<1x64xbf16>, vector<64x128xbf16>, vector<1x128xf32> -> vector<1x128xf32>
    %264 = arith.addf %259, %263 : vector<1x128xf32>
    %c2_i32_134 = arith.constant 2 : i32
    %265 = arith.muli %c2_i32_134, %c0_i32 : i32
    %c1_i32 = arith.constant 1 : i32
    %266 = arith.addi %265, %c1_i32 : i32
    %c7_i32_135 = arith.constant 7 : i32
    %267 = arith.muli %266, %c7_i32_135 : i32
    %268 = arith.index_cast %267 : i32 to index
    %c0_136 = arith.constant 0 : index
    %269 = vector.load %arg13[%268, %c0_136] : memref<21x64xf32, #tpu.memory_space<vmem>>, vector<3x64xf32>
    %270 = vector.extract_strided_slice %269 {offsets = [0, 0], sizes = [1, 64], strides = [1, 1]} : vector<3x64xf32> to vector<1x64xf32>
    %271 = arith.truncf %270 : vector<1x64xf32> to vector<1x64xbf16>
    %c192_137 = arith.constant 192 : index
    %c0_138 = arith.constant 0 : index
    %272 = vector.load %arg8[%c192_137, %c0_138] : memref<576x128xbf16, #tpu.memory_space<vmem>>, vector<64x128xbf16>
    %cst_139 = arith.constant dense<0.000000e+00> : vector<1x128xf32>
    %273 = tpu.matmul %271, %272, %cst_139 {dimension_numbers = #tpu.dot_dimension_numbers<[1], [0], [0], [1], [0, 0, 1, 1], [], []>} : vector<1x64xbf16>, vector<64x128xbf16>, vector<1x128xf32> -> vector<1x128xf32>
    %274 = arith.addf %264, %273 : vector<1x128xf32>
    %275 = vector.extract_strided_slice %269 {offsets = [1, 0], sizes = [1, 64], strides = [1, 1]} : vector<3x64xf32> to vector<1x64xf32>
    %276 = arith.truncf %275 : vector<1x64xf32> to vector<1x64xbf16>
    %c256_140 = arith.constant 256 : index
    %c0_141 = arith.constant 0 : index
    %277 = vector.load %arg8[%c256_140, %c0_141] : memref<576x128xbf16, #tpu.memory_space<vmem>>, vector<64x128xbf16>
    %cst_142 = arith.constant dense<0.000000e+00> : vector<1x128xf32>
    %278 = tpu.matmul %276, %277, %cst_142 {dimension_numbers = #tpu.dot_dimension_numbers<[1], [0], [0], [1], [0, 0, 1, 1], [], []>} : vector<1x64xbf16>, vector<64x128xbf16>, vector<1x128xf32> -> vector<1x128xf32>
    %279 = arith.addf %274, %278 : vector<1x128xf32>
    %280 = vector.extract_strided_slice %269 {offsets = [2, 0], sizes = [1, 64], strides = [1, 1]} : vector<3x64xf32> to vector<1x64xf32>
    %281 = arith.truncf %280 : vector<1x64xf32> to vector<1x64xbf16>
    %c320 = arith.constant 320 : index
    %c0_143 = arith.constant 0 : index
    %282 = vector.load %arg8[%c320, %c0_143] : memref<576x128xbf16, #tpu.memory_space<vmem>>, vector<64x128xbf16>
    %cst_144 = arith.constant dense<0.000000e+00> : vector<1x128xf32>
    %283 = tpu.matmul %281, %282, %cst_144 {dimension_numbers = #tpu.dot_dimension_numbers<[1], [0], [0], [1], [0, 0, 1, 1], [], []>} : vector<1x64xbf16>, vector<64x128xbf16>, vector<1x128xf32> -> vector<1x128xf32>
    %284 = arith.addf %279, %283 : vector<1x128xf32>
    %c2_i32_145 = arith.constant 2 : i32
    %285 = arith.muli %c2_i32_145, %c0_i32 : i32
    %c2_i32_146 = arith.constant 2 : i32
    %286 = arith.addi %285, %c2_i32_146 : i32
    %c7_i32_147 = arith.constant 7 : i32
    %287 = arith.muli %286, %c7_i32_147 : i32
    %288 = arith.index_cast %287 : i32 to index
    %c0_148 = arith.constant 0 : index
    %289 = vector.load %arg13[%288, %c0_148] : memref<21x64xf32, #tpu.memory_space<vmem>>, vector<3x64xf32>
    %290 = vector.extract_strided_slice %289 {offsets = [0, 0], sizes = [1, 64], strides = [1, 1]} : vector<3x64xf32> to vector<1x64xf32>
    %291 = arith.truncf %290 : vector<1x64xf32> to vector<1x64xbf16>
    %c384 = arith.constant 384 : index
    %c0_149 = arith.constant 0 : index
    %292 = vector.load %arg8[%c384, %c0_149] : memref<576x128xbf16, #tpu.memory_space<vmem>>, vector<64x128xbf16>
    %cst_150 = arith.constant dense<0.000000e+00> : vector<1x128xf32>
    %293 = tpu.matmul %291, %292, %cst_150 {dimension_numbers = #tpu.dot_dimension_numbers<[1], [0], [0], [1], [0, 0, 1, 1], [], []>} : vector<1x64xbf16>, vector<64x128xbf16>, vector<1x128xf32> -> vector<1x128xf32>
    %294 = arith.addf %284, %293 : vector<1x128xf32>
    %295 = vector.extract_strided_slice %289 {offsets = [1, 0], sizes = [1, 64], strides = [1, 1]} : vector<3x64xf32> to vector<1x64xf32>
    %296 = arith.truncf %295 : vector<1x64xf32> to vector<1x64xbf16>
    %c448 = arith.constant 448 : index
    %c0_151 = arith.constant 0 : index
    %297 = vector.load %arg8[%c448, %c0_151] : memref<576x128xbf16, #tpu.memory_space<vmem>>, vector<64x128xbf16>
    %cst_152 = arith.constant dense<0.000000e+00> : vector<1x128xf32>
    %298 = tpu.matmul %296, %297, %cst_152 {dimension_numbers = #tpu.dot_dimension_numbers<[1], [0], [0], [1], [0, 0, 1, 1], [], []>} : vector<1x64xbf16>, vector<64x128xbf16>, vector<1x128xf32> -> vector<1x128xf32>
    %299 = arith.addf %294, %298 : vector<1x128xf32>
    %300 = vector.extract_strided_slice %289 {offsets = [2, 0], sizes = [1, 64], strides = [1, 1]} : vector<3x64xf32> to vector<1x64xf32>
    %301 = arith.truncf %300 : vector<1x64xf32> to vector<1x64xbf16>
    %c512 = arith.constant 512 : index
    %c0_153 = arith.constant 0 : index
    %302 = vector.load %arg8[%c512, %c0_153] : memref<576x128xbf16, #tpu.memory_space<vmem>>, vector<64x128xbf16>
    %cst_154 = arith.constant dense<0.000000e+00> : vector<1x128xf32>
    %303 = tpu.matmul %301, %302, %cst_154 {dimension_numbers = #tpu.dot_dimension_numbers<[1], [0], [0], [1], [0, 0, 1, 1], [], []>} : vector<1x64xbf16>, vector<64x128xbf16>, vector<1x128xf32> -> vector<1x128xf32>
    %304 = arith.addf %299, %303 : vector<1x128xf32>
    %c0_155 = arith.constant 0 : index
    %c0_156 = arith.constant 0 : index
    %305 = vector.load %arg9[%c0_155, %c0_156] : memref<1x128xf32, #tpu.memory_space<vmem>>, vector<1x128xf32>
    %306 = arith.addf %304, %305 : vector<1x128xf32>
    %c1_i32_157 = arith.constant 1 : i32
    %307 = arith.muli %c0_i32, %c1_i32_157 : i32
    %c0_158 = arith.constant 0 : index
    %308 = arith.index_cast %307 : i32 to index
    %c0_159 = arith.constant 0 : index
    %309 = vector.load %arg10[%c0_158, %308, %c0_159] : memref<1x1x128xf32, #tpu.memory_space<vmem>>, vector<1x1x128xf32>
    %310 = vector.shape_cast %309 : vector<1x1x128xf32> to vector<1x128xf32>
    %311 = vector.shape_cast %306 : vector<1x128xf32> to vector<1x1x128xf32>
    tpu.vector_store %arg10[%c0_158, %308, %c0_159], %311 {strides = array<i32>} : memref<1x1x128xf32, #tpu.memory_space<vmem>>, vector<1x1x128xf32>,
    %c1_i32_160 = arith.constant 1 : i32
    return
  }
  func.func @transform_0(%arg0: i32) -> (i32, i32, i32) {
    %c0_i32 = arith.constant 0 : i32
    %c0_i32_0 = arith.constant 0 : i32
    %c0_i32_1 = arith.constant 0 : i32
    return %arg0, %c0_i32, %c0_i32_0 : i32, i32, i32
  }
  func.func @transform_1(%arg0: i32) -> (i32, i32) {
    %c0_i32 = arith.constant 0 : i32
    %c0_i32_0 = arith.constant 0 : i32
    %c0_i32_1 = arith.constant 0 : i32
    return %c0_i32, %c0_i32_0 : i32, i32
  }
  func.func @transform_2(%arg0: i32) -> (i32, i32) {
    %c0_i32 = arith.constant 0 : i32
    %c0_i32_0 = arith.constant 0 : i32
    %c0_i32_1 = arith.constant 0 : i32
    return %c0_i32, %c0_i32_0 : i32, i32
  }
  func.func @transform_3(%arg0: i32) -> (i32, i32) {
    %c0_i32 = arith.constant 0 : i32
    %c0_i32_0 = arith.constant 0 : i32
    %c0_i32_1 = arith.constant 0 : i32
    return %c0_i32, %c0_i32_0 : i32, i32
  }
  func.func @transform_4(%arg0: i32) -> (i32, i32) {
    %c0_i32 = arith.constant 0 : i32
    %c0_i32_0 = arith.constant 0 : i32
    %c0_i32_1 = arith.constant 0 : i32
    return %c0_i32, %c0_i32_0 : i32, i32
  }
  func.func @transform_5(%arg0: i32) -> (i32, i32) {
    %c0_i32 = arith.constant 0 : i32
    %c0_i32_0 = arith.constant 0 : i32
    %c0_i32_1 = arith.constant 0 : i32
    return %c0_i32, %c0_i32_0 : i32, i32
  }
  func.func @transform_6(%arg0: i32) -> (i32, i32) {
    %c0_i32 = arith.constant 0 : i32
    %c0_i32_0 = arith.constant 0 : i32
    %c0_i32_1 = arith.constant 0 : i32
    return %c0_i32, %c0_i32_0 : i32, i32
  }
  func.func @transform_7(%arg0: i32) -> (i32, i32) {
    %c0_i32 = arith.constant 0 : i32
    %c0_i32_0 = arith.constant 0 : i32
    %c0_i32_1 = arith.constant 0 : i32
    return %c0_i32, %c0_i32_0 : i32, i32
  }
  func.func @transform_8(%arg0: i32) -> (i32, i32) {
    %c0_i32 = arith.constant 0 : i32
    %c0_i32_0 = arith.constant 0 : i32
    %c0_i32_1 = arith.constant 0 : i32
    return %c0_i32, %c0_i32_0 : i32, i32
  }
  func.func @transform_9(%arg0: i32) -> (i32, i32, i32) {
    %c0_i32 = arith.constant 0 : i32
    %c0_i32_0 = arith.constant 0 : i32
    %c0_i32_1 = arith.constant 0 : i32
    return %arg0, %c0_i32, %c0_i32_0 : i32, i32, i32
  }
}

</mosaic_0001>

<llo_original>
// kernel: stem_forward.1
$region0: #{stem_forward.1}
  #allocation0 [shape = 'u32[]', space=smem, size = 0x4, offset = 0x4, fixed_abs, tag = 'smem constant byte address 0x4 - core index']
  #allocation1 [shape = 'u32[144,128]{1,0:T(1,128)}', space=vmem, size = 0x12000, scoped, tag = 'internal scratch']
  #allocation2 [shape = 'f32[57,16]{1,0:T(8,128)}', space=vmem, size = 0x8000, scoped, tag = 'scratch operand']
  #allocation3 [shape = 'f32[43,32]{1,0:T(8,128)}', space=vmem, size = 0x6000, scoped, tag = 'scratch operand']
  #allocation4 [shape = 'f32[21,64]{1,0:T(8,128)}', space=vmem, size = 0x3000, scoped, tag = 'scratch operand']
  %s0 = inlined_call_operand.vmem [shape: bf16[2,49,27], index: 0, kind: input, shape index: {}]
  %s1 = inlined_call_operand.vmem [shape: bf16[27,16], index: 1, kind: input, shape index: {}]
  %s2 = inlined_call_operand.vmem [shape: f32[1,16], index: 2, kind: input, shape index: {}]
  %s3 = inlined_call_operand.vmem [shape: bf16[144,32], index: 3, kind: input, shape index: {}]
  %s4 = inlined_call_operand.vmem [shape: f32[1,32], index: 4, kind: input, shape index: {}]
  %s5 = inlined_call_operand.vmem [shape: bf16[288,64], index: 5, kind: input, shape index: {}]
  %s6 = inlined_call_operand.vmem [shape: f32[1,64], index: 6, kind: input, shape index: {}]
  %s7 = inlined_call_operand.vmem [shape: bf16[576,128], index: 7, kind: input, shape index: {}]
  %s8 = inlined_call_operand.vmem [shape: f32[1,128], index: 8, kind: input, shape index: {}]
  %s9 = inlined_call_operand.hbm [shape: f32[2,1,128], index: 9, kind: output, shape index: {}]
  %s10 = sld [smem:[#allocation0]]
  $region69: #{stem_forward.1} parent=0
    _
  %s12 = ssub.s32 1, %s10
  %s13 = scalar_select 0, %s12, %s10
  $region1: #{stem_forward.1} parent=0
    #allocation5 [shape = 'u8[1024]{0}', space=vmem, size = 0x400, scoped, tag = 'output window, operand 0']
    #allocation6 [shape = 's32[2]{0}', space=sflag, size = 0x8, scoped, tag = 'scoped memory for stem_forward.1']
    %14 = vsyncpa [#allocation6], 0
    %s15 = scalar_lea.sflag [#allocation6], 1
    %16 = vsyncpa %s15, 0
    loop: start=0, step=1, limit=4
    $region2: #{stem_forward.1} parent=1 // loop_pre_header
      _
    $region3: #{stem_forward.1} parent=1 // loop_header
      %s18 = sphi 0, %s22
      %p19 = scmp.ge.s32.totalorder %s18, 4
      %s28 = sphi 0, %s30
      %s31 = sphi 0, %s28
      %s32 = sphi 0, %s31
      %s48 = sphi 0, %s32
      %s52 = sphi 0, %s52
      %s54 = sphi 0, %s52
      %s55 = sphi 0, %s54
      %s69 = sphi 0, %s55
      %s73 = sphi 0, %s73
      %s75 = sphi 0, %s73
      %s76 = sphi 0, %s75
      %s90 = sphi 0, %s76
      %s94 = sphi 0, %s94
      %s96 = sphi 0, %s94
      %s97 = sphi 0, %s96
      %s111 = sphi 0, %s97
      %s115 = sphi 0, %s115
      %s117 = sphi 0, %s115
      %s118 = sphi 0, %s117
      %s132 = sphi 0, %s118
      %s136 = sphi 0, %s136
      %s138 = sphi 0, %s136
      %s139 = sphi 0, %s138
      %s153 = sphi 0, %s139
      %s157 = sphi 0, %s157
      %s159 = sphi 0, %s157
      %s160 = sphi 0, %s159
      %s174 = sphi 0, %s160
      %s178 = sphi 0, %s178
      %s180 = sphi 0, %s178
      %s181 = sphi 0, %s180
      %s195 = sphi 0, %s181
      %s199 = sphi 0, %s199
      %s201 = sphi 0, %s199
      %s202 = sphi 0, %s201
      %s216 = sphi 0, %s202
      %s222 = sphi 0, %s224
      %s225 = sphi 0, %s222
      %s226 = sphi 0, %s225
      %s242 = sphi 0, %s226
    $region4: #{stem_forward.1} parent=1 // loop_header_branch
      %21 = sbr.rel (%p19) target = $region8
    $region5: #{stem_forward.1} parent=1 // loop_body
      %s23 = ssub.s32 %s18, 1
      %s24 = ssub.s32 %s18, 2
      %s25 = sadd.s32 %s18, 1
      %s26 = ssub.s32 %s18, %s25
      %p27 = scmp.eq.s32.totalorder %s26, 0
      %s29 = sadd.s32 %s28, 1
      %s30 = scalar_select %p27, %s28, %s29
      %p33 = pneg %p27
      %p34 = scmp.eq.s32.totalorder %s18, 1
      %p35 = por %p33, %p34
      %p36 = scmp.ne.s32.totalorder %s28, %s31
      %p37 = scmp.eq.s32.totalorder %s18, 0
      %p38 = por %p36, %p37
      %p39 = scmp.ne.s32.totalorder %s28, %s31
      %p40 = scmp.eq.s32.totalorder %s23, 1
      %p41 = por %p39, %p40
      %p42 = scmp.ne.s32.totalorder %s31, %s32
      %p43 = scmp.eq.s32.totalorder %s23, 0
      %p44 = por %p42, %p43
      %p45 = scmp.ne.s32.totalorder %s31, %s32
      %p46 = scmp.eq.s32.totalorder %s24, 1
      %p47 = por %p45, %p46
      %p49 = scmp.ne.s32.totalorder %s32, %s48
      %p50 = scmp.eq.s32.totalorder %s24, 0
      %p51 = por %p49, %p50
      %s53 = sadd.s32 %s52, 1
      %p56 = scmp.eq.s32.totalorder %s18, 1
      %p57 = scmp.ne.s32.totalorder %s52, %s54
      %p58 = scmp.eq.s32.totalorder %s18, 0
      %p59 = por %p57, %p58
      %p60 = scmp.ne.s32.totalorder %s52, %s54
      %p61 = scmp.eq.s32.totalorder %s23, 1
      %p62 = por %p60, %p61
      %p63 = scmp.ne.s32.totalorder %s54, %s55
      %p64 = scmp.eq.s32.totalorder %s23, 0
      %p65 = por %p63, %p64
      %p66 = scmp.ne.s32.totalorder %s54, %s55
      %p67 = scmp.eq.s32.totalorder %s24, 1
      %p68 = por %p66, %p67
      %p70 = scmp.ne.s32.totalorder %s55, %s69
      %p71 = scmp.eq.s32.totalorder %s24, 0
      %p72 = por %p70, %p71
      %s74 = sadd.s32 %s73, 1
      %p77 = scmp.eq.s32.totalorder %s18, 1
      %p78 = scmp.ne.s32.totalorder %s73, %s75
      %p79 = scmp.eq.s32.totalorder %s18, 0
      %p80 = por %p78, %p79
      %p81 = scmp.ne.s32.totalorder %s73, %s75
      %p82 = scmp.eq.s32.totalorder %s23, 1
      %p83 = por %p81, %p82
      %p84 = scmp.ne.s32.totalorder %s75, %s76
      %p85 = scmp.eq.s32.totalorder %s23, 0
      %p86 = por %p84, %p85
      %p87 = scmp.ne.s32.totalorder %s75, %s76
      %p88 = scmp.eq.s32.totalorder %s24, 1
      %p89 = por %p87, %p88
      %p91 = scmp.ne.s32.totalorder %s76, %s90
      %p92 = scmp.eq.s32.totalorder %s24, 0
      %p93 = por %p91, %p92
      %s95 = sadd.s32 %s94, 1
      %p98 = scmp.eq.s32.totalorder %s18, 1
      %p99 = scmp.ne.s32.totalorder %s94, %s96
      %p100 = scmp.eq.s32.totalorder %s18, 0
      %p101 = por %p99, %p100
      %p102 = scmp.ne.s32.totalorder %s94, %s96
      %p103 = scmp.eq.s32.totalorder %s23, 1
      %p104 = por %p102, %p103
      %p105 = scmp.ne.s32.totalorder %s96, %s97
      %p106 = scmp.eq.s32.totalorder %s23, 0
      %p107 = por %p105, %p106
      %p108 = scmp.ne.s32.totalorder %s96, %s97
      %p109 = scmp.eq.s32.totalorder %s24, 1
      %p110 = por %p108, %p109
      %p112 = scmp.ne.s32.totalorder %s97, %s111
      %p113 = scmp.eq.s32.totalorder %s24, 0
      %p114 = por %p112, %p113
      %s116 = sadd.s32 %s115, 1
      %p119 = scmp.eq.s32.totalorder %s18, 1
      %p120 = scmp.ne.s32.totalorder %s115, %s117
      %p121 = scmp.eq.s32.totalorder %s18, 0
      %p122 = por %p120, %p121
      %p123 = scmp.ne.s32.totalorder %s115, %s117
      %p124 = scmp.eq.s32.totalorder %s23, 1
      %p125 = por %p123, %p124
      %p126 = scmp.ne.s32.totalorder %s117, %s118
      %p127 = scmp.eq.s32.totalorder %s23, 0
      %p128 = por %p126, %p127
      %p129 = scmp.ne.s32.totalorder %s117, %s118
      %p130 = scmp.eq.s32.totalorder %s24, 1
      %p131 = por %p129, %p130
      %p133 = scmp.ne.s32.totalorder %s118, %s132
      %p134 = scmp.eq.s32.totalorder %s24, 0
      %p135 = por %p133, %p134
      %s137 = sadd.s32 %s136, 1
      %p140 = scmp.eq.s32.totalorder %s18, 1
      %p141 = scmp.ne.s32.totalorder %s136, %s138
      %p142 = scmp.eq.s32.totalorder %s18, 0
      %p143 = por %p141, %p142
      %p144 = scmp.ne.s32.totalorder %s136, %s138
      %p145 = scmp.eq.s32.totalorder %s23, 1
      %p146 = por %p144, %p145
      %p147 = scmp.ne.s32.totalorder %s138, %s139
      %p148 = scmp.eq.s32.totalorder %s23, 0
      %p149 = por %p147, %p148
      %p150 = scmp.ne.s32.totalorder %s138, %s139
      %p151 = scmp.eq.s32.totalorder %s24, 1
      %p152 = por %p150, %p151
      %p154 = scmp.ne.s32.totalorder %s139, %s153
      %p155 = scmp.eq.s32.totalorder %s24, 0
      %p156 = por %p154, %p155
      %s158 = sadd.s32 %s157, 1
      %p161 = scmp.eq.s32.totalorder %s18, 1
      %p162 = scmp.ne.s32.totalorder %s157, %s159
      %p163 = scmp.eq.s32.totalorder %s18, 0
      %p164 = por %p162, %p163
      %p165 = scmp.ne.s32.totalorder %s157, %s159
      %p166 = scmp.eq.s32.totalorder %s23, 1
      %p167 = por %p165, %p166
      %p168 = scmp.ne.s32.totalorder %s159, %s160
      %p169 = scmp.eq.s32.totalorder %s23, 0
      %p170 = por %p168, %p169
      %p171 = scmp.ne.s32.totalorder %s159, %s160
      %p172 = scmp.eq.s32.totalorder %s24, 1
      %p173 = por %p171, %p172
      %p175 = scmp.ne.s32.totalorder %s160, %s174
      %p176 = scmp.eq.s32.totalorder %s24, 0
      %p177 = por %p175, %p176
      %s179 = sadd.s32 %s178, 1
      %p182 = scmp.eq.s32.totalorder %s18, 1
      %p183 = scmp.ne.s32.totalorder %s178, %s180
      %p184 = scmp.eq.s32.totalorder %s18, 0
      %p185 = por %p183, %p184
      %p186 = scmp.ne.s32.totalorder %s178, %s180
      %p187 = scmp.eq.s32.totalorder %s23, 1
      %p188 = por %p186, %p187
      %p189 = scmp.ne.s32.totalorder %s180, %s181
      %p190 = scmp.eq.s32.totalorder %s23, 0
      %p191 = por %p189, %p190
      %p192 = scmp.ne.s32.totalorder %s180, %s181
      %p193 = scmp.eq.s32.totalorder %s24, 1
      %p194 = por %p192, %p193
      %p196 = scmp.ne.s32.totalorder %s181, %s195
      %p197 = scmp.eq.s32.totalorder %s24, 0
      %p198 = por %p196, %p197
      %s200 = sadd.s32 %s199, 1
      %p203 = scmp.eq.s32.totalorder %s18, 1
      %p204 = scmp.ne.s32.totalorder %s199, %s201
      %p205 = scmp.eq.s32.totalorder %s18, 0
      %p206 = por %p204, %p205
      %p207 = scmp.ne.s32.totalorder %s199, %s201
      %p208 = scmp.eq.s32.totalorder %s23, 1
      %p209 = por %p207, %p208
      %p210 = scmp.ne.s32.totalorder %s201, %s202
      %p211 = scmp.eq.s32.totalorder %s23, 0
      %p212 = por %p210, %p211
      %p213 = scmp.ne.s32.totalorder %s201, %s202
      %p214 = scmp.eq.s32.totalorder %s24, 1
      %p215 = por %p213, %p214
      %p217 = scmp.ne.s32.totalorder %s202, %s216
      %p218 = scmp.eq.s32.totalorder %s24, 0
      %p219 = por %p217, %p218
      %s220 = ssub.s32 %s18, %s25
      %p221 = scmp.eq.s32.totalorder %s220, 0
      %s223 = sadd.s32 %s222, 1
      %s224 = scalar_select %p221, %s222, %s223
      %p227 = pneg %p221
      %p228 = scmp.eq.s32.totalorder %s18, 1
      %p229 = por %p227, %p228
      %p230 = scmp.ne.s32.totalorder %s222, %s225
      %p231 = scmp.eq.s32.totalorder %s18, 0
      %p232 = por %p230, %p231
      %p233 = scmp.ne.s32.totalorder %s222, %s225
      %p234 = scmp.eq.s32.totalorder %s23, 1
      %p235 = por %p233, %p234
      %p236 = scmp.ne.s32.totalorder %s225, %s226
      %p237 = scmp.eq.s32.totalorder %s23, 0
      %p238 = por %p236, %p237
      %p239 = scmp.ne.s32.totalorder %s225, %s226
      %p240 = scmp.eq.s32.totalorder %s24, 1
      %p241 = por %p239, %p240
      %p243 = scmp.ne.s32.totalorder %s226, %s242
      %p244 = scmp.eq.s32.totalorder %s24, 0
      %p245 = por %p243, %p244
      %p246 = scmp.le.s32.totalorder 1, %s18
      %p247 = scmp.lt.s32.totalorder %s18, 3
      %p248 = pnand %p246, %p247
      %p249 = pneg %p248
      // Predicated region
      $region9: #{stem_forward.1} parent=5 // pred_check
        _
      $region10: #{stem_forward.1} parent=5 // pred_check_branch
        %251 = sbr.rel (%p248) target = $region12
      $region11: #{stem_forward.1} parent=5 // pred_region
        %s252 = ssub.s32 %s18, 1
        // Predicated region
        $region13: #{stem_forward.1} parent=11 // pred_check
          %p253 = pneg %p65
        $region14: #{stem_forward.1} parent=11 // pred_check_branch
          %255 = sbr.rel (%p253) target = $region16
        $region15: #{stem_forward.1} parent=11 // pred_region
          _
        $region16: #{stem_forward.1} parent=11 // pred_fallthru
          _
        // Predicated region
        $region17: #{stem_forward.1} parent=11 // pred_check
          %p256 = pneg %p86
        $region18: #{stem_forward.1} parent=11 // pred_check_branch
          %258 = sbr.rel (%p256) target = $region20
        $region19: #{stem_forward.1} parent=11 // pred_region
          _
        $region20: #{stem_forward.1} parent=11 // pred_fallthru
          _
        // Predicated region
        $region21: #{stem_forward.1} parent=11 // pred_check
          %p259 = pneg %p107
        $region22: #{stem_forward.1} parent=11 // pred_check_branch
          %261 = sbr.rel (%p259) target = $region24
        $region23: #{stem_forward.1} parent=11 // pred_region
          _
        $region24: #{stem_forward.1} parent=11 // pred_fallthru
          _
        // Predicated region
        $region25: #{stem_forward.1} parent=11 // pred_check
          %p262 = pneg %p128
        $region26: #{stem_forward.1} parent=11 // pred_check_branch
          %264 = sbr.rel (%p262) target = $region28
        $region27: #{stem_forward.1} parent=11 // pred_region
          _
        $region28: #{stem_forward.1} parent=11 // pred_fallthru
          _
        // Predicated region
        $region29: #{stem_forward.1} parent=11 // pred_check
          %p265 = pneg %p149
        $region30: #{stem_forward.1} parent=11 // pred_check_branch
          %267 = sbr.rel (%p265) target = $region32
        $region31: #{stem_forward.1} parent=11 // pred_region
          _
        $region32: #{stem_forward.1} parent=11 // pred_fallthru
          _
        // Predicated region
        $region33: #{stem_forward.1} parent=11 // pred_check
          %p268 = pneg %p170
        $region34: #{stem_forward.1} parent=11 // pred_check_branch
          %270 = sbr.rel (%p268) target = $region36
        $region35: #{stem_forward.1} parent=11 // pred_region
          _
        $region36: #{stem_forward.1} parent=11 // pred_fallthru
          _
        // Predicated region
        $region37: #{stem_forward.1} parent=11 // pred_check
          %p271 = pneg %p191
        $region38: #{stem_forward.1} parent=11 // pred_check_branch
          %273 = sbr.rel (%p271) target = $region40
        $region39: #{stem_forward.1} parent=11 // pred_region
          _
        $region40: #{stem_forward.1} parent=11 // pred_fallthru
          _
        // Predicated region
        $region41: #{stem_forward.1} parent=11 // pred_check
          %p274 = pneg %p212
        $region42: #{stem_forward.1} parent=11 // pred_check_branch
          %276 = sbr.rel (%p274) target = $region44
        $region43: #{stem_forward.1} parent=11 // pred_region
          _
        $region44: #{stem_forward.1} parent=11 // pred_fallthru
          _
      $region12: #{stem_forward.1} parent=5 // pred_fallthru
        _
      %p277 = scmp.lt.s32.totalorder %s18, 2
      // Predicated region
      $region45: #{stem_forward.1} parent=5 // pred_check
        %p278 = pneg %p277
      $region46: #{stem_forward.1} parent=5 // pred_check_branch
        %280 = sbr.rel (%p278) target = $region48
      $region47: #{stem_forward.1} parent=5 // pred_region
        // Predicated region
        $region49: #{stem_forward.1} parent=47 // pred_check
          %p281 = pneg %p38
        $region50: #{stem_forward.1} parent=47 // pred_check_branch
          %283 = sbr.rel (%p281) target = $region52
        $region51: #{stem_forward.1} parent=47 // pred_region
          %p284 = scmp.lt.s32.totalorder %s18, 1
          %s285 = scalar_select %p284, %s18, 1
          %s286 = smul.addr %s285, 7
          %s287 = smul.addr %s286, 4
          %s288 = scalar_lea.vmem %s0, %s287
        $region52: #{stem_forward.1} parent=47 // pred_fallthru
          _
      $region48: #{stem_forward.1} parent=5 // pred_fallthru
        _
      %p289 = scmp.le.s32.totalorder 1, %s18
      %p290 = scmp.lt.s32.totalorder %s18, 3
      %p291 = pnand %p289, %p290
      %p292 = pneg %p291
      // Predicated region
      $region53: #{stem_forward.1} parent=5 // pred_check
        _
      $region54: #{stem_forward.1} parent=5 // pred_check_branch
        %294 = sbr.rel (%p291) target = $region56
      $region55: #{stem_forward.1} parent=5 // pred_region
        %s295 = ssub.s32 %s18, 1
        %p296 = scmp.lt.s32.totalorder %s23, 1
        %s297 = scalar_select %p296, %s23, 1
        %s298 = smul.addr %s297, 7
        %s299 = smul.addr %s298, 4
        %s300 = scalar_lea.vmem %s0, %s299
        %p301 = pneg %p44
        %p302 = pneg %p41
        %p303 = pneg %p65
        %p304 = pneg %p62
        %p305 = pneg %p86
        %p306 = pneg %p83
        %p307 = pneg %p107
        %p308 = pneg %p104
        %p309 = pneg %p128
        %p310 = pneg %p125
        %p311 = pneg %p149
        %p312 = pneg %p146
        %p313 = pneg %p170
        %p314 = pneg %p167
        %p315 = pneg %p191
        %p316 = pneg %p188
        %p317 = pneg %p212
        %p318 = pneg %p209
        %p319 = pneg %p238
        %p320 = pneg %p235
        %s321 = sand.u32 %s225, 1
        %s322 = scalar_lea.sflag [#allocation6], %s321
        %s323 = sand.u32 %s225, 1
        %s324 = scalar_lea.vmem [#allocation5], %s323
        %p325 = scmp.lt.s32.totalorder %s23, 1
        %s326 = scalar_select %p325, %s23, 1
        %s327 = smul.addr %s326, 7
        %s328 = smul.addr %s327, 4
        %s329 = scalar_lea.vmem %s0, %s328
        %v331 = vld [vmem:[%s329] sm:$0xf]
        %v332 = vld [vmem:[%s329 + $0x4] sm:$0xf]
        %v333 = vld [vmem:[%s329 + $0x8] sm:$0xf]
        %v334 = vld [vmem:[%s329 + $0xc] sm:$0xf]
        %v335 = vld [vmem:[%s329 + $0x10] sm:$0xf]
        %v336 = vld [vmem:[%s329 + $0x14] sm:$0xf]
        %v337 = vld [vmem:[%s329 + $0x18] sm:$0x1]
        %v338 = vld [vmem:[%s1] sm:$0xf]
        %v339 = vld [vmem:[%s1 + $0x4] sm:$0xf]
        %v340 = vld [vmem:[%s1 + $0x8] sm:$0xf]
        %v341 = vld [vmem:[%s1 + $0xc] sm:$0x3]
        %v342 = vld [vmem:[%s2] sm:$0x1]
        %v344 = vlaneseq
        %v345 = vshrl.u32 %v344, 7
        %v346 = vsub.s32 0, %v345
        %v347 = vrot.slane %v342, %v346
        %v356 = vunpack.c.l.b16 %v331
        %v357 = vunpack.c.l.b16 %v332
        %v358 = vunpack.c.l.b16 %v333
        %v359 = vunpack.c.l.b16 %v334
        %v360 = vunpack.c.l.b16 %v335
        %v361 = vunpack.c.l.b16 %v336
        %v362 = vunpack.c.l.b16 %v337
        %v363 = vpack.c.b16 %v357, %v356
        %v364 = vpack.c.b16 %v359, %v358
        %v365 = vpack.c.b16 %v361, %v360
        %v366 = vpack.c.b16 %v362, %v362
        %v371 = vunpack.c.l.b16 %v338
        %v372 = vunpack.c.l.b16 %v339
        %v373 = vunpack.c.l.b16 %v340
        %v374 = vunpack.c.l.b16 %v341
        %v375 = vpack.c.b16 %v372, %v371
        %v376 = vpack.c.b16 %v374, %v373
        %vm378 = vcmask 220160
        %v380 = vsel %vm378, %v363, 0
        %v383 = vsel %vm378, %v364, 0
        %v386 = vsel %vm378, %v365, 0
        %v389 = vsel %vm378, %v366, 0
        %vm391 = vcmask 1044480
        %vm392 = vcmask 1045504
        %v393 = vsel %vm391, 4294967295, 65535
        %v394 = vsel %vm392, %v393, 0
        %v396 = vand.u32 %v376, %v394
        %398 = vmatprep.subr.bf16.mxu0 0
        %399 = vmatpush1.bf16.msra.mxu0 0
        %400 = vmatprep.subr.bf16.mxu0 0
        %401 = vmatpush1.bf16.msra.mxu0 0
        %402 = vmatprep.subr.bf16.mxu0 0
        %403 = vmatpush1.bf16.msra.mxu0 0
        %404 = vmatprep.subr.bf16.mxu0 0
        %405 = vmatpush1.bf16.msra.mxu0 0
        %406 = vmatprep.subr.bf16.mxu0 0
        %407 = vmatpush1.bf16.msra.mxu0 0
        %408 = vmatprep.subr.bf16.mxu0 0
        %409 = vmatpush1.bf16.msra.mxu0 0
        %410 = vmatprep.subr.bf16.mxu0 0
        %411 = vmatpush1.bf16.msra.mxu0 %v396
        %412 = vmatprep.subr.bf16.mxu0 0
        %413 = vmatpush1.bf16.msra.mxu0 %v375
        %414 = vmatprep.subr.bf16.mxu0 0
        %415 = vmatpush2.bf16.msra.mxu0 0
        %416 = vmatprep.subr.bf16.mxu0 0
        %417 = vmatpush2.bf16.msra.mxu0 0
        %418 = vmatprep.subr.bf16.mxu0 0
        %419 = vmatpush2.bf16.msra.mxu0 0
        %420 = vmatprep.subr.bf16.mxu0 0
        %421 = vmatpush2.bf16.msra.mxu0 0
        %422 = vmatprep.subr.bf16.mxu0 0
        %423 = vmatpush2.bf16.msra.mxu0 0
        %424 = vmatprep.subr.bf16.mxu0 0
        %425 = vmatpush2.bf16.msra.mxu0 0
        %426 = vmatprep.subr.bf16.mxu0 0
        %427 = vmatpush2.bf16.msra.mxu0 0
        %428 = vmatprep.subr.bf16.mxu0 0
        %429 = vmatpush2.bf16.msra.mxu0 0
        %430 = vmatprep.mubr.bf16.mxu0 0
        %431 = vmatmul.mubr.bf16.gmra.mxu0 %v380
        %v432 = vpop.f32.mrf.mxu0
        %v433 = vadd.f32 %v347, %v432
        %v434 = vpop.f32.mrf.mxu0
        %v435 = vpop.f32.mrf.mxu0
        %v436 = vadd.f32 %v347, %v435
        %v437 = vpop.f32.mrf.mxu0
        %438 = vmatprep.mubr.bf16.mxu0 0
        %439 = vmatmul.mubr.bf16.gmra.mxu0 %v383
        %v440 = vpop.f32.mrf.mxu0
        %v441 = vadd.f32 %v347, %v440
        %v442 = vpop.f32.mrf.mxu0
        %v443 = vpop.f32.mrf.mxu0
        %v444 = vadd.f32 %v347, %v443
        %v445 = vpop.f32.mrf.mxu0
        %446 = vmatprep.mubr.bf16.mxu0 0
        %447 = vmatmul.mubr.bf16.gmra.mxu0 %v386
        %v448 = vpop.f32.mrf.mxu0
        %v449 = vadd.f32 %v347, %v448
        %v450 = vpop.f32.mrf.mxu0
        %v451 = vpop.f32.mrf.mxu0
        %v452 = vadd.f32 %v347, %v451
        %v453 = vpop.f32.mrf.mxu0
        %454 = vmatprep.mubr.bf16.mxu0 0
        %455 = vmatmul.mubr.bf16.gmra.mxu0 %v389
        %v456 = vpop.f32.mrf.mxu0
        %v457 = vadd.f32 %v347, %v456
        %v458 = vpop.f32.mrf.mxu0
        %v459 = vpop.f32.mrf.mxu0
        %v460 = vpop.f32.mrf.mxu0
        %461 = vdwg.mxu0
        %v462 = vmul.f32 %v433, 0.5
        %v463 = vmul.f32 %v436, 0.5
        %v464 = vmul.f32 %v441, 0.5
        %v465 = vmul.f32 %v444, 0.5
        %v466 = vmul.f32 %v449, 0.5
        %v467 = vmul.f32 %v452, 0.5
        %v468 = vmul.f32 %v457, 0.5
        %v469 = vmul.f32 %v433, 0.70710677
        %v470 = vmul.f32 %v436, 0.70710677
        %v471 = vmul.f32 %v441, 0.70710677
        %v472 = vmul.f32 %v444, 0.70710677
        %v473 = vmul.f32 %v449, 0.70710677
        %v474 = vmul.f32 %v452, 0.70710677
        %v475 = vmul.f32 %v457, 0.70710677
        %v476 = vand.u32 2147483647, %v469
        %v477 = vand.u32 2147483647, %v470
        %v478 = vand.u32 2147483647, %v471
        %v479 = vand.u32 2147483647, %v472
        %v480 = vand.u32 2147483647, %v473
        %v481 = vand.u32 2147483647, %v474
        %v482 = vand.u32 2147483647, %v475
        %v483 = vmul.f32 %v476, 0.3275911
        %v484 = vmul.f32 %v477, 0.3275911
        %v485 = vmul.f32 %v478, 0.3275911
        %v486 = vmul.f32 %v479, 0.3275911
        %v487 = vmul.f32 %v480, 0.3275911
        %v488 = vmul.f32 %v481, 0.3275911
        %v489 = vmul.f32 %v482, 0.3275911
        %v490 = vadd.f32 %v483, 1.0
        %v491 = vadd.f32 %v484, 1.0
        %v492 = vadd.f32 %v485, 1.0
        %v493 = vadd.f32 %v486, 1.0
        %v494 = vadd.f32 %v487, 1.0
        %v495 = vadd.f32 %v488, 1.0
        %v496 = vadd.f32 %v489, 1.0
        %v497 = vrcp.pop %v490
        %v498 = vmul.f32 1.0, %v497
        %v499 = vrcp.pop %v491
        %v500 = vmul.f32 1.0, %v499
        %v501 = vrcp.pop %v492
        %v502 = vmul.f32 1.0, %v501
        %v503 = vrcp.pop %v493
        %v504 = vmul.f32 1.0, %v503
        %v505 = vrcp.pop %v494
        %v506 = vmul.f32 1.0, %v505
        %v507 = vrcp.pop %v495
        %v508 = vmul.f32 1.0, %v507
        %v509 = vrcp.pop %v496
        %v510 = vmul.f32 1.0, %v509
        %v511 = vmul.f32 %v498, 1.0614054
        %v512 = vmul.f32 %v500, 1.0614054
        %v513 = vmul.f32 %v502, 1.0614054
        %v514 = vmul.f32 %v504, 1.0614054
        %v515 = vmul.f32 %v506, 1.0614054
        %v516 = vmul.f32 %v508, 1.0614054
        %v517 = vmul.f32 %v510, 1.0614054
        %v518 = vadd.f32 %v511, -1.4531521
        %v519 = vadd.f32 %v512, -1.4531521
        %v520 = vadd.f32 %v513, -1.4531521
        %v521 = vadd.f32 %v514, -1.4531521
        %v522 = vadd.f32 %v515, -1.4531521
        %v523 = vadd.f32 %v516, -1.4531521
        %v524 = vadd.f32 %v517, -1.4531521
        %v525 = vmul.f32 %v498, %v518
        %v526 = vmul.f32 %v500, %v519
        %v527 = vmul.f32 %v502, %v520
        %v528 = vmul.f32 %v504, %v521
        %v529 = vmul.f32 %v506, %v522
        %v530 = vmul.f32 %v508, %v523
        %v531 = vmul.f32 %v510, %v524
        %v532 = vadd.f32 %v525, 1.4214138
        %v533 = vadd.f32 %v526, 1.4214138
        %v534 = vadd.f32 %v527, 1.4214138
        %v535 = vadd.f32 %v528, 1.4214138
        %v536 = vadd.f32 %v529, 1.4214138
        %v537 = vadd.f32 %v530, 1.4214138
        %v538 = vadd.f32 %v531, 1.4214138
        %v539 = vmul.f32 %v498, %v532
        %v540 = vmul.f32 %v500, %v533
        %v541 = vmul.f32 %v502, %v534
        %v542 = vmul.f32 %v504, %v535
        %v543 = vmul.f32 %v506, %v536
        %v544 = vmul.f32 %v508, %v537
        %v545 = vmul.f32 %v510, %v538
        %v546 = vadd.f32 %v539, -0.28449672
        %v547 = vadd.f32 %v540, -0.28449672
        %v548 = vadd.f32 %v541, -0.28449672
        %v549 = vadd.f32 %v542, -0.28449672
        %v550 = vadd.f32 %v543, -0.28449672
        %v551 = vadd.f32 %v544, -0.28449672
        %v552 = vadd.f32 %v545, -0.28449672
        %v553 = vmul.f32 %v498, %v546
        %v554 = vmul.f32 %v500, %v547
        %v555 = vmul.f32 %v502, %v548
        %v556 = vmul.f32 %v504, %v549
        %v557 = vmul.f32 %v506, %v550
        %v558 = vmul.f32 %v508, %v551
        %v559 = vmul.f32 %v510, %v552
        %v560 = vadd.f32 %v553, 0.2548296
        %v561 = vadd.f32 %v554, 0.2548296
        %v562 = vadd.f32 %v555, 0.2548296
        %v563 = vadd.f32 %v556, 0.2548296
        %v564 = vadd.f32 %v557, 0.2548296
        %v565 = vadd.f32 %v558, 0.2548296
        %v566 = vadd.f32 %v559, 0.2548296
        %v567 = vmul.f32 %v498, %v560
        %v568 = vmul.f32 %v500, %v561
        %v569 = vmul.f32 %v502, %v562
        %v570 = vmul.f32 %v504, %v563
        %v571 = vmul.f32 %v506, %v564
        %v572 = vmul.f32 %v508, %v565
        %v573 = vmul.f32 %v510, %v566
        %v574 = vsub.f32 0.0, %v476
        %v575 = vsub.f32 0.0, %v477
        %v576 = vsub.f32 0.0, %v478
        %v577 = vsub.f32 0.0, %v479
        %v578 = vsub.f32 0.0, %v480
        %v579 = vsub.f32 0.0, %v481
        %v580 = vsub.f32 0.0, %v482
        %v581 = vmul.f32 %v574, %v476
        %v582 = vmul.f32 %v575, %v477
        %v583 = vmul.f32 %v576, %v478
        %v584 = vmul.f32 %v577, %v479
        %v585 = vmul.f32 %v578, %v480
        %v586 = vmul.f32 %v579, %v481
        %v587 = vmul.f32 %v580, %v482
        %v588 = vmul.f32 %v581, 1.442695
        %v589 = vpow.pop %v588
        %v590 = vmul.f32 %v582, 1.442695
        %v591 = vpow.pop %v590
        %v592 = vmul.f32 %v583, 1.442695
        %v593 = vpow.pop %v592
        %v594 = vmul.f32 %v584, 1.442695
        %v595 = vpow.pop %v594
        %v596 = vmul.f32 %v585, 1.442695
        %v597 = vpow.pop %v596
        %v598 = vmul.f32 %v586, 1.442695
        %v599 = vpow.pop %v598
        %v600 = vmul.f32 %v587, 1.442695
        %v601 = vpow.pop %v600
        %v602 = vmul.f32 %v567, %v589
        %v603 = vmul.f32 %v568, %v591
        %v604 = vmul.f32 %v569, %v593
        %v605 = vmul.f32 %v570, %v595
        %v606 = vmul.f32 %v571, %v597
        %v607 = vmul.f32 %v572, %v599
        %v608 = vmul.f32 %v573, %v601
        %v609 = vsub.f32 1.0, %v602
        %v610 = vsub.f32 1.0, %v603
        %v611 = vsub.f32 1.0, %v604
        %v612 = vsub.f32 1.0, %v605
        %v613 = vsub.f32 1.0, %v606
        %v614 = vsub.f32 1.0, %v607
        %v615 = vsub.f32 1.0, %v608
        %vm616 = vcmp.lt.f32.partialorder %v469, 0.0
        %vm617 = vcmp.lt.f32.partialorder %v470, 0.0
        %vm618 = vcmp.lt.f32.partialorder %v471, 0.0
        %vm619 = vcmp.lt.f32.partialorder %v472, 0.0
        %vm620 = vcmp.lt.f32.partialorder %v473, 0.0
        %vm621 = vcmp.lt.f32.partialorder %v474, 0.0
        %vm622 = vcmp.lt.f32.partialorder %v475, 0.0
        %v623 = vsub.f32 0.0, %v609
        %v624 = vsub.f32 0.0, %v610
        %v625 = vsub.f32 0.0, %v611
        %v626 = vsub.f32 0.0, %v612
        %v627 = vsub.f32 0.0, %v613
        %v628 = vsub.f32 0.0, %v614
        %v629 = vsub.f32 0.0, %v615
        %v630 = vsel %vm616, %v623, %v609
        %v631 = vsel %vm617, %v624, %v610
        %v632 = vsel %vm618, %v625, %v611
        %v633 = vsel %vm619, %v626, %v612
        %v634 = vsel %vm620, %v627, %v613
        %v635 = vsel %vm621, %v628, %v614
        %v636 = vsel %vm622, %v629, %v615
        %v637 = vadd.f32 %v630, 1.0
        %v638 = vadd.f32 %v631, 1.0
        %v639 = vadd.f32 %v632, 1.0
        %v640 = vadd.f32 %v633, 1.0
        %v641 = vadd.f32 %v634, 1.0
        %v642 = vadd.f32 %v635, 1.0
        %v643 = vadd.f32 %v636, 1.0
        %v644 = vmul.f32 %v462, %v637
        %v645 = vmul.f32 %v463, %v638
        %v646 = vmul.f32 %v464, %v639
        %v647 = vmul.f32 %v465, %v640
        %v648 = vmul.f32 %v466, %v641
        %v649 = vmul.f32 %v467, %v642
        %v650 = vmul.f32 %v468, %v643
        %v651 = vmul.f32 %v644, 1.7015043
        %v652 = vmul.f32 %v645, 1.7015043
        %v653 = vmul.f32 %v646, 1.7015043
        %v654 = vmul.f32 %v647, 1.7015043
        %v655 = vmul.f32 %v648, 1.7015043
        %v656 = vmul.f32 %v649, 1.7015043
        %v657 = vmul.f32 %v650, 1.7015043
        %vm658 = vcmask 130048
        %659 = vst.msk [vmem:[#allocation2] sm:$0xff] %vm658, %v651
        %660 = vst.msk [vmem:[#allocation2 + $0x8] sm:$0xff] %vm658, %v652
        %661 = vst.msk [vmem:[#allocation2 + $0x10] sm:$0xff] %vm658, %v653
        %662 = vst.msk [vmem:[#allocation2 + $0x18] sm:$0xff] %vm658, %v654
        %663 = vst.msk [vmem:[#allocation2 + $0x20] sm:$0xff] %vm658, %v655
        %664 = vst.msk [vmem:[#allocation2 + $0x28] sm:$0xff] %vm658, %v656
        %vm665 = vcmask 122880
        %666 = vst.msk [vmem:[#allocation2 + $0x30] sm:$0x1] %vm665, %v657
        %667 = vst.msk [vmem:[#allocation2 + $0x31] sm:$0xff] %vm658, 0.0
        %v668 = vld [vmem:[#allocation2] sm:$0xff]
        %v669 = vld [vmem:[#allocation2 + $0x8] sm:$0xff]
        %v670 = vld [vmem:[#allocation2 + $0x10] sm:$0xff]
        %v671 = vld [vmem:[#allocation2 + $0x18] sm:$0xff]
        %v672 = vld [vmem:[#allocation2 + $0x20] sm:$0x1f]
        %v673 = vpack.c.bf16 %v669, %v668
        %v674 = vpack.c.bf16 %v671, %v670
        %v675 = vpack.c.bf16 %v672, %v672
        %v676 = vld [vmem:[%s3] sm:$0xf]
        %v677 = vld [vmem:[%s3 + $0x4] sm:$0xf]
        %v678 = vld [vmem:[%s3 + $0x8] sm:$0xf]
        %v679 = vld [vmem:[%s3 + $0xc] sm:$0xf]
        %vm680 = vsmask.f32 7424
        %v682 = vshrl.u32 %v673, 16
        %v684 = vshll.u32 %v673, 16
        %v686 = vrot.slane %v684, 1
        %v687 = vor.u32 %v682, %v686
        %v689 = vshll.u32 %v674, 16
        %v691 = vrot.slane %v689, 1
        %v692 = vsel %vm680, %v687, %v691
        %v693 = vshrl.u32 %v674, 16
        %v695 = vor.u32 %v693, %v691
        %v697 = vshll.u32 %v675, 16
        %v699 = vrot.slane %v697, 1
        %v700 = vsel %vm680, %v695, %v699
        %v701 = vshrl.u32 %v675, 16
        %v703 = vor.u32 %v701, %v699
        %v706 = vunpack.c.l.b16 %v678
        %v707 = vunpack.c.l.b16 %v679
        %v708 = vpack.c.b16 %v707, %v706
        %v711 = vsel %vm658, %v692, 0
        %v714 = vsel %vm658, %v700, 0
        %v717 = vsel %vm658, %v703, 0
        %719 = vmatprep.subr.bf16.mxu0 0
        %720 = vmatpush1.bf16.msra.mxu0 0
        %721 = vmatprep.subr.bf16.mxu0 0
        %722 = vmatpush1.bf16.msra.mxu0 0
        %723 = vmatprep.subr.bf16.mxu0 0
        %724 = vmatpush1.bf16.msra.mxu0 0
        %725 = vmatprep.subr.bf16.mxu0 0
        %726 = vmatpush1.bf16.msra.mxu0 0
        %727 = vmatprep.subr.bf16.mxu0 0
        %728 = vmatpush1.bf16.msra.mxu0 0
        %729 = vmatprep.subr.bf16.mxu0 0
        %730 = vmatpush1.bf16.msra.mxu0 0
        %731 = vmatprep.subr.bf16.mxu0 0
        %732 = vmatpush1.bf16.msra.mxu0 0
        %733 = vmatprep.subr.bf16.mxu0 0
        %734 = vmatpush1.bf16.msra.mxu0 %v708
        %735 = vmatprep.subr.bf16.mxu0 0
        %736 = vmatpush2.bf16.msra.mxu0 0
        %737 = vmatprep.subr.bf16.mxu0 0
        %738 = vmatpush2.bf16.msra.mxu0 0
        %739 = vmatprep.subr.bf16.mxu0 0
        %740 = vmatpush2.bf16.msra.mxu0 0
        %741 = vmatprep.subr.bf16.mxu0 0
        %742 = vmatpush2.bf16.msra.mxu0 0
        %743 = vmatprep.subr.bf16.mxu0 0
        %744 = vmatpush2.bf16.msra.mxu0 0
        %745 = vmatprep.subr.bf16.mxu0 0
        %746 = vmatpush2.bf16.msra.mxu0 0
        %747 = vmatprep.subr.bf16.mxu0 0
        %748 = vmatpush2.bf16.msra.mxu0 0
        %749 = vmatprep.subr.bf16.mxu0 0
        %750 = vmatpush2.bf16.msra.mxu0 0
        %751 = vmatprep.mubr.bf16.mxu0 0
        %752 = vmatmul.mubr.bf16.gmra.mxu0 %v711
        %v753 = vpop.f32.mrf.mxu0
        %v754 = vadd.f32 0.0, %v753
        %v755 = vpop.f32.mrf.mxu0
        %v756 = vpop.f32.mrf.mxu0
        %v757 = vadd.f32 0.0, %v756
        %v758 = vpop.f32.mrf.mxu0
        %759 = vmatprep.mubr.bf16.mxu0 0
        %760 = vmatmul.mubr.bf16.gmra.mxu0 %v714
        %v761 = vpop.f32.mrf.mxu0
        %v762 = vadd.f32 0.0, %v761
        %v763 = vpop.f32.mrf.mxu0
        %v764 = vpop.f32.mrf.mxu0
        %v765 = vadd.f32 0.0, %v764
        %v766 = vpop.f32.mrf.mxu0
        %767 = vmatprep.mubr.bf16.mxu0 0
        %768 = vmatmul.mubr.bf16.gmra.mxu0 %v717
        %v769 = vpop.f32.mrf.mxu0
        %v770 = vadd.f32 0.0, %v769
        %v771 = vpop.f32.mrf.mxu0
        %v772 = vpop.f32.mrf.mxu0
        %v773 = vpop.f32.mrf.mxu0
        %774 = vdwg.mxu0
        %v777 = vunpack.c.l.b16 %v676
        %v778 = vunpack.c.l.b16 %v677
        %v779 = vpack.c.b16 %v778, %v777
        %v781 = vsel %vm658, %v673, 0
        %v783 = vsel %vm658, %v674, 0
        %v785 = vsel %vm658, %v675, 0
        %787 = vmatprep.subr.bf16.mxu0 0
        %788 = vmatpush1.bf16.msra.mxu0 0
        %789 = vmatprep.subr.bf16.mxu0 0
        %790 = vmatpush1.bf16.msra.mxu0 0
        %791 = vmatprep.subr.bf16.mxu0 0
        %792 = vmatpush1.bf16.msra.mxu0 0
        %793 = vmatprep.subr.bf16.mxu0 0
        %794 = vmatpush1.bf16.msra.mxu0 0
        %795 = vmatprep.subr.bf16.mxu0 0
        %796 = vmatpush1.bf16.msra.mxu0 0
        %797 = vmatprep.subr.bf16.mxu0 0
        %798 = vmatpush1.bf16.msra.mxu0 0
        %799 = vmatprep.subr.bf16.mxu0 0
        %800 = vmatpush1.bf16.msra.mxu0 0
        %801 = vmatprep.subr.bf16.mxu0 0
        %802 = vmatpush1.bf16.msra.mxu0 %v779
        %803 = vmatprep.subr.bf16.mxu0 0
        %804 = vmatpush2.bf16.msra.mxu0 0
        %805 = vmatprep.subr.bf16.mxu0 0
        %806 = vmatpush2.bf16.msra.mxu0 0
        %807 = vmatprep.subr.bf16.mxu0 0
        %808 = vmatpush2.bf16.msra.mxu0 0
        %809 = vmatprep.subr.bf16.mxu0 0
        %810 = vmatpush2.bf16.msra.mxu0 0
        %811 = vmatprep.subr.bf16.mxu0 0
        %812 = vmatpush2.bf16.msra.mxu0 0
        %813 = vmatprep.subr.bf16.mxu0 0
        %814 = vmatpush2.bf16.msra.mxu0 0
        %815 = vmatprep.subr.bf16.mxu0 0
        %816 = vmatpush2.bf16.msra.mxu0 0
        %817 = vmatprep.subr.bf16.mxu0 0
        %818 = vmatpush2.bf16.msra.mxu0 0
        %819 = vmatprep.mubr.bf16.mxu0 0
        %820 = vmatmul.mubr.bf16.gmra.mxu0 %v781
        %v821 = vpop.f32.mrf.mxu0
        %v822 = vadd.f32 %v754, %v821
        %v823 = vpop.f32.mrf.mxu0
        %v824 = vpop.f32.mrf.mxu0
        %v825 = vadd.f32 %v757, %v824
        %v826 = vpop.f32.mrf.mxu0
        %827 = vmatprep.mubr.bf16.mxu0 0
        %828 = vmatmul.mubr.bf16.gmra.mxu0 %v783
        %v829 = vpop.f32.mrf.mxu0
        %v830 = vadd.f32 %v762, %v829
        %v831 = vpop.f32.mrf.mxu0
        %v832 = vpop.f32.mrf.mxu0
        %v833 = vadd.f32 %v765, %v832
        %v834 = vpop.f32.mrf.mxu0
        %835 = vmatprep.mubr.bf16.mxu0 0
        %836 = vmatmul.mubr.bf16.gmra.mxu0 %v785
        %v837 = vpop.f32.mrf.mxu0
        %v838 = vadd.f32 %v770, %v837
        %v839 = vpop.f32.mrf.mxu0
        %v840 = vpop.f32.mrf.mxu0
        %v841 = vpop.f32.mrf.mxu0
        %842 = vdwg.mxu0
        %v843 = vld [vmem:[%s3 + $0x10] sm:$0xf]
        %v844 = vld [vmem:[%s3 + $0x14] sm:$0xf]
        %vm848 = vcmask 1046528
        %v849 = vrot.slane %v673, 1
        %v850 = vrot.slane %v674, 1
        %v851 = vsel %vm848, %v849, %v850
        %v852 = vrot.slane %v675, 1
        %v853 = vsel %vm848, %v850, %v852
        %v856 = vunpack.c.l.b16 %v843
        %v857 = vunpack.c.l.b16 %v844
        %v858 = vpack.c.b16 %v857, %v856
        %v861 = vsel %vm658, %v851, 0
        %v864 = vsel %vm658, %v853, 0
        %v867 = vsel %vm658, %v852, 0
        %869 = vmatprep.subr.bf16.mxu0 0
        %870 = vmatpush1.bf16.msra.mxu0 0
        %871 = vmatprep.subr.bf16.mxu0 0
        %872 = vmatpush1.bf16.msra.mxu0 0
        %873 = vmatprep.subr.bf16.mxu0 0
        %874 = vmatpush1.bf16.msra.mxu0 0
        %875 = vmatprep.subr.bf16.mxu0 0
        %876 = vmatpush1.bf16.msra.mxu0 0
        %877 = vmatprep.subr.bf16.mxu0 0
        %878 = vmatpush1.bf16.msra.mxu0 0
        %879 = vmatprep.subr.bf16.mxu0 0
        %880 = vmatpush1.bf16.msra.mxu0 0
        %881 = vmatprep.subr.bf16.mxu0 0
        %882 = vmatpush1.bf16.msra.mxu0 0
        %883 = vmatprep.subr.bf16.mxu0 0
        %884 = vmatpush1.bf16.msra.mxu0 %v858
        %885 = vmatprep.subr.bf16.mxu0 0
        %886 = vmatpush2.bf16.msra.mxu0 0
        %887 = vmatprep.subr.bf16.mxu0 0
        %888 = vmatpush2.bf16.msra.mxu0 0
        %889 = vmatprep.subr.bf16.mxu0 0
        %890 = vmatpush2.bf16.msra.mxu0 0
        %891 = vmatprep.subr.bf16.mxu0 0
        %892 = vmatpush2.bf16.msra.mxu0 0
        %893 = vmatprep.subr.bf16.mxu0 0
        %894 = vmatpush2.bf16.msra.mxu0 0
        %895 = vmatprep.subr.bf16.mxu0 0
        %896 = vmatpush2.bf16.msra.mxu0 0
        %897 = vmatprep.subr.bf16.mxu0 0
        %898 = vmatpush2.bf16.msra.mxu0 0
        %899 = vmatprep.subr.bf16.mxu0 0
        %900 = vmatpush2.bf16.msra.mxu0 0
        %901 = vmatprep.mubr.bf16.mxu0 0
        %902 = vmatmul.mubr.bf16.gmra.mxu0 %v861
        %v903 = vpop.f32.mrf.mxu0
        %v904 = vadd.f32 0.0, %v903
        %v905 = vpop.f32.mrf.mxu0
        %v906 = vpop.f32.mrf.mxu0
        %v907 = vadd.f32 0.0, %v906
        %v908 = vpop.f32.mrf.mxu0
        %909 = vmatprep.mubr.bf16.mxu0 0
        %910 = vmatmul.mubr.bf16.gmra.mxu0 %v864
        %v911 = vpop.f32.mrf.mxu0
        %v912 = vadd.f32 0.0, %v911
        %v913 = vpop.f32.mrf.mxu0
        %v914 = vpop.f32.mrf.mxu0
        %v915 = vadd.f32 0.0, %v914
        %v916 = vpop.f32.mrf.mxu0
        %917 = vmatprep.mubr.bf16.mxu0 0
        %918 = vmatmul.mubr.bf16.gmra.mxu0 %v867
        %v919 = vpop.f32.mrf.mxu0
        %v920 = vadd.f32 0.0, %v919
        %v921 = vpop.f32.mrf.mxu0
        %v922 = vpop.f32.mrf.mxu0
        %v923 = vpop.f32.mrf.mxu0
        %924 = vdwg.mxu0
        %v925 = vadd.f32 %v822, %v904
        %v926 = vadd.f32 %v825, %v907
        %v927 = vadd.f32 %v830, %v912
        %v928 = vadd.f32 %v833, %v915
        %v929 = vadd.f32 %v838, %v920
        %v930 = vld [vmem:[#allocation2 + $0x7] sm:$0xff]
        %v931 = vld [vmem:[#allocation2 + $0xf] sm:$0xff]
        %v932 = vld [vmem:[#allocation2 + $0x17] sm:$0xff]
        %v933 = vld [vmem:[#allocation2 + $0x1f] sm:$0xff]
        %v934 = vld [vmem:[#allocation2 + $0x27] sm:$0x1f]
        %v935 = vpack.c.bf16 %v931, %v930
        %v936 = vpack.c.bf16 %v933, %v932
        %v937 = vpack.c.bf16 %v934, %v934
        %v938 = vld [vmem:[%s3 + $0x18] sm:$0xf]
        %v939 = vld [vmem:[%s3 + $0x1c] sm:$0xf]
        %v942 = vunpack.c.l.b16 %v938
        %v943 = vunpack.c.l.b16 %v939
        %v944 = vpack.c.b16 %v943, %v942
        %v947 = vsel %vm658, %v935, 0
        %v950 = vsel %vm658, %v936, 0
        %v953 = vsel %vm658, %v937, 0
        %955 = vmatprep.subr.bf16.mxu0 0
        %956 = vmatpush1.bf16.msra.mxu0 0
        %957 = vmatprep.subr.bf16.mxu0 0
        %958 = vmatpush1.bf16.msra.mxu0 0
        %959 = vmatprep.subr.bf16.mxu0 0
        %960 = vmatpush1.bf16.msra.mxu0 0
        %961 = vmatprep.subr.bf16.mxu0 0
        %962 = vmatpush1.bf16.msra.mxu0 0
        %963 = vmatprep.subr.bf16.mxu0 0
        %964 = vmatpush1.bf16.msra.mxu0 0
        %965 = vmatprep.subr.bf16.mxu0 0
        %966 = vmatpush1.bf16.msra.mxu0 0
        %967 = vmatprep.subr.bf16.mxu0 0
        %968 = vmatpush1.bf16.msra.mxu0 0
        %969 = vmatprep.subr.bf16.mxu0 0
        %970 = vmatpush1.bf16.msra.mxu0 %v944
        %971 = vmatprep.subr.bf16.mxu0 0
        %972 = vmatpush2.bf16.msra.mxu0 0
        %973 = vmatprep.subr.bf16.mxu0 0
        %974 = vmatpush2.bf16.msra.mxu0 0
        %975 = vmatprep.subr.bf16.mxu0 0
        %976 = vmatpush2.bf16.msra.mxu0 0
        %977 = vmatprep.subr.bf16.mxu0 0
        %978 = vmatpush2.bf16.msra.mxu0 0
        %979 = vmatprep.subr.bf16.mxu0 0
        %980 = vmatpush2.bf16.msra.mxu0 0
        %981 = vmatprep.subr.bf16.mxu0 0
        %982 = vmatpush2.bf16.msra.mxu0 0
        %983 = vmatprep.subr.bf16.mxu0 0
        %984 = vmatpush2.bf16.msra.mxu0 0
        %985 = vmatprep.subr.bf16.mxu0 0
        %986 = vmatpush2.bf16.msra.mxu0 0
        %987 = vmatprep.mubr.bf16.mxu0 0
        %988 = vmatmul.mubr.bf16.gmra.mxu0 %v947
        %v989 = vpop.f32.mrf.mxu0
        %v990 = vadd.f32 0.0, %v989
        %v991 = vpop.f32.mrf.mxu0
        %v992 = vpop.f32.mrf.mxu0
        %v993 = vadd.f32 0.0, %v992
        %v994 = vpop.f32.mrf.mxu0
        %995 = vmatprep.mubr.bf16.mxu0 0
        %996 = vmatmul.mubr.bf16.gmra.mxu0 %v950
        %v997 = vpop.f32.mrf.mxu0
        %v998 = vadd.f32 0.0, %v997
        %v999 = vpop.f32.mrf.mxu0
        %v1000 = vpop.f32.mrf.mxu0
        %v1001 = vadd.f32 0.0, %v1000
        %v1002 = vpop.f32.mrf.mxu0
        %1003 = vmatprep.mubr.bf16.mxu0 0
        %1004 = vmatmul.mubr.bf16.gmra.mxu0 %v953
        %v1005 = vpop.f32.mrf.mxu0
        %v1006 = vadd.f32 0.0, %v1005
        %v1007 = vpop.f32.mrf.mxu0
        %v1008 = vpop.f32.mrf.mxu0
        %v1009 = vpop.f32.mrf.mxu0
        %1010 = vdwg.mxu0
        %v1011 = vadd.f32 %v925, %v990
        %v1012 = vadd.f32 %v926, %v993
        %v1013 = vadd.f32 %v927, %v998
        %v1014 = vadd.f32 %v928, %v1001
        %v1015 = vadd.f32 %v929, %v1006
        %v1016 = vld [vmem:[%s3 + $0x20] sm:$0xf]
        %v1017 = vld [vmem:[%s3 + $0x24] sm:$0xf]
        %v1018 = vshrl.u32 %v935, 16
        %v1020 = vshll.u32 %v935, 16
        %v1022 = vrot.slane %v1020, 1
        %v1023 = vor.u32 %v1018, %v1022
        %v1024 = vshll.u32 %v936, 16
        %v1026 = vrot.slane %v1024, 1
        %v1027 = vsel %vm680, %v1023, %v1026
        %v1028 = vshrl.u32 %v936, 16
        %v1030 = vor.u32 %v1028, %v1026
        %v1031 = vshll.u32 %v937, 16
        %v1033 = vrot.slane %v1031, 1
        %v1034 = vsel %vm680, %v1030, %v1033
        %v1035 = vshrl.u32 %v937, 16
        %v1037 = vor.u32 %v1035, %v1033
        %v1040 = vunpack.c.l.b16 %v1016
        %v1041 = vunpack.c.l.b16 %v1017
        %v1042 = vpack.c.b16 %v1041, %v1040
        %v1045 = vsel %vm658, %v1027, 0
        %v1048 = vsel %vm658, %v1034, 0
        %v1051 = vsel %vm658, %v1037, 0
        %1053 = vmatprep.subr.bf16.mxu0 0
        %1054 = vmatpush1.bf16.msra.mxu0 0
        %1055 = vmatprep.subr.bf16.mxu0 0
        %1056 = vmatpush1.bf16.msra.mxu0 0
        %1057 = vmatprep.subr.bf16.mxu0 0
        %1058 = vmatpush1.bf16.msra.mxu0 0
        %1059 = vmatprep.subr.bf16.mxu0 0
        %1060 = vmatpush1.bf16.msra.mxu0 0
        %1061 = vmatprep.subr.bf16.mxu0 0
        %1062 = vmatpush1.bf16.msra.mxu0 0
        %1063 = vmatprep.subr.bf16.mxu0 0
        %1064 = vmatpush1.bf16.msra.mxu0 0
        %1065 = vmatprep.subr.bf16.mxu0 0
        %1066 = vmatpush1.bf16.msra.mxu0 0
        %1067 = vmatprep.subr.bf16.mxu0 0
        %1068 = vmatpush1.bf16.msra.mxu0 %v1042
        %1069 = vmatprep.subr.bf16.mxu0 0
        %1070 = vmatpush2.bf16.msra.mxu0 0
        %1071 = vmatprep.subr.bf16.mxu0 0
        %1072 = vmatpush2.bf16.msra.mxu0 0
        %1073 = vmatprep.subr.bf16.mxu0 0
        %1074 = vmatpush2.bf16.msra.mxu0 0
        %1075 = vmatprep.subr.bf16.mxu0 0
        %1076 = vmatpush2.bf16.msra.mxu0 0
        %1077 = vmatprep.subr.bf16.mxu0 0
        %1078 = vmatpush2.bf16.msra.mxu0 0
        %1079 = vmatprep.subr.bf16.mxu0 0
        %1080 = vmatpush2.bf16.msra.mxu0 0
        %1081 = vmatprep.subr.bf16.mxu0 0
        %1082 = vmatpush2.bf16.msra.mxu0 0
        %1083 = vmatprep.subr.bf16.mxu0 0
        %1084 = vmatpush2.bf16.msra.mxu0 0
        %1085 = vmatprep.mubr.bf16.mxu0 0
        %1086 = vmatmul.mubr.bf16.gmra.mxu0 %v1045
        %v1087 = vpop.f32.mrf.mxu0
        %v1088 = vadd.f32 0.0, %v1087
        %v1089 = vpop.f32.mrf.mxu0
        %v1090 = vpop.f32.mrf.mxu0
        %v1091 = vadd.f32 0.0, %v1090
        %v1092 = vpop.f32.mrf.mxu0
        %1093 = vmatprep.mubr.bf16.mxu0 0
        %1094 = vmatmul.mubr.bf16.gmra.mxu0 %v1048
        %v1095 = vpop.f32.mrf.mxu0
        %v1096 = vadd.f32 0.0, %v1095
        %v1097 = vpop.f32.mrf.mxu0
        %v1098 = vpop.f32.mrf.mxu0
        %v1099 = vadd.f32 0.0, %v1098
        %v1100 = vpop.f32.mrf.mxu0
        %1101 = vmatprep.mubr.bf16.mxu0 0
        %1102 = vmatmul.mubr.bf16.gmra.mxu0 %v1051
        %v1103 = vpop.f32.mrf.mxu0
        %v1104 = vadd.f32 0.0, %v1103
        %v1105 = vpop.f32.mrf.mxu0
        %v1106 = vpop.f32.mrf.mxu0
        %v1107 = vpop.f32.mrf.mxu0
        %1108 = vdwg.mxu0
        %v1109 = vadd.f32 %v1011, %v1088
        %v1110 = vadd.f32 %v1012, %v1091
        %v1111 = vadd.f32 %v1013, %v1096
        %v1112 = vadd.f32 %v1014, %v1099
        %v1113 = vadd.f32 %v1015, %v1104
        %v1114 = vld [vmem:[%s3 + $0x28] sm:$0xf]
        %v1115 = vld [vmem:[%s3 + $0x2c] sm:$0xf]
        %v1119 = vrot.slane %v935, 1
        %v1120 = vrot.slane %v936, 1
        %v1121 = vsel %vm848, %v1119, %v1120
        %v1122 = vrot.slane %v937, 1
        %v1123 = vsel %vm848, %v1120, %v1122
        %v1126 = vunpack.c.l.b16 %v1114
        %v1127 = vunpack.c.l.b16 %v1115
        %v1128 = vpack.c.b16 %v1127, %v1126
        %v1131 = vsel %vm658, %v1121, 0
        %v1134 = vsel %vm658, %v1123, 0
        %v1137 = vsel %vm658, %v1122, 0
        %1139 = vmatprep.subr.bf16.mxu0 0
        %1140 = vmatpush1.bf16.msra.mxu0 0
        %1141 = vmatprep.subr.bf16.mxu0 0
        %1142 = vmatpush1.bf16.msra.mxu0 0
        %1143 = vmatprep.subr.bf16.mxu0 0
        %1144 = vmatpush1.bf16.msra.mxu0 0
        %1145 = vmatprep.subr.bf16.mxu0 0
        %1146 = vmatpush1.bf16.msra.mxu0 0
        %1147 = vmatprep.subr.bf16.mxu0 0
        %1148 = vmatpush1.bf16.msra.mxu0 0
        %1149 = vmatprep.subr.bf16.mxu0 0
        %1150 = vmatpush1.bf16.msra.mxu0 0
        %1151 = vmatprep.subr.bf16.mxu0 0
        %1152 = vmatpush1.bf16.msra.mxu0 0
        %1153 = vmatprep.subr.bf16.mxu0 0
        %1154 = vmatpush1.bf16.msra.mxu0 %v1128
        %1155 = vmatprep.subr.bf16.mxu0 0
        %1156 = vmatpush2.bf16.msra.mxu0 0
        %1157 = vmatprep.subr.bf16.mxu0 0
        %1158 = vmatpush2.bf16.msra.mxu0 0
        %1159 = vmatprep.subr.bf16.mxu0 0
        %1160 = vmatpush2.bf16.msra.mxu0 0
        %1161 = vmatprep.subr.bf16.mxu0 0
        %1162 = vmatpush2.bf16.msra.mxu0 0
        %1163 = vmatprep.subr.bf16.mxu0 0
        %1164 = vmatpush2.bf16.msra.mxu0 0
        %1165 = vmatprep.subr.bf16.mxu0 0
        %1166 = vmatpush2.bf16.msra.mxu0 0
        %1167 = vmatprep.subr.bf16.mxu0 0
        %1168 = vmatpush2.bf16.msra.mxu0 0
        %1169 = vmatprep.subr.bf16.mxu0 0
        %1170 = vmatpush2.bf16.msra.mxu0 0
        %1171 = vmatprep.mubr.bf16.mxu0 0
        %1172 = vmatmul.mubr.bf16.gmra.mxu0 %v1131
        %v1173 = vpop.f32.mrf.mxu0
        %v1174 = vadd.f32 0.0, %v1173
        %v1175 = vpop.f32.mrf.mxu0
        %v1176 = vpop.f32.mrf.mxu0
        %v1177 = vadd.f32 0.0, %v1176
        %v1178 = vpop.f32.mrf.mxu0
        %1179 = vmatprep.mubr.bf16.mxu0 0
        %1180 = vmatmul.mubr.bf16.gmra.mxu0 %v1134
        %v1181 = vpop.f32.mrf.mxu0
        %v1182 = vadd.f32 0.0, %v1181
        %v1183 = vpop.f32.mrf.mxu0
        %v1184 = vpop.f32.mrf.mxu0
        %v1185 = vadd.f32 0.0, %v1184
        %v1186 = vpop.f32.mrf.mxu0
        %1187 = vmatprep.mubr.bf16.mxu0 0
        %1188 = vmatmul.mubr.bf16.gmra.mxu0 %v1137
        %v1189 = vpop.f32.mrf.mxu0
        %v1190 = vadd.f32 0.0, %v1189
        %v1191 = vpop.f32.mrf.mxu0
        %v1192 = vpop.f32.mrf.mxu0
        %v1193 = vpop.f32.mrf.mxu0
        %1194 = vdwg.mxu0
        %v1195 = vadd.f32 %v1109, %v1174
        %v1196 = vadd.f32 %v1110, %v1177
        %v1197 = vadd.f32 %v1111, %v1182
        %v1198 = vadd.f32 %v1112, %v1185
        %v1199 = vadd.f32 %v1113, %v1190
        %v1200 = vld [vmem:[#allocation2 + $0xe] sm:$0xff]
        %v1201 = vld [vmem:[#allocation2 + $0x16] sm:$0xff]
        %v1202 = vld [vmem:[#allocation2 + $0x1e] sm:$0xff]
        %v1203 = vld [vmem:[#allocation2 + $0x26] sm:$0xff]
        %v1204 = vld [vmem:[#allocation2 + $0x2e] sm:$0x1f]
        %v1205 = vpack.c.bf16 %v1201, %v1200
        %v1206 = vpack.c.bf16 %v1203, %v1202
        %v1207 = vpack.c.bf16 %v1204, %v1204
        %v1208 = vld [vmem:[%s3 + $0x30] sm:$0xf]
        %v1209 = vld [vmem:[%s3 + $0x34] sm:$0xf]
        %v1212 = vunpack.c.l.b16 %v1208
        %v1213 = vunpack.c.l.b16 %v1209
        %v1214 = vpack.c.b16 %v1213, %v1212
        %v1217 = vsel %vm658, %v1205, 0
        %v1220 = vsel %vm658, %v1206, 0
        %v1223 = vsel %vm658, %v1207, 0
        %1225 = vmatprep.subr.bf16.mxu0 0
        %1226 = vmatpush1.bf16.msra.mxu0 0
        %1227 = vmatprep.subr.bf16.mxu0 0
        %1228 = vmatpush1.bf16.msra.mxu0 0
        %1229 = vmatprep.subr.bf16.mxu0 0
        %1230 = vmatpush1.bf16.msra.mxu0 0
        %1231 = vmatprep.subr.bf16.mxu0 0
        %1232 = vmatpush1.bf16.msra.mxu0 0
        %1233 = vmatprep.subr.bf16.mxu0 0
        %1234 = vmatpush1.bf16.msra.mxu0 0
        %1235 = vmatprep.subr.bf16.mxu0 0
        %1236 = vmatpush1.bf16.msra.mxu0 0
        %1237 = vmatprep.subr.bf16.mxu0 0
        %1238 = vmatpush1.bf16.msra.mxu0 0
        %1239 = vmatprep.subr.bf16.mxu0 0
        %1240 = vmatpush1.bf16.msra.mxu0 %v1214
        %1241 = vmatprep.subr.bf16.mxu0 0
        %1242 = vmatpush2.bf16.msra.mxu0 0
        %1243 = vmatprep.subr.bf16.mxu0 0
        %1244 = vmatpush2.bf16.msra.mxu0 0
        %1245 = vmatprep.subr.bf16.mxu0 0
        %1246 = vmatpush2.bf16.msra.mxu0 0
        %1247 = vmatprep.subr.bf16.mxu0 0
        %1248 = vmatpush2.bf16.msra.mxu0 0
        %1249 = vmatprep.subr.bf16.mxu0 0
        %1250 = vmatpush2.bf16.msra.mxu0 0
        %1251 = vmatprep.subr.bf16.mxu0 0
        %1252 = vmatpush2.bf16.msra.mxu0 0
        %1253 = vmatprep.subr.bf16.mxu0 0
        %1254 = vmatpush2.bf16.msra.mxu0 0
        %1255 = vmatprep.subr.bf16.mxu0 0
        %1256 = vmatpush2.bf16.msra.mxu0 0
        %1257 = vmatprep.mubr.bf16.mxu0 0
        %1258 = vmatmul.mubr.bf16.gmra.mxu0 %v1217
        %v1259 = vpop.f32.mrf.mxu0
        %v1260 = vadd.f32 0.0, %v1259
        %v1261 = vpop.f32.mrf.mxu0
        %v1262 = vpop.f32.mrf.mxu0
        %v1263 = vadd.f32 0.0, %v1262
        %v1264 = vpop.f32.mrf.mxu0
        %1265 = vmatprep.mubr.bf16.mxu0 0
        %1266 = vmatmul.mubr.bf16.gmra.mxu0 %v1220
        %v1267 = vpop.f32.mrf.mxu0
        %v1268 = vadd.f32 0.0, %v1267
        %v1269 = vpop.f32.mrf.mxu0
        %v1270 = vpop.f32.mrf.mxu0
        %v1271 = vadd.f32 0.0, %v1270
        %v1272 = vpop.f32.mrf.mxu0
        %1273 = vmatprep.mubr.bf16.mxu0 0
        %1274 = vmatmul.mubr.bf16.gmra.mxu0 %v1223
        %v1275 = vpop.f32.mrf.mxu0
        %v1276 = vadd.f32 0.0, %v1275
        %v1277 = vpop.f32.mrf.mxu0
        %v1278 = vpop.f32.mrf.mxu0
        %v1279 = vpop.f32.mrf.mxu0
        %1280 = vdwg.mxu0
        %v1281 = vadd.f32 %v1195, %v1260
        %v1282 = vadd.f32 %v1196, %v1263
        %v1283 = vadd.f32 %v1197, %v1268
        %v1284 = vadd.f32 %v1198, %v1271
        %v1285 = vadd.f32 %v1199, %v1276
        %v1286 = vld [vmem:[%s3 + $0x38] sm:$0xf]
        %v1287 = vld [vmem:[%s3 + $0x3c] sm:$0xf]
        %v1288 = vshrl.u32 %v1205, 16
        %v1290 = vshll.u32 %v1205, 16
        %v1292 = vrot.slane %v1290, 1
        %v1293 = vor.u32 %v1288, %v1292
        %v1294 = vshll.u32 %v1206, 16
        %v1296 = vrot.slane %v1294, 1
        %v1297 = vsel %vm680, %v1293, %v1296
        %v1298 = vshrl.u32 %v1206, 16
        %v1300 = vor.u32 %v1298, %v1296
        %v1301 = vshll.u32 %v1207, 16
        %v1303 = vrot.slane %v1301, 1
        %v1304 = vsel %vm680, %v1300, %v1303
        %v1305 = vshrl.u32 %v1207, 16
        %v1307 = vor.u32 %v1305, %v1303
        %v1310 = vunpack.c.l.b16 %v1286
        %v1311 = vunpack.c.l.b16 %v1287
        %v1312 = vpack.c.b16 %v1311, %v1310
        %v1315 = vsel %vm658, %v1297, 0
        %v1318 = vsel %vm658, %v1304, 0
        %v1321 = vsel %vm658, %v1307, 0
        %1323 = vmatprep.subr.bf16.mxu0 0
        %1324 = vmatpush1.bf16.msra.mxu0 0
        %1325 = vmatprep.subr.bf16.mxu0 0
        %1326 = vmatpush1.bf16.msra.mxu0 0
        %1327 = vmatprep.subr.bf16.mxu0 0
        %1328 = vmatpush1.bf16.msra.mxu0 0
        %1329 = vmatprep.subr.bf16.mxu0 0
        %1330 = vmatpush1.bf16.msra.mxu0 0
        %1331 = vmatprep.subr.bf16.mxu0 0
        %1332 = vmatpush1.bf16.msra.mxu0 0
        %1333 = vmatprep.subr.bf16.mxu0 0
        %1334 = vmatpush1.bf16.msra.mxu0 0
        %1335 = vmatprep.subr.bf16.mxu0 0
        %1336 = vmatpush1.bf16.msra.mxu0 0
        %1337 = vmatprep.subr.bf16.mxu0 0
        %1338 = vmatpush1.bf16.msra.mxu0 %v1312
        %1339 = vmatprep.subr.bf16.mxu0 0
        %1340 = vmatpush2.bf16.msra.mxu0 0
        %1341 = vmatprep.subr.bf16.mxu0 0
        %1342 = vmatpush2.bf16.msra.mxu0 0
        %1343 = vmatprep.subr.bf16.mxu0 0
        %1344 = vmatpush2.bf16.msra.mxu0 0
        %1345 = vmatprep.subr.bf16.mxu0 0
        %1346 = vmatpush2.bf16.msra.mxu0 0
        %1347 = vmatprep.subr.bf16.mxu0 0
        %1348 = vmatpush2.bf16.msra.mxu0 0
        %1349 = vmatprep.subr.bf16.mxu0 0
        %1350 = vmatpush2.bf16.msra.mxu0 0
        %1351 = vmatprep.subr.bf16.mxu0 0
        %1352 = vmatpush2.bf16.msra.mxu0 0
        %1353 = vmatprep.subr.bf16.mxu0 0
        %1354 = vmatpush2.bf16.msra.mxu0 0
        %1355 = vmatprep.mubr.bf16.mxu0 0
        %1356 = vmatmul.mubr.bf16.gmra.mxu0 %v1315
        %v1357 = vpop.f32.mrf.mxu0
        %v1358 = vadd.f32 0.0, %v1357
        %v1359 = vpop.f32.mrf.mxu0
        %v1360 = vpop.f32.mrf.mxu0
        %v1361 = vadd.f32 0.0, %v1360
        %v1362 = vpop.f32.mrf.mxu0
        %1363 = vmatprep.mubr.bf16.mxu0 0
        %1364 = vmatmul.mubr.bf16.gmra.mxu0 %v1318
        %v1365 = vpop.f32.mrf.mxu0
        %v1366 = vadd.f32 0.0, %v1365
        %v1367 = vpop.f32.mrf.mxu0
        %v1368 = vpop.f32.mrf.mxu0
        %v1369 = vadd.f32 0.0, %v1368
        %v1370 = vpop.f32.mrf.mxu0
        %1371 = vmatprep.mubr.bf16.mxu0 0
        %1372 = vmatmul.mubr.bf16.gmra.mxu0 %v1321
        %v1373 = vpop.f32.mrf.mxu0
        %v1374 = vadd.f32 0.0, %v1373
        %v1375 = vpop.f32.mrf.mxu0
        %v1376 = vpop.f32.mrf.mxu0
        %v1377 = vpop.f32.mrf.mxu0
        %1378 = vdwg.mxu0
        %v1379 = vadd.f32 %v1281, %v1358
        %v1380 = vadd.f32 %v1282, %v1361
        %v1381 = vadd.f32 %v1283, %v1366
        %v1382 = vadd.f32 %v1284, %v1369
        %v1383 = vadd.f32 %v1285, %v1374
        %v1384 = vld [vmem:[%s3 + $0x40] sm:$0xf]
        %v1385 = vld [vmem:[%s3 + $0x44] sm:$0xf]
        %v1389 = vrot.slane %v1205, 1
        %v1390 = vrot.slane %v1206, 1
        %v1391 = vsel %vm848, %v1389, %v1390
        %v1392 = vrot.slane %v1207, 1
        %v1393 = vsel %vm848, %v1390, %v1392
        %v1396 = vunpack.c.l.b16 %v1384
        %v1397 = vunpack.c.l.b16 %v1385
        %v1398 = vpack.c.b16 %v1397, %v1396
        %v1401 = vsel %vm658, %v1391, 0
        %v1404 = vsel %vm658, %v1393, 0
        %v1407 = vsel %vm658, %v1392, 0
        %1409 = vmatprep.subr.bf16.mxu0 0
        %1410 = vmatpush1.bf16.msra.mxu0 0
        %1411 = vmatprep.subr.bf16.mxu0 0
        %1412 = vmatpush1.bf16.msra.mxu0 0
        %1413 = vmatprep.subr.bf16.mxu0 0
        %1414 = vmatpush1.bf16.msra.mxu0 0
        %1415 = vmatprep.subr.bf16.mxu0 0
        %1416 = vmatpush1.bf16.msra.mxu0 0
        %1417 = vmatprep.subr.bf16.mxu0 0
        %1418 = vmatpush1.bf16.msra.mxu0 0
        %1419 = vmatprep.subr.bf16.mxu0 0
        %1420 = vmatpush1.bf16.msra.mxu0 0
        %1421 = vmatprep.subr.bf16.mxu0 0
        %1422 = vmatpush1.bf16.msra.mxu0 0
        %1423 = vmatprep.subr.bf16.mxu0 0
        %1424 = vmatpush1.bf16.msra.mxu0 %v1398
        %1425 = vmatprep.subr.bf16.mxu0 0
        %1426 = vmatpush2.bf16.msra.mxu0 0
        %1427 = vmatprep.subr.bf16.mxu0 0
        %1428 = vmatpush2.bf16.msra.mxu0 0
        %1429 = vmatprep.subr.bf16.mxu0 0
        %1430 = vmatpush2.bf16.msra.mxu0 0
        %1431 = vmatprep.subr.bf16.mxu0 0
        %1432 = vmatpush2.bf16.msra.mxu0 0
        %1433 = vmatprep.subr.bf16.mxu0 0
        %1434 = vmatpush2.bf16.msra.mxu0 0
        %1435 = vmatprep.subr.bf16.mxu0 0
        %1436 = vmatpush2.bf16.msra.mxu0 0
        %1437 = vmatprep.subr.bf16.mxu0 0
        %1438 = vmatpush2.bf16.msra.mxu0 0
        %1439 = vmatprep.subr.bf16.mxu0 0
        %1440 = vmatpush2.bf16.msra.mxu0 0
        %1441 = vmatprep.mubr.bf16.mxu0 0
        %1442 = vmatmul.mubr.bf16.gmra.mxu0 %v1401
        %v1443 = vpop.f32.mrf.mxu0
        %v1444 = vadd.f32 0.0, %v1443
        %v1445 = vpop.f32.mrf.mxu0
        %v1446 = vpop.f32.mrf.mxu0
        %v1447 = vadd.f32 0.0, %v1446
        %v1448 = vpop.f32.mrf.mxu0
        %1449 = vmatprep.mubr.bf16.mxu0 0
        %1450 = vmatmul.mubr.bf16.gmra.mxu0 %v1404
        %v1451 = vpop.f32.mrf.mxu0
        %v1452 = vadd.f32 0.0, %v1451
        %v1453 = vpop.f32.mrf.mxu0
        %v1454 = vpop.f32.mrf.mxu0
        %v1455 = vadd.f32 0.0, %v1454
        %v1456 = vpop.f32.mrf.mxu0
        %1457 = vmatprep.mubr.bf16.mxu0 0
        %1458 = vmatmul.mubr.bf16.gmra.mxu0 %v1407
        %v1459 = vpop.f32.mrf.mxu0
        %v1460 = vadd.f32 0.0, %v1459
        %v1461 = vpop.f32.mrf.mxu0
        %v1462 = vpop.f32.mrf.mxu0
        %v1463 = vpop.f32.mrf.mxu0
        %1464 = vdwg.mxu0
        %v1465 = vadd.f32 %v1379, %v1444
        %v1466 = vadd.f32 %v1380, %v1447
        %v1467 = vadd.f32 %v1381, %v1452
        %v1468 = vadd.f32 %v1382, %v1455
        %v1469 = vadd.f32 %v1383, %v1460
        %v1470 = vld [vmem:[%s4] sm:$0x1]
        %v1472 = vlaneseq
        %v1473 = vshrl.u32 %v1472, 7
        %v1474 = vsub.s32 0, %v1473
        %v1475 = vrot.slane %v1470, %v1474
        %v1477 = vadd.f32 %v1465, %v1475
        %v1478 = vadd.f32 %v1466, %v1475
        %v1479 = vadd.f32 %v1467, %v1475
        %v1480 = vadd.f32 %v1468, %v1475
        %v1481 = vadd.f32 %v1469, %v1475
        %v1482 = vmul.f32 %v1477, 0.5
        %v1483 = vmul.f32 %v1478, 0.5
        %v1484 = vmul.f32 %v1479, 0.5
        %v1485 = vmul.f32 %v1480, 0.5
        %v1486 = vmul.f32 %v1481, 0.5
        %v1487 = vmul.f32 %v1477, 0.70710677
        %v1488 = vmul.f32 %v1478, 0.70710677
        %v1489 = vmul.f32 %v1479, 0.70710677
        %v1490 = vmul.f32 %v1480, 0.70710677
        %v1491 = vmul.f32 %v1481, 0.70710677
        %v1492 = vand.u32 2147483647, %v1487
        %v1493 = vand.u32 2147483647, %v1488
        %v1494 = vand.u32 2147483647, %v1489
        %v1495 = vand.u32 2147483647, %v1490
        %v1496 = vand.u32 2147483647, %v1491
        %v1497 = vmul.f32 %v1492, 0.3275911
        %v1498 = vmul.f32 %v1493, 0.3275911
        %v1499 = vmul.f32 %v1494, 0.3275911
        %v1500 = vmul.f32 %v1495, 0.3275911
        %v1501 = vmul.f32 %v1496, 0.3275911
        %v1502 = vadd.f32 %v1497, 1.0
        %v1503 = vadd.f32 %v1498, 1.0
        %v1504 = vadd.f32 %v1499, 1.0
        %v1505 = vadd.f32 %v1500, 1.0
        %v1506 = vadd.f32 %v1501, 1.0
        %v1507 = vrcp.pop %v1502
        %v1508 = vmul.f32 1.0, %v1507
        %v1509 = vrcp.pop %v1503
        %v1510 = vmul.f32 1.0, %v1509
        %v1511 = vrcp.pop %v1504
        %v1512 = vmul.f32 1.0, %v1511
        %v1513 = vrcp.pop %v1505
        %v1514 = vmul.f32 1.0, %v1513
        %v1515 = vrcp.pop %v1506
        %v1516 = vmul.f32 1.0, %v1515
        %v1517 = vmul.f32 %v1508, 1.0614054
        %v1518 = vmul.f32 %v1510, 1.0614054
        %v1519 = vmul.f32 %v1512, 1.0614054
        %v1520 = vmul.f32 %v1514, 1.0614054
        %v1521 = vmul.f32 %v1516, 1.0614054
        %v1522 = vadd.f32 %v1517, -1.4531521
        %v1523 = vadd.f32 %v1518, -1.4531521
        %v1524 = vadd.f32 %v1519, -1.4531521
        %v1525 = vadd.f32 %v1520, -1.4531521
        %v1526 = vadd.f32 %v1521, -1.4531521
        %v1527 = vmul.f32 %v1508, %v1522
        %v1528 = vmul.f32 %v1510, %v1523
        %v1529 = vmul.f32 %v1512, %v1524
        %v1530 = vmul.f32 %v1514, %v1525
        %v1531 = vmul.f32 %v1516, %v1526
        %v1532 = vadd.f32 %v1527, 1.4214138
        %v1533 = vadd.f32 %v1528, 1.4214138
        %v1534 = vadd.f32 %v1529, 1.4214138
        %v1535 = vadd.f32 %v1530, 1.4214138
        %v1536 = vadd.f32 %v1531, 1.4214138
        %v1537 = vmul.f32 %v1508, %v1532
        %v1538 = vmul.f32 %v1510, %v1533
        %v1539 = vmul.f32 %v1512, %v1534
        %v1540 = vmul.f32 %v1514, %v1535
        %v1541 = vmul.f32 %v1516, %v1536
        %v1542 = vadd.f32 %v1537, -0.28449672
        %v1543 = vadd.f32 %v1538, -0.28449672
        %v1544 = vadd.f32 %v1539, -0.28449672
        %v1545 = vadd.f32 %v1540, -0.28449672
        %v1546 = vadd.f32 %v1541, -0.28449672
        %v1547 = vmul.f32 %v1508, %v1542
        %v1548 = vmul.f32 %v1510, %v1543
        %v1549 = vmul.f32 %v1512, %v1544
        %v1550 = vmul.f32 %v1514, %v1545
        %v1551 = vmul.f32 %v1516, %v1546
        %v1552 = vadd.f32 %v1547, 0.2548296
        %v1553 = vadd.f32 %v1548, 0.2548296
        %v1554 = vadd.f32 %v1549, 0.2548296
        %v1555 = vadd.f32 %v1550, 0.2548296
        %v1556 = vadd.f32 %v1551, 0.2548296
        %v1557 = vmul.f32 %v1508, %v1552
        %v1558 = vmul.f32 %v1510, %v1553
        %v1559 = vmul.f32 %v1512, %v1554
        %v1560 = vmul.f32 %v1514, %v1555
        %v1561 = vmul.f32 %v1516, %v1556
        %v1562 = vsub.f32 0.0, %v1492
        %v1563 = vsub.f32 0.0, %v1493
        %v1564 = vsub.f32 0.0, %v1494
        %v1565 = vsub.f32 0.0, %v1495
        %v1566 = vsub.f32 0.0, %v1496
        %v1567 = vmul.f32 %v1562, %v1492
        %v1568 = vmul.f32 %v1563, %v1493
        %v1569 = vmul.f32 %v1564, %v1494
        %v1570 = vmul.f32 %v1565, %v1495
        %v1571 = vmul.f32 %v1566, %v1496
        %v1572 = vmul.f32 %v1567, 1.442695
        %v1573 = vpow.pop %v1572
        %v1574 = vmul.f32 %v1568, 1.442695
        %v1575 = vpow.pop %v1574
        %v1576 = vmul.f32 %v1569, 1.442695
        %v1577 = vpow.pop %v1576
        %v1578 = vmul.f32 %v1570, 1.442695
        %v1579 = vpow.pop %v1578
        %v1580 = vmul.f32 %v1571, 1.442695
        %v1581 = vpow.pop %v1580
        %v1582 = vmul.f32 %v1557, %v1573
        %v1583 = vmul.f32 %v1558, %v1575
        %v1584 = vmul.f32 %v1559, %v1577
        %v1585 = vmul.f32 %v1560, %v1579
        %v1586 = vmul.f32 %v1561, %v1581
        %v1587 = vsub.f32 1.0, %v1582
        %v1588 = vsub.f32 1.0, %v1583
        %v1589 = vsub.f32 1.0, %v1584
        %v1590 = vsub.f32 1.0, %v1585
        %v1591 = vsub.f32 1.0, %v1586
        %vm1592 = vcmp.lt.f32.partialorder %v1487, 0.0
        %vm1593 = vcmp.lt.f32.partialorder %v1488, 0.0
        %vm1594 = vcmp.lt.f32.partialorder %v1489, 0.0
        %vm1595 = vcmp.lt.f32.partialorder %v1490, 0.0
        %vm1596 = vcmp.lt.f32.partialorder %v1491, 0.0
        %v1597 = vsub.f32 0.0, %v1587
        %v1598 = vsub.f32 0.0, %v1588
        %v1599 = vsub.f32 0.0, %v1589
        %v1600 = vsub.f32 0.0, %v1590
        %v1601 = vsub.f32 0.0, %v1591
        %v1602 = vsel %vm1592, %v1597, %v1587
        %v1603 = vsel %vm1593, %v1598, %v1588
        %v1604 = vsel %vm1594, %v1599, %v1589
        %v1605 = vsel %vm1595, %v1600, %v1590
        %v1606 = vsel %vm1596, %v1601, %v1591
        %v1607 = vadd.f32 %v1602, 1.0
        %v1608 = vadd.f32 %v1603, 1.0
        %v1609 = vadd.f32 %v1604, 1.0
        %v1610 = vadd.f32 %v1605, 1.0
        %v1611 = vadd.f32 %v1606, 1.0
        %v1612 = vmul.f32 %v1482, %v1607
        %v1613 = vmul.f32 %v1483, %v1608
        %v1614 = vmul.f32 %v1484, %v1609
        %v1615 = vmul.f32 %v1485, %v1610
        %v1616 = vmul.f32 %v1486, %v1611
        %v1617 = vmul.f32 %v1612, 1.7015043
        %v1618 = vmul.f32 %v1613, 1.7015043
        %v1619 = vmul.f32 %v1614, 1.7015043
        %v1620 = vmul.f32 %v1615, 1.7015043
        %v1621 = vmul.f32 %v1616, 1.7015043
        %vm1622 = vcmask 261120
        %1623 = vst.msk [vmem:[#allocation3] sm:$0xff] %vm1622, %v1617
        %1624 = vst.msk [vmem:[#allocation3 + $0x8] sm:$0xff] %vm1622, %v1618
        %1625 = vst.msk [vmem:[#allocation3 + $0x10] sm:$0xff] %vm1622, %v1619
        %1626 = vst.msk [vmem:[#allocation3 + $0x18] sm:$0xff] %vm1622, %v1620
        %vm1627 = vcmask 256000
        %1628 = vst.msk [vmem:[#allocation3 + $0x20] sm:$0x7] %vm1627, %v1621
        %1629 = vst.msk [vmem:[#allocation3 + $0x23] sm:$0xff] %vm1622, 0.0
        %v1630 = vld [vmem:[#allocation3] sm:$0xff]
        %v1631 = vld [vmem:[#allocation3 + $0x8] sm:$0xff]
        %v1632 = vld [vmem:[#allocation3 + $0x10] sm:$0x7f]
        %v1633 = vpack.c.bf16 %v1631, %v1630
        %v1634 = vpack.c.bf16 %v1632, %v1632
        %v1635 = vld [vmem:[%s5] sm:$0xf]
        %v1636 = vld [vmem:[%s5 + $0x4] sm:$0xf]
        %v1637 = vld [vmem:[%s5 + $0x8] sm:$0xf]
        %v1638 = vld [vmem:[%s5 + $0xc] sm:$0xf]
        %v1639 = vld [vmem:[%s5 + $0x10] sm:$0xf]
        %v1640 = vld [vmem:[%s5 + $0x14] sm:$0xf]
        %v1641 = vld [vmem:[%s5 + $0x18] sm:$0xf]
        %v1642 = vld [vmem:[%s5 + $0x1c] sm:$0xf]
        %v1644 = vshrl.u32 %v1633, 16
        %v1646 = vshll.u32 %v1633, 16
        %v1648 = vrot.slane %v1646, 1
        %v1649 = vor.u32 %v1644, %v1648
        %v1651 = vshll.u32 %v1634, 16
        %v1653 = vrot.slane %v1651, 1
        %v1654 = vsel %vm680, %v1649, %v1653
        %v1655 = vshrl.u32 %v1634, 16
        %v1657 = vor.u32 %v1655, %v1653
        %v1662 = vunpack.c.l.b16 %v1639
        %v1663 = vunpack.c.l.b16 %v1640
        %v1664 = vunpack.c.l.b16 %v1641
        %v1665 = vunpack.c.l.b16 %v1642
        %v1666 = vpack.c.b16 %v1663, %v1662
        %v1667 = vpack.c.b16 %v1665, %v1664
        %v1671 = vsel %vm1622, %v1654, 0
        %v1674 = vsel %vm1622, %v1657, 0
        %1676 = vmatprep.subr.bf16.mxu0 0
        %1677 = vmatpush1.bf16.msra.mxu0 0
        %1678 = vmatprep.subr.bf16.mxu0 0
        %1679 = vmatpush1.bf16.msra.mxu0 0
        %1680 = vmatprep.subr.bf16.mxu0 0
        %1681 = vmatpush1.bf16.msra.mxu0 0
        %1682 = vmatprep.subr.bf16.mxu0 0
        %1683 = vmatpush1.bf16.msra.mxu0 0
        %1684 = vmatprep.subr.bf16.mxu0 0
        %1685 = vmatpush1.bf16.msra.mxu0 0
        %1686 = vmatprep.subr.bf16.mxu0 0
        %1687 = vmatpush1.bf16.msra.mxu0 0
        %1688 = vmatprep.subr.bf16.mxu0 0
        %1689 = vmatpush1.bf16.msra.mxu0 %v1667
        %1690 = vmatprep.subr.bf16.mxu0 0
        %1691 = vmatpush1.bf16.msra.mxu0 %v1666
        %1692 = vmatprep.subr.bf16.mxu0 0
        %1693 = vmatpush2.bf16.msra.mxu0 0
        %1694 = vmatprep.subr.bf16.mxu0 0
        %1695 = vmatpush2.bf16.msra.mxu0 0
        %1696 = vmatprep.subr.bf16.mxu0 0
        %1697 = vmatpush2.bf16.msra.mxu0 0
        %1698 = vmatprep.subr.bf16.mxu0 0
        %1699 = vmatpush2.bf16.msra.mxu0 0
        %1700 = vmatprep.subr.bf16.mxu0 0
        %1701 = vmatpush2.bf16.msra.mxu0 0
        %1702 = vmatprep.subr.bf16.mxu0 0
        %1703 = vmatpush2.bf16.msra.mxu0 0
        %1704 = vmatprep.subr.bf16.mxu0 0
        %1705 = vmatpush2.bf16.msra.mxu0 0
        %1706 = vmatprep.subr.bf16.mxu0 0
        %1707 = vmatpush2.bf16.msra.mxu0 0
        %1708 = vmatprep.mubr.bf16.mxu0 0
        %1709 = vmatmul.mubr.bf16.gmra.mxu0 %v1671
        %v1710 = vpop.f32.mrf.mxu0
        %v1711 = vadd.f32 0.0, %v1710
        %v1712 = vpop.f32.mrf.mxu0
        %v1713 = vpop.f32.mrf.mxu0
        %v1714 = vadd.f32 0.0, %v1713
        %v1715 = vpop.f32.mrf.mxu0
        %1716 = vmatprep.mubr.bf16.mxu0 0
        %1717 = vmatmul.mubr.bf16.gmra.mxu0 %v1674
        %v1718 = vpop.f32.mrf.mxu0
        %v1719 = vadd.f32 0.0, %v1718
        %v1720 = vpop.f32.mrf.mxu0
        %v1721 = vpop.f32.mrf.mxu0
        %v1722 = vpop.f32.mrf.mxu0
        %1723 = vdwg.mxu0
        %v1728 = vunpack.c.l.b16 %v1635
        %v1729 = vunpack.c.l.b16 %v1636
        %v1730 = vunpack.c.l.b16 %v1637
        %v1731 = vunpack.c.l.b16 %v1638
        %v1732 = vpack.c.b16 %v1729, %v1728
        %v1733 = vpack.c.b16 %v1731, %v1730
        %v1736 = vsel %vm1622, %v1633, 0
        %v1738 = vsel %vm1622, %v1634, 0
        %1740 = vmatprep.subr.bf16.mxu0 0
        %1741 = vmatpush1.bf16.msra.mxu0 0
        %1742 = vmatprep.subr.bf16.mxu0 0
        %1743 = vmatpush1.bf16.msra.mxu0 0
        %1744 = vmatprep.subr.bf16.mxu0 0
        %1745 = vmatpush1.bf16.msra.mxu0 0
        %1746 = vmatprep.subr.bf16.mxu0 0
        %1747 = vmatpush1.bf16.msra.mxu0 0
        %1748 = vmatprep.subr.bf16.mxu0 0
        %1749 = vmatpush1.bf16.msra.mxu0 0
        %1750 = vmatprep.subr.bf16.mxu0 0
        %1751 = vmatpush1.bf16.msra.mxu0 0
        %1752 = vmatprep.subr.bf16.mxu0 0
        %1753 = vmatpush1.bf16.msra.mxu0 %v1733
        %1754 = vmatprep.subr.bf16.mxu0 0
        %1755 = vmatpush1.bf16.msra.mxu0 %v1732
        %1756 = vmatprep.subr.bf16.mxu0 0
        %1757 = vmatpush2.bf16.msra.mxu0 0
        %1758 = vmatprep.subr.bf16.mxu0 0
        %1759 = vmatpush2.bf16.msra.mxu0 0
        %1760 = vmatprep.subr.bf16.mxu0 0
        %1761 = vmatpush2.bf16.msra.mxu0 0
        %1762 = vmatprep.subr.bf16.mxu0 0
        %1763 = vmatpush2.bf16.msra.mxu0 0
        %1764 = vmatprep.subr.bf16.mxu0 0
        %1765 = vmatpush2.bf16.msra.mxu0 0
        %1766 = vmatprep.subr.bf16.mxu0 0
        %1767 = vmatpush2.bf16.msra.mxu0 0
        %1768 = vmatprep.subr.bf16.mxu0 0
        %1769 = vmatpush2.bf16.msra.mxu0 0
        %1770 = vmatprep.subr.bf16.mxu0 0
        %1771 = vmatpush2.bf16.msra.mxu0 0
        %1772 = vmatprep.mubr.bf16.mxu0 0
        %1773 = vmatmul.mubr.bf16.gmra.mxu0 %v1736
        %v1774 = vpop.f32.mrf.mxu0
        %v1775 = vadd.f32 %v1711, %v1774
        %v1776 = vpop.f32.mrf.mxu0
        %v1777 = vpop.f32.mrf.mxu0
        %v1778 = vadd.f32 %v1714, %v1777
        %v1779 = vpop.f32.mrf.mxu0
        %1780 = vmatprep.mubr.bf16.mxu0 0
        %1781 = vmatmul.mubr.bf16.gmra.mxu0 %v1738
        %v1782 = vpop.f32.mrf.mxu0
        %v1783 = vadd.f32 %v1719, %v1782
        %v1784 = vpop.f32.mrf.mxu0
        %v1785 = vpop.f32.mrf.mxu0
        %v1786 = vpop.f32.mrf.mxu0
        %1787 = vdwg.mxu0
        %v1788 = vld [vmem:[%s5 + $0x20] sm:$0xf]
        %v1789 = vld [vmem:[%s5 + $0x24] sm:$0xf]
        %v1790 = vld [vmem:[%s5 + $0x28] sm:$0xf]
        %v1791 = vld [vmem:[%s5 + $0x2c] sm:$0xf]
        %v1794 = vrot.slane %v1633, 1
        %v1795 = vrot.slane %v1634, 1
        %v1796 = vsel %vm848, %v1794, %v1795
        %v1801 = vunpack.c.l.b16 %v1788
        %v1802 = vunpack.c.l.b16 %v1789
        %v1803 = vunpack.c.l.b16 %v1790
        %v1804 = vunpack.c.l.b16 %v1791
        %v1805 = vpack.c.b16 %v1802, %v1801
        %v1806 = vpack.c.b16 %v1804, %v1803
        %v1810 = vsel %vm1622, %v1796, 0
        %v1813 = vsel %vm1622, %v1795, 0
        %1815 = vmatprep.subr.bf16.mxu0 0
        %1816 = vmatpush1.bf16.msra.mxu0 0
        %1817 = vmatprep.subr.bf16.mxu0 0
        %1818 = vmatpush1.bf16.msra.mxu0 0
        %1819 = vmatprep.subr.bf16.mxu0 0
        %1820 = vmatpush1.bf16.msra.mxu0 0
        %1821 = vmatprep.subr.bf16.mxu0 0
        %1822 = vmatpush1.bf16.msra.mxu0 0
        %1823 = vmatprep.subr.bf16.mxu0 0
        %1824 = vmatpush1.bf16.msra.mxu0 0
        %1825 = vmatprep.subr.bf16.mxu0 0
        %1826 = vmatpush1.bf16.msra.mxu0 0
        %1827 = vmatprep.subr.bf16.mxu0 0
        %1828 = vmatpush1.bf16.msra.mxu0 %v1806
        %1829 = vmatprep.subr.bf16.mxu0 0
        %1830 = vmatpush1.bf16.msra.mxu0 %v1805
        %1831 = vmatprep.subr.bf16.mxu0 0
        %1832 = vmatpush2.bf16.msra.mxu0 0
        %1833 = vmatprep.subr.bf16.mxu0 0
        %1834 = vmatpush2.bf16.msra.mxu0 0
        %1835 = vmatprep.subr.bf16.mxu0 0
        %1836 = vmatpush2.bf16.msra.mxu0 0
        %1837 = vmatprep.subr.bf16.mxu0 0
        %1838 = vmatpush2.bf16.msra.mxu0 0
        %1839 = vmatprep.subr.bf16.mxu0 0
        %1840 = vmatpush2.bf16.msra.mxu0 0
        %1841 = vmatprep.subr.bf16.mxu0 0
        %1842 = vmatpush2.bf16.msra.mxu0 0
        %1843 = vmatprep.subr.bf16.mxu0 0
        %1844 = vmatpush2.bf16.msra.mxu0 0
        %1845 = vmatprep.subr.bf16.mxu0 0
        %1846 = vmatpush2.bf16.msra.mxu0 0
        %1847 = vmatprep.mubr.bf16.mxu0 0
        %1848 = vmatmul.mubr.bf16.gmra.mxu0 %v1810
        %v1849 = vpop.f32.mrf.mxu0
        %v1850 = vadd.f32 0.0, %v1849
        %v1851 = vpop.f32.mrf.mxu0
        %v1852 = vpop.f32.mrf.mxu0
        %v1853 = vadd.f32 0.0, %v1852
        %v1854 = vpop.f32.mrf.mxu0
        %1855 = vmatprep.mubr.bf16.mxu0 0
        %1856 = vmatmul.mubr.bf16.gmra.mxu0 %v1813
        %v1857 = vpop.f32.mrf.mxu0
        %v1858 = vadd.f32 0.0, %v1857
        %v1859 = vpop.f32.mrf.mxu0
        %v1860 = vpop.f32.mrf.mxu0
        %v1861 = vpop.f32.mrf.mxu0
        %1862 = vdwg.mxu0
        %v1863 = vadd.f32 %v1775, %v1850
        %v1864 = vadd.f32 %v1778, %v1853
        %v1865 = vadd.f32 %v1783, %v1858
        %v1866 = vld [vmem:[#allocation3 + $0x7] sm:$0xff]
        %v1867 = vld [vmem:[#allocation3 + $0xf] sm:$0xff]
        %v1868 = vld [vmem:[#allocation3 + $0x17] sm:$0x7f]
        %v1869 = vpack.c.bf16 %v1867, %v1866
        %v1870 = vpack.c.bf16 %v1868, %v1868
        %v1871 = vld [vmem:[%s5 + $0x30] sm:$0xf]
        %v1872 = vld [vmem:[%s5 + $0x34] sm:$0xf]
        %v1873 = vld [vmem:[%s5 + $0x38] sm:$0xf]
        %v1874 = vld [vmem:[%s5 + $0x3c] sm:$0xf]
        %v1879 = vunpack.c.l.b16 %v1871
        %v1880 = vunpack.c.l.b16 %v1872
        %v1881 = vunpack.c.l.b16 %v1873
        %v1882 = vunpack.c.l.b16 %v1874
        %v1883 = vpack.c.b16 %v1880, %v1879
        %v1884 = vpack.c.b16 %v1882, %v1881
        %v1888 = vsel %vm1622, %v1869, 0
        %v1891 = vsel %vm1622, %v1870, 0
        %1893 = vmatprep.subr.bf16.mxu0 0
        %1894 = vmatpush1.bf16.msra.mxu0 0
        %1895 = vmatprep.subr.bf16.mxu0 0
        %1896 = vmatpush1.bf16.msra.mxu0 0
        %1897 = vmatprep.subr.bf16.mxu0 0
        %1898 = vmatpush1.bf16.msra.mxu0 0
        %1899 = vmatprep.subr.bf16.mxu0 0
        %1900 = vmatpush1.bf16.msra.mxu0 0
        %1901 = vmatprep.subr.bf16.mxu0 0
        %1902 = vmatpush1.bf16.msra.mxu0 0
        %1903 = vmatprep.subr.bf16.mxu0 0
        %1904 = vmatpush1.bf16.msra.mxu0 0
        %1905 = vmatprep.subr.bf16.mxu0 0
        %1906 = vmatpush1.bf16.msra.mxu0 %v1884
        %1907 = vmatprep.subr.bf16.mxu0 0
        %1908 = vmatpush1.bf16.msra.mxu0 %v1883
        %1909 = vmatprep.subr.bf16.mxu0 0
        %1910 = vmatpush2.bf16.msra.mxu0 0
        %1911 = vmatprep.subr.bf16.mxu0 0
        %1912 = vmatpush2.bf16.msra.mxu0 0
        %1913 = vmatprep.subr.bf16.mxu0 0
        %1914 = vmatpush2.bf16.msra.mxu0 0
        %1915 = vmatprep.subr.bf16.mxu0 0
        %1916 = vmatpush2.bf16.msra.mxu0 0
        %1917 = vmatprep.subr.bf16.mxu0 0
        %1918 = vmatpush2.bf16.msra.mxu0 0
        %1919 = vmatprep.subr.bf16.mxu0 0
        %1920 = vmatpush2.bf16.msra.mxu0 0
        %1921 = vmatprep.subr.bf16.mxu0 0
        %1922 = vmatpush2.bf16.msra.mxu0 0
        %1923 = vmatprep.subr.bf16.mxu0 0
        %1924 = vmatpush2.bf16.msra.mxu0 0
        %1925 = vmatprep.mubr.bf16.mxu0 0
        %1926 = vmatmul.mubr.bf16.gmra.mxu0 %v1888
        %v1927 = vpop.f32.mrf.mxu0
        %v1928 = vadd.f32 0.0, %v1927
        %v1929 = vpop.f32.mrf.mxu0
        %v1930 = vpop.f32.mrf.mxu0
        %v1931 = vadd.f32 0.0, %v1930
        %v1932 = vpop.f32.mrf.mxu0
        %1933 = vmatprep.mubr.bf16.mxu0 0
        %1934 = vmatmul.mubr.bf16.gmra.mxu0 %v1891
        %v1935 = vpop.f32.mrf.mxu0
        %v1936 = vadd.f32 0.0, %v1935
        %v1937 = vpop.f32.mrf.mxu0
        %v1938 = vpop.f32.mrf.mxu0
        %v1939 = vpop.f32.mrf.mxu0
        %1940 = vdwg.mxu0
        %v1941 = vadd.f32 %v1863, %v1928
        %v1942 = vadd.f32 %v1864, %v1931
        %v1943 = vadd.f32 %v1865, %v1936
        %v1944 = vld [vmem:[%s5 + $0x40] sm:$0xf]
        %v1945 = vld [vmem:[%s5 + $0x44] sm:$0xf]
        %v1946 = vld [vmem:[%s5 + $0x48] sm:$0xf]
        %v1947 = vld [vmem:[%s5 + $0x4c] sm:$0xf]
        %v1948 = vshrl.u32 %v1869, 16
        %v1950 = vshll.u32 %v1869, 16
        %v1952 = vrot.slane %v1950, 1
        %v1953 = vor.u32 %v1948, %v1952
        %v1954 = vshll.u32 %v1870, 16
        %v1956 = vrot.slane %v1954, 1
        %v1957 = vsel %vm680, %v1953, %v1956
        %v1958 = vshrl.u32 %v1870, 16
        %v1960 = vor.u32 %v1958, %v1956
        %v1965 = vunpack.c.l.b16 %v1944
        %v1966 = vunpack.c.l.b16 %v1945
        %v1967 = vunpack.c.l.b16 %v1946
        %v1968 = vunpack.c.l.b16 %v1947
        %v1969 = vpack.c.b16 %v1966, %v1965
        %v1970 = vpack.c.b16 %v1968, %v1967
        %v1974 = vsel %vm1622, %v1957, 0
        %v1977 = vsel %vm1622, %v1960, 0
        %1979 = vmatprep.subr.bf16.mxu0 0
        %1980 = vmatpush1.bf16.msra.mxu0 0
        %1981 = vmatprep.subr.bf16.mxu0 0
        %1982 = vmatpush1.bf16.msra.mxu0 0
        %1983 = vmatprep.subr.bf16.mxu0 0
        %1984 = vmatpush1.bf16.msra.mxu0 0
        %1985 = vmatprep.subr.bf16.mxu0 0
        %1986 = vmatpush1.bf16.msra.mxu0 0
        %1987 = vmatprep.subr.bf16.mxu0 0
        %1988 = vmatpush1.bf16.msra.mxu0 0
        %1989 = vmatprep.subr.bf16.mxu0 0
        %1990 = vmatpush1.bf16.msra.mxu0 0
        %1991 = vmatprep.subr.bf16.mxu0 0
        %1992 = vmatpush1.bf16.msra.mxu0 %v1970
        %1993 = vmatprep.subr.bf16.mxu0 0
        %1994 = vmatpush1.bf16.msra.mxu0 %v1969
        %1995 = vmatprep.subr.bf16.mxu0 0
        %1996 = vmatpush2.bf16.msra.mxu0 0
        %1997 = vmatprep.subr.bf16.mxu0 0
        %1998 = vmatpush2.bf16.msra.mxu0 0
        %1999 = vmatprep.subr.bf16.mxu0 0
        %2000 = vmatpush2.bf16.msra.mxu0 0
        %2001 = vmatprep.subr.bf16.mxu0 0
        %2002 = vmatpush2.bf16.msra.mxu0 0
        %2003 = vmatprep.subr.bf16.mxu0 0
        %2004 = vmatpush2.bf16.msra.mxu0 0
        %2005 = vmatprep.subr.bf16.mxu0 0
        %2006 = vmatpush2.bf16.msra.mxu0 0
        %2007 = vmatprep.subr.bf16.mxu0 0
        %2008 = vmatpush2.bf16.msra.mxu0 0
        %2009 = vmatprep.subr.bf16.mxu0 0
        %2010 = vmatpush2.bf16.msra.mxu0 0
        %2011 = vmatprep.mubr.bf16.mxu0 0
        %2012 = vmatmul.mubr.bf16.gmra.mxu0 %v1974
        %v2013 = vpop.f32.mrf.mxu0
        %v2014 = vadd.f32 0.0, %v2013
        %v2015 = vpop.f32.mrf.mxu0
        %v2016 = vpop.f32.mrf.mxu0
        %v2017 = vadd.f32 0.0, %v2016
        %v2018 = vpop.f32.mrf.mxu0
        %2019 = vmatprep.mubr.bf16.mxu0 0
        %2020 = vmatmul.mubr.bf16.gmra.mxu0 %v1977
        %v2021 = vpop.f32.mrf.mxu0
        %v2022 = vadd.f32 0.0, %v2021
        %v2023 = vpop.f32.mrf.mxu0
        %v2024 = vpop.f32.mrf.mxu0
        %v2025 = vpop.f32.mrf.mxu0
        %2026 = vdwg.mxu0
        %v2027 = vadd.f32 %v1941, %v2014
        %v2028 = vadd.f32 %v1942, %v2017
        %v2029 = vadd.f32 %v1943, %v2022
        %v2030 = vld [vmem:[%s5 + $0x50] sm:$0xf]
        %v2031 = vld [vmem:[%s5 + $0x54] sm:$0xf]
        %v2032 = vld [vmem:[%s5 + $0x58] sm:$0xf]
        %v2033 = vld [vmem:[%s5 + $0x5c] sm:$0xf]
        %v2036 = vrot.slane %v1869, 1
        %v2037 = vrot.slane %v1870, 1
        %v2038 = vsel %vm848, %v2036, %v2037
        %v2043 = vunpack.c.l.b16 %v2030
        %v2044 = vunpack.c.l.b16 %v2031
        %v2045 = vunpack.c.l.b16 %v2032
        %v2046 = vunpack.c.l.b16 %v2033
        %v2047 = vpack.c.b16 %v2044, %v2043
        %v2048 = vpack.c.b16 %v2046, %v2045
        %v2052 = vsel %vm1622, %v2038, 0
        %v2055 = vsel %vm1622, %v2037, 0
        %2057 = vmatprep.subr.bf16.mxu0 0
        %2058 = vmatpush1.bf16.msra.mxu0 0
        %2059 = vmatprep.subr.bf16.mxu0 0
        %2060 = vmatpush1.bf16.msra.mxu0 0
        %2061 = vmatprep.subr.bf16.mxu0 0
        %2062 = vmatpush1.bf16.msra.mxu0 0
        %2063 = vmatprep.subr.bf16.mxu0 0
        %2064 = vmatpush1.bf16.msra.mxu0 0
        %2065 = vmatprep.subr.bf16.mxu0 0
        %2066 = vmatpush1.bf16.msra.mxu0 0
        %2067 = vmatprep.subr.bf16.mxu0 0
        %2068 = vmatpush1.bf16.msra.mxu0 0
        %2069 = vmatprep.subr.bf16.mxu0 0
        %2070 = vmatpush1.bf16.msra.mxu0 %v2048
        %2071 = vmatprep.subr.bf16.mxu0 0
        %2072 = vmatpush1.bf16.msra.mxu0 %v2047
        %2073 = vmatprep.subr.bf16.mxu0 0
        %2074 = vmatpush2.bf16.msra.mxu0 0
        %2075 = vmatprep.subr.bf16.mxu0 0
        %2076 = vmatpush2.bf16.msra.mxu0 0
        %2077 = vmatprep.subr.bf16.mxu0 0
        %2078 = vmatpush2.bf16.msra.mxu0 0
        %2079 = vmatprep.subr.bf16.mxu0 0
        %2080 = vmatpush2.bf16.msra.mxu0 0
        %2081 = vmatprep.subr.bf16.mxu0 0
        %2082 = vmatpush2.bf16.msra.mxu0 0
        %2083 = vmatprep.subr.bf16.mxu0 0
        %2084 = vmatpush2.bf16.msra.mxu0 0
        %2085 = vmatprep.subr.bf16.mxu0 0
        %2086 = vmatpush2.bf16.msra.mxu0 0
        %2087 = vmatprep.subr.bf16.mxu0 0
        %2088 = vmatpush2.bf16.msra.mxu0 0
        %2089 = vmatprep.mubr.bf16.mxu0 0
        %2090 = vmatmul.mubr.bf16.gmra.mxu0 %v2052
        %v2091 = vpop.f32.mrf.mxu0
        %v2092 = vadd.f32 0.0, %v2091
        %v2093 = vpop.f32.mrf.mxu0
        %v2094 = vpop.f32.mrf.mxu0
        %v2095 = vadd.f32 0.0, %v2094
        %v2096 = vpop.f32.mrf.mxu0
        %2097 = vmatprep.mubr.bf16.mxu0 0
        %2098 = vmatmul.mubr.bf16.gmra.mxu0 %v2055
        %v2099 = vpop.f32.mrf.mxu0
        %v2100 = vadd.f32 0.0, %v2099
        %v2101 = vpop.f32.mrf.mxu0
        %v2102 = vpop.f32.mrf.mxu0
        %v2103 = vpop.f32.mrf.mxu0
        %2104 = vdwg.mxu0
        %v2105 = vadd.f32 %v2027, %v2092
        %v2106 = vadd.f32 %v2028, %v2095
        %v2107 = vadd.f32 %v2029, %v2100
        %v2108 = vld [vmem:[#allocation3 + $0xe] sm:$0xff]
        %v2109 = vld [vmem:[#allocation3 + $0x16] sm:$0xff]
        %v2110 = vld [vmem:[#allocation3 + $0x1e] sm:$0x7f]
        %v2111 = vpack.c.bf16 %v2109, %v2108
        %v2112 = vpack.c.bf16 %v2110, %v2110
        %v2113 = vld [vmem:[%s5 + $0x60] sm:$0xf]
        %v2114 = vld [vmem:[%s5 + $0x64] sm:$0xf]
        %v2115 = vld [vmem:[%s5 + $0x68] sm:$0xf]
        %v2116 = vld [vmem:[%s5 + $0x6c] sm:$0xf]
        %v2121 = vunpack.c.l.b16 %v2113
        %v2122 = vunpack.c.l.b16 %v2114
        %v2123 = vunpack.c.l.b16 %v2115
        %v2124 = vunpack.c.l.b16 %v2116
        %v2125 = vpack.c.b16 %v2122, %v2121
        %v2126 = vpack.c.b16 %v2124, %v2123
        %v2130 = vsel %vm1622, %v2111, 0
        %v2133 = vsel %vm1622, %v2112, 0
        %2135 = vmatprep.subr.bf16.mxu0 0
        %2136 = vmatpush1.bf16.msra.mxu0 0
        %2137 = vmatprep.subr.bf16.mxu0 0
        %2138 = vmatpush1.bf16.msra.mxu0 0
        %2139 = vmatprep.subr.bf16.mxu0 0
        %2140 = vmatpush1.bf16.msra.mxu0 0
        %2141 = vmatprep.subr.bf16.mxu0 0
        %2142 = vmatpush1.bf16.msra.mxu0 0
        %2143 = vmatprep.subr.bf16.mxu0 0
        %2144 = vmatpush1.bf16.msra.mxu0 0
        %2145 = vmatprep.subr.bf16.mxu0 0
        %2146 = vmatpush1.bf16.msra.mxu0 0
        %2147 = vmatprep.subr.bf16.mxu0 0
        %2148 = vmatpush1.bf16.msra.mxu0 %v2126
        %2149 = vmatprep.subr.bf16.mxu0 0
        %2150 = vmatpush1.bf16.msra.mxu0 %v2125
        %2151 = vmatprep.subr.bf16.mxu0 0
        %2152 = vmatpush2.bf16.msra.mxu0 0
        %2153 = vmatprep.subr.bf16.mxu0 0
        %2154 = vmatpush2.bf16.msra.mxu0 0
        %2155 = vmatprep.subr.bf16.mxu0 0
        %2156 = vmatpush2.bf16.msra.mxu0 0
        %2157 = vmatprep.subr.bf16.mxu0 0
        %2158 = vmatpush2.bf16.msra.mxu0 0
        %2159 = vmatprep.subr.bf16.mxu0 0
        %2160 = vmatpush2.bf16.msra.mxu0 0
        %2161 = vmatprep.subr.bf16.mxu0 0
        %2162 = vmatpush2.bf16.msra.mxu0 0
        %2163 = vmatprep.subr.bf16.mxu0 0
        %2164 = vmatpush2.bf16.msra.mxu0 0
        %2165 = vmatprep.subr.bf16.mxu0 0
        %2166 = vmatpush2.bf16.msra.mxu0 0
        %2167 = vmatprep.mubr.bf16.mxu0 0
        %2168 = vmatmul.mubr.bf16.gmra.mxu0 %v2130
        %v2169 = vpop.f32.mrf.mxu0
        %v2170 = vadd.f32 0.0, %v2169
        %v2171 = vpop.f32.mrf.mxu0
        %v2172 = vpop.f32.mrf.mxu0
        %v2173 = vadd.f32 0.0, %v2172
        %v2174 = vpop.f32.mrf.mxu0
        %2175 = vmatprep.mubr.bf16.mxu0 0
        %2176 = vmatmul.mubr.bf16.gmra.mxu0 %v2133
        %v2177 = vpop.f32.mrf.mxu0
        %v2178 = vadd.f32 0.0, %v2177
        %v2179 = vpop.f32.mrf.mxu0
        %v2180 = vpop.f32.mrf.mxu0
        %v2181 = vpop.f32.mrf.mxu0
        %2182 = vdwg.mxu0
        %v2183 = vadd.f32 %v2105, %v2170
        %v2184 = vadd.f32 %v2106, %v2173
        %v2185 = vadd.f32 %v2107, %v2178
        %v2186 = vld [vmem:[%s5 + $0x70] sm:$0xf]
        %v2187 = vld [vmem:[%s5 + $0x74] sm:$0xf]
        %v2188 = vld [vmem:[%s5 + $0x78] sm:$0xf]
        %v2189 = vld [vmem:[%s5 + $0x7c] sm:$0xf]
        %v2190 = vshrl.u32 %v2111, 16
        %v2192 = vshll.u32 %v2111, 16
        %v2194 = vrot.slane %v2192, 1
        %v2195 = vor.u32 %v2190, %v2194
        %v2196 = vshll.u32 %v2112, 16
        %v2198 = vrot.slane %v2196, 1
        %v2199 = vsel %vm680, %v2195, %v2198
        %v2200 = vshrl.u32 %v2112, 16
        %v2202 = vor.u32 %v2200, %v2198
        %v2207 = vunpack.c.l.b16 %v2186
        %v2208 = vunpack.c.l.b16 %v2187
        %v2209 = vunpack.c.l.b16 %v2188
        %v2210 = vunpack.c.l.b16 %v2189
        %v2211 = vpack.c.b16 %v2208, %v2207
        %v2212 = vpack.c.b16 %v2210, %v2209
        %v2216 = vsel %vm1622, %v2199, 0
        %v2219 = vsel %vm1622, %v2202, 0
        %2221 = vmatprep.subr.bf16.mxu0 0
        %2222 = vmatpush1.bf16.msra.mxu0 0
        %2223 = vmatprep.subr.bf16.mxu0 0
        %2224 = vmatpush1.bf16.msra.mxu0 0
        %2225 = vmatprep.subr.bf16.mxu0 0
        %2226 = vmatpush1.bf16.msra.mxu0 0
        %2227 = vmatprep.subr.bf16.mxu0 0
        %2228 = vmatpush1.bf16.msra.mxu0 0
        %2229 = vmatprep.subr.bf16.mxu0 0
        %2230 = vmatpush1.bf16.msra.mxu0 0
        %2231 = vmatprep.subr.bf16.mxu0 0
        %2232 = vmatpush1.bf16.msra.mxu0 0
        %2233 = vmatprep.subr.bf16.mxu0 0
        %2234 = vmatpush1.bf16.msra.mxu0 %v2212
        %2235 = vmatprep.subr.bf16.mxu0 0
        %2236 = vmatpush1.bf16.msra.mxu0 %v2211
        %2237 = vmatprep.subr.bf16.mxu0 0
        %2238 = vmatpush2.bf16.msra.mxu0 0
        %2239 = vmatprep.subr.bf16.mxu0 0
        %2240 = vmatpush2.bf16.msra.mxu0 0
        %2241 = vmatprep.subr.bf16.mxu0 0
        %2242 = vmatpush2.bf16.msra.mxu0 0
        %2243 = vmatprep.subr.bf16.mxu0 0
        %2244 = vmatpush2.bf16.msra.mxu0 0
        %2245 = vmatprep.subr.bf16.mxu0 0
        %2246 = vmatpush2.bf16.msra.mxu0 0
        %2247 = vmatprep.subr.bf16.mxu0 0
        %2248 = vmatpush2.bf16.msra.mxu0 0
        %2249 = vmatprep.subr.bf16.mxu0 0
        %2250 = vmatpush2.bf16.msra.mxu0 0
        %2251 = vmatprep.subr.bf16.mxu0 0
        %2252 = vmatpush2.bf16.msra.mxu0 0
        %2253 = vmatprep.mubr.bf16.mxu0 0
        %2254 = vmatmul.mubr.bf16.gmra.mxu0 %v2216
        %v2255 = vpop.f32.mrf.mxu0
        %v2256 = vadd.f32 0.0, %v2255
        %v2257 = vpop.f32.mrf.mxu0
        %v2258 = vpop.f32.mrf.mxu0
        %v2259 = vadd.f32 0.0, %v2258
        %v2260 = vpop.f32.mrf.mxu0
        %2261 = vmatprep.mubr.bf16.mxu0 0
        %2262 = vmatmul.mubr.bf16.gmra.mxu0 %v2219
        %v2263 = vpop.f32.mrf.mxu0
        %v2264 = vadd.f32 0.0, %v2263
        %v2265 = vpop.f32.mrf.mxu0
        %v2266 = vpop.f32.mrf.mxu0
        %v2267 = vpop.f32.mrf.mxu0
        %2268 = vdwg.mxu0
        %v2269 = vadd.f32 %v2183, %v2256
        %v2270 = vadd.f32 %v2184, %v2259
        %v2271 = vadd.f32 %v2185, %v2264
        %v2272 = vld [vmem:[%s5 + $0x80] sm:$0xf]
        %v2273 = vld [vmem:[%s5 + $0x84] sm:$0xf]
        %v2274 = vld [vmem:[%s5 + $0x88] sm:$0xf]
        %v2275 = vld [vmem:[%s5 + $0x8c] sm:$0xf]
        %v2278 = vrot.slane %v2111, 1
        %v2279 = vrot.slane %v2112, 1
        %v2280 = vsel %vm848, %v2278, %v2279
        %v2285 = vunpack.c.l.b16 %v2272
        %v2286 = vunpack.c.l.b16 %v2273
        %v2287 = vunpack.c.l.b16 %v2274
        %v2288 = vunpack.c.l.b16 %v2275
        %v2289 = vpack.c.b16 %v2286, %v2285
        %v2290 = vpack.c.b16 %v2288, %v2287
        %v2294 = vsel %vm1622, %v2280, 0
        %v2297 = vsel %vm1622, %v2279, 0
        %2299 = vmatprep.subr.bf16.mxu0 0
        %2300 = vmatpush1.bf16.msra.mxu0 0
        %2301 = vmatprep.subr.bf16.mxu0 0
        %2302 = vmatpush1.bf16.msra.mxu0 0
        %2303 = vmatprep.subr.bf16.mxu0 0
        %2304 = vmatpush1.bf16.msra.mxu0 0
        %2305 = vmatprep.subr.bf16.mxu0 0
        %2306 = vmatpush1.bf16.msra.mxu0 0
        %2307 = vmatprep.subr.bf16.mxu0 0
        %2308 = vmatpush1.bf16.msra.mxu0 0
        %2309 = vmatprep.subr.bf16.mxu0 0
        %2310 = vmatpush1.bf16.msra.mxu0 0
        %2311 = vmatprep.subr.bf16.mxu0 0
        %2312 = vmatpush1.bf16.msra.mxu0 %v2290
        %2313 = vmatprep.subr.bf16.mxu0 0
        %2314 = vmatpush1.bf16.msra.mxu0 %v2289
        %2315 = vmatprep.subr.bf16.mxu0 0
        %2316 = vmatpush2.bf16.msra.mxu0 0
        %2317 = vmatprep.subr.bf16.mxu0 0
        %2318 = vmatpush2.bf16.msra.mxu0 0
        %2319 = vmatprep.subr.bf16.mxu0 0
        %2320 = vmatpush2.bf16.msra.mxu0 0
        %2321 = vmatprep.subr.bf16.mxu0 0
        %2322 = vmatpush2.bf16.msra.mxu0 0
        %2323 = vmatprep.subr.bf16.mxu0 0
        %2324 = vmatpush2.bf16.msra.mxu0 0
        %2325 = vmatprep.subr.bf16.mxu0 0
        %2326 = vmatpush2.bf16.msra.mxu0 0
        %2327 = vmatprep.subr.bf16.mxu0 0
        %2328 = vmatpush2.bf16.msra.mxu0 0
        %2329 = vmatprep.subr.bf16.mxu0 0
        %2330 = vmatpush2.bf16.msra.mxu0 0
        %2331 = vmatprep.mubr.bf16.mxu0 0
        %2332 = vmatmul.mubr.bf16.gmra.mxu0 %v2294
        %v2333 = vpop.f32.mrf.mxu0
        %v2334 = vadd.f32 0.0, %v2333
        %v2335 = vpop.f32.mrf.mxu0
        %v2336 = vpop.f32.mrf.mxu0
        %v2337 = vadd.f32 0.0, %v2336
        %v2338 = vpop.f32.mrf.mxu0
        %2339 = vmatprep.mubr.bf16.mxu0 0
        %2340 = vmatmul.mubr.bf16.gmra.mxu0 %v2297
        %v2341 = vpop.f32.mrf.mxu0
        %v2342 = vadd.f32 0.0, %v2341
        %v2343 = vpop.f32.mrf.mxu0
        %v2344 = vpop.f32.mrf.mxu0
        %v2345 = vpop.f32.mrf.mxu0
        %2346 = vdwg.mxu0
        %v2347 = vadd.f32 %v2269, %v2334
        %v2348 = vadd.f32 %v2270, %v2337
        %v2349 = vadd.f32 %v2271, %v2342
        %v2350 = vld [vmem:[%s6] sm:$0x1]
        %v2352 = vlaneseq
        %v2353 = vshrl.u32 %v2352, 7
        %v2354 = vsub.s32 0, %v2353
        %v2355 = vrot.slane %v2350, %v2354
        %v2357 = vadd.f32 %v2347, %v2355
        %v2358 = vadd.f32 %v2348, %v2355
        %v2359 = vadd.f32 %v2349, %v2355
        %v2360 = vmul.f32 %v2357, 0.5
        %v2361 = vmul.f32 %v2358, 0.5
        %v2362 = vmul.f32 %v2359, 0.5
        %v2363 = vmul.f32 %v2357, 0.70710677
        %v2364 = vmul.f32 %v2358, 0.70710677
        %v2365 = vmul.f32 %v2359, 0.70710677
        %v2366 = vand.u32 2147483647, %v2363
        %v2367 = vand.u32 2147483647, %v2364
        %v2368 = vand.u32 2147483647, %v2365
        %v2369 = vmul.f32 %v2366, 0.3275911
        %v2370 = vmul.f32 %v2367, 0.3275911
        %v2371 = vmul.f32 %v2368, 0.3275911
        %v2372 = vadd.f32 %v2369, 1.0
        %v2373 = vadd.f32 %v2370, 1.0
        %v2374 = vadd.f32 %v2371, 1.0
        %v2375 = vrcp.pop %v2372
        %v2376 = vmul.f32 1.0, %v2375
        %v2377 = vrcp.pop %v2373
        %v2378 = vmul.f32 1.0, %v2377
        %v2379 = vrcp.pop %v2374
        %v2380 = vmul.f32 1.0, %v2379
        %v2381 = vmul.f32 %v2376, 1.0614054
        %v2382 = vmul.f32 %v2378, 1.0614054
        %v2383 = vmul.f32 %v2380, 1.0614054
        %v2384 = vadd.f32 %v2381, -1.4531521
        %v2385 = vadd.f32 %v2382, -1.4531521
        %v2386 = vadd.f32 %v2383, -1.4531521
        %v2387 = vmul.f32 %v2376, %v2384
        %v2388 = vmul.f32 %v2378, %v2385
        %v2389 = vmul.f32 %v2380, %v2386
        %v2390 = vadd.f32 %v2387, 1.4214138
        %v2391 = vadd.f32 %v2388, 1.4214138
        %v2392 = vadd.f32 %v2389, 1.4214138
        %v2393 = vmul.f32 %v2376, %v2390
        %v2394 = vmul.f32 %v2378, %v2391
        %v2395 = vmul.f32 %v2380, %v2392
        %v2396 = vadd.f32 %v2393, -0.28449672
        %v2397 = vadd.f32 %v2394, -0.28449672
        %v2398 = vadd.f32 %v2395, -0.28449672
        %v2399 = vmul.f32 %v2376, %v2396
        %v2400 = vmul.f32 %v2378, %v2397
        %v2401 = vmul.f32 %v2380, %v2398
        %v2402 = vadd.f32 %v2399, 0.2548296
        %v2403 = vadd.f32 %v2400, 0.2548296
        %v2404 = vadd.f32 %v2401, 0.2548296
        %v2405 = vmul.f32 %v2376, %v2402
        %v2406 = vmul.f32 %v2378, %v2403
        %v2407 = vmul.f32 %v2380, %v2404
        %v2408 = vsub.f32 0.0, %v2366
        %v2409 = vsub.f32 0.0, %v2367
        %v2410 = vsub.f32 0.0, %v2368
        %v2411 = vmul.f32 %v2408, %v2366
        %v2412 = vmul.f32 %v2409, %v2367
        %v2413 = vmul.f32 %v2410, %v2368
        %v2414 = vmul.f32 %v2411, 1.442695
        %v2415 = vpow.pop %v2414
        %v2416 = vmul.f32 %v2412, 1.442695
        %v2417 = vpow.pop %v2416
        %v2418 = vmul.f32 %v2413, 1.442695
        %v2419 = vpow.pop %v2418
        %v2420 = vmul.f32 %v2405, %v2415
        %v2421 = vmul.f32 %v2406, %v2417
        %v2422 = vmul.f32 %v2407, %v2419
        %v2423 = vsub.f32 1.0, %v2420
        %v2424 = vsub.f32 1.0, %v2421
        %v2425 = vsub.f32 1.0, %v2422
        %vm2426 = vcmp.lt.f32.partialorder %v2363, 0.0
        %vm2427 = vcmp.lt.f32.partialorder %v2364, 0.0
        %vm2428 = vcmp.lt.f32.partialorder %v2365, 0.0
        %v2429 = vsub.f32 0.0, %v2423
        %v2430 = vsub.f32 0.0, %v2424
        %v2431 = vsub.f32 0.0, %v2425
        %v2432 = vsel %vm2426, %v2429, %v2423
        %v2433 = vsel %vm2427, %v2430, %v2424
        %v2434 = vsel %vm2428, %v2431, %v2425
        %v2435 = vadd.f32 %v2432, 1.0
        %v2436 = vadd.f32 %v2433, 1.0
        %v2437 = vadd.f32 %v2434, 1.0
        %v2438 = vmul.f32 %v2360, %v2435
        %v2439 = vmul.f32 %v2361, %v2436
        %v2440 = vmul.f32 %v2362, %v2437
        %v2441 = vmul.f32 %v2438, 1.7015043
        %v2442 = vmul.f32 %v2439, 1.7015043
        %v2443 = vmul.f32 %v2440, 1.7015043
        %vm2444 = vcmask 523264
        %2445 = vst.msk [vmem:[#allocation4] sm:$0xff] %vm2444, %v2441
        %2446 = vst.msk [vmem:[#allocation4 + $0x8] sm:$0xff] %vm2444, %v2442
        %vm2447 = vcmask 520192
        %2448 = vst.msk [vmem:[#allocation4 + $0x10] sm:$0x1f] %vm2447, %v2443
        %v2449 = vld [vmem:[#allocation4] sm:$0x7]
        %v2450 = vpack.c.bf16 %v2449, %v2449
        %v2451 = vld [vmem:[%s7] sm:$0xf]
        %v2452 = vld [vmem:[%s7 + $0x4] sm:$0xf]
        %v2453 = vld [vmem:[%s7 + $0x8] sm:$0xf]
        %v2454 = vld [vmem:[%s7 + $0xc] sm:$0xf]
        %v2455 = vld [vmem:[%s7 + $0x10] sm:$0xf]
        %v2456 = vld [vmem:[%s7 + $0x14] sm:$0xf]
        %v2457 = vld [vmem:[%s7 + $0x18] sm:$0xf]
        %v2458 = vld [vmem:[%s7 + $0x1c] sm:$0xf]
        %v2459 = vld [vmem:[%s7 + $0x20] sm:$0xf]
        %v2460 = vld [vmem:[%s7 + $0x24] sm:$0xf]
        %v2461 = vld [vmem:[%s7 + $0x28] sm:$0xf]
        %v2462 = vld [vmem:[%s7 + $0x2c] sm:$0xf]
        %v2463 = vld [vmem:[%s7 + $0x30] sm:$0xf]
        %v2464 = vld [vmem:[%s7 + $0x34] sm:$0xf]
        %v2465 = vld [vmem:[%s7 + $0x38] sm:$0xf]
        %v2466 = vld [vmem:[%s7 + $0x3c] sm:$0xf]
        %v2468 = vshrl.u32 %v2450, 16
        %v2478 = vunpack.c.l.b16 %v2459
        %v2479 = vunpack.c.l.b16 %v2460
        %v2480 = vunpack.c.l.b16 %v2461
        %v2481 = vunpack.c.l.b16 %v2462
        %v2482 = vunpack.c.l.b16 %v2463
        %v2483 = vunpack.c.l.b16 %v2464
        %v2484 = vunpack.c.l.b16 %v2465
        %v2485 = vunpack.c.l.b16 %v2466
        %v2486 = vpack.c.b16 %v2479, %v2478
        %v2487 = vpack.c.b16 %v2481, %v2480
        %v2488 = vpack.c.b16 %v2483, %v2482
        %v2489 = vpack.c.b16 %v2485, %v2484
        %v2495 = vsel %vm2444, %v2468, 0
        %2497 = vmatprep.subr.bf16.mxu0 0
        %2498 = vmatpush1.bf16.msra.mxu0 0
        %2499 = vmatprep.subr.bf16.mxu0 0
        %2500 = vmatpush1.bf16.msra.mxu0 0
        %2501 = vmatprep.subr.bf16.mxu0 0
        %2502 = vmatpush1.bf16.msra.mxu0 0
        %2503 = vmatprep.subr.bf16.mxu0 0
        %2504 = vmatpush1.bf16.msra.mxu0 0
        %2505 = vmatprep.subr.bf16.mxu0 0
        %2506 = vmatpush1.bf16.msra.mxu0 %v2489
        %2507 = vmatprep.subr.bf16.mxu0 0
        %2508 = vmatpush1.bf16.msra.mxu0 %v2488
        %2509 = vmatprep.subr.bf16.mxu0 0
        %2510 = vmatpush1.bf16.msra.mxu0 %v2487
        %2511 = vmatprep.subr.bf16.mxu0 0
        %2512 = vmatpush1.bf16.msra.mxu0 %v2486
        %2513 = vmatprep.subr.bf16.mxu0 0
        %2514 = vmatpush2.bf16.msra.mxu0 0
        %2515 = vmatprep.subr.bf16.mxu0 0
        %2516 = vmatpush2.bf16.msra.mxu0 0
        %2517 = vmatprep.subr.bf16.mxu0 0
        %2518 = vmatpush2.bf16.msra.mxu0 0
        %2519 = vmatprep.subr.bf16.mxu0 0
        %2520 = vmatpush2.bf16.msra.mxu0 0
        %2521 = vmatprep.subr.bf16.mxu0 0
        %2522 = vmatpush2.bf16.msra.mxu0 0
        %2523 = vmatprep.subr.bf16.mxu0 0
        %2524 = vmatpush2.bf16.msra.mxu0 0
        %2525 = vmatprep.subr.bf16.mxu0 0
        %2526 = vmatpush2.bf16.msra.mxu0 0
        %2527 = vmatprep.subr.bf16.mxu0 0
        %2528 = vmatpush2.bf16.msra.mxu0 0
        %2529 = vmatprep.mubr.bf16.mxu0 0
        %2530 = vmatmul.mubr.bf16.gmra.mxu0 %v2495
        %v2531 = vpop.f32.mrf.mxu0
        %v2532 = vadd.f32 0.0, %v2531
        %v2533 = vpop.f32.mrf.mxu0
        %v2534 = vpop.f32.mrf.mxu0
        %v2535 = vpop.f32.mrf.mxu0
        %2536 = vdwg.mxu0
        %v2545 = vunpack.c.l.b16 %v2451
        %v2546 = vunpack.c.l.b16 %v2452
        %v2547 = vunpack.c.l.b16 %v2453
        %v2548 = vunpack.c.l.b16 %v2454
        %v2549 = vunpack.c.l.b16 %v2455
        %v2550 = vunpack.c.l.b16 %v2456
        %v2551 = vunpack.c.l.b16 %v2457
        %v2552 = vunpack.c.l.b16 %v2458
        %v2553 = vpack.c.b16 %v2546, %v2545
        %v2554 = vpack.c.b16 %v2548, %v2547
        %v2555 = vpack.c.b16 %v2550, %v2549
        %v2556 = vpack.c.b16 %v2552, %v2551
        %v2561 = vsel %vm2444, %v2450, 0
        %2563 = vmatprep.subr.bf16.mxu0 0
        %2564 = vmatpush1.bf16.msra.mxu0 0
        %2565 = vmatprep.subr.bf16.mxu0 0
        %2566 = vmatpush1.bf16.msra.mxu0 0
        %2567 = vmatprep.subr.bf16.mxu0 0
        %2568 = vmatpush1.bf16.msra.mxu0 0
        %2569 = vmatprep.subr.bf16.mxu0 0
        %2570 = vmatpush1.bf16.msra.mxu0 0
        %2571 = vmatprep.subr.bf16.mxu0 0
        %2572 = vmatpush1.bf16.msra.mxu0 %v2556
        %2573 = vmatprep.subr.bf16.mxu0 0
        %2574 = vmatpush1.bf16.msra.mxu0 %v2555
        %2575 = vmatprep.subr.bf16.mxu0 0
        %2576 = vmatpush1.bf16.msra.mxu0 %v2554
        %2577 = vmatprep.subr.bf16.mxu0 0
        %2578 = vmatpush1.bf16.msra.mxu0 %v2553
        %2579 = vmatprep.subr.bf16.mxu0 0
        %2580 = vmatpush2.bf16.msra.mxu0 0
        %2581 = vmatprep.subr.bf16.mxu0 0
        %2582 = vmatpush2.bf16.msra.mxu0 0
        %2583 = vmatprep.subr.bf16.mxu0 0
        %2584 = vmatpush2.bf16.msra.mxu0 0
        %2585 = vmatprep.subr.bf16.mxu0 0
        %2586 = vmatpush2.bf16.msra.mxu0 0
        %2587 = vmatprep.subr.bf16.mxu0 0
        %2588 = vmatpush2.bf16.msra.mxu0 0
        %2589 = vmatprep.subr.bf16.mxu0 0
        %2590 = vmatpush2.bf16.msra.mxu0 0
        %2591 = vmatprep.subr.bf16.mxu0 0
        %2592 = vmatpush2.bf16.msra.mxu0 0
        %2593 = vmatprep.subr.bf16.mxu0 0
        %2594 = vmatpush2.bf16.msra.mxu0 0
        %2595 = vmatprep.mubr.bf16.mxu0 0
        %2596 = vmatmul.mubr.bf16.gmra.mxu0 %v2561
        %v2597 = vpop.f32.mrf.mxu0
        %v2598 = vadd.f32 %v2532, %v2597
        %v2599 = vpop.f32.mrf.mxu0
        %v2600 = vpop.f32.mrf.mxu0
        %v2601 = vpop.f32.mrf.mxu0
        %2602 = vdwg.mxu0
        %v2603 = vld [vmem:[%s7 + $0x40] sm:$0xf]
        %v2604 = vld [vmem:[%s7 + $0x44] sm:$0xf]
        %v2605 = vld [vmem:[%s7 + $0x48] sm:$0xf]
        %v2606 = vld [vmem:[%s7 + $0x4c] sm:$0xf]
        %v2607 = vld [vmem:[%s7 + $0x50] sm:$0xf]
        %v2608 = vld [vmem:[%s7 + $0x54] sm:$0xf]
        %v2609 = vld [vmem:[%s7 + $0x58] sm:$0xf]
        %v2610 = vld [vmem:[%s7 + $0x5c] sm:$0xf]
        %v2612 = vrot.slane %v2450, 1
        %v2621 = vunpack.c.l.b16 %v2603
        %v2622 = vunpack.c.l.b16 %v2604
        %v2623 = vunpack.c.l.b16 %v2605
        %v2624 = vunpack.c.l.b16 %v2606
        %v2625 = vunpack.c.l.b16 %v2607
        %v2626 = vunpack.c.l.b16 %v2608
        %v2627 = vunpack.c.l.b16 %v2609
        %v2628 = vunpack.c.l.b16 %v2610
        %v2629 = vpack.c.b16 %v2622, %v2621
        %v2630 = vpack.c.b16 %v2624, %v2623
        %v2631 = vpack.c.b16 %v2626, %v2625
        %v2632 = vpack.c.b16 %v2628, %v2627
        %v2638 = vsel %vm2444, %v2612, 0
        %2640 = vmatprep.subr.bf16.mxu0 0
        %2641 = vmatpush1.bf16.msra.mxu0 0
        %2642 = vmatprep.subr.bf16.mxu0 0
        %2643 = vmatpush1.bf16.msra.mxu0 0
        %2644 = vmatprep.subr.bf16.mxu0 0
        %2645 = vmatpush1.bf16.msra.mxu0 0
        %2646 = vmatprep.subr.bf16.mxu0 0
        %2647 = vmatpush1.bf16.msra.mxu0 0
        %2648 = vmatprep.subr.bf16.mxu0 0
        %2649 = vmatpush1.bf16.msra.mxu0 %v2632
        %2650 = vmatprep.subr.bf16.mxu0 0
        %2651 = vmatpush1.bf16.msra.mxu0 %v2631
        %2652 = vmatprep.subr.bf16.mxu0 0
        %2653 = vmatpush1.bf16.msra.mxu0 %v2630
        %2654 = vmatprep.subr.bf16.mxu0 0
        %2655 = vmatpush1.bf16.msra.mxu0 %v2629
        %2656 = vmatprep.subr.bf16.mxu0 0
        %2657 = vmatpush2.bf16.msra.mxu0 0
        %2658 = vmatprep.subr.bf16.mxu0 0
        %2659 = vmatpush2.bf16.msra.mxu0 0
        %2660 = vmatprep.subr.bf16.mxu0 0
        %2661 = vmatpush2.bf16.msra.mxu0 0
        %2662 = vmatprep.subr.bf16.mxu0 0
        %2663 = vmatpush2.bf16.msra.mxu0 0
        %2664 = vmatprep.subr.bf16.mxu0 0
        %2665 = vmatpush2.bf16.msra.mxu0 0
        %2666 = vmatprep.subr.bf16.mxu0 0
        %2667 = vmatpush2.bf16.msra.mxu0 0
        %2668 = vmatprep.subr.bf16.mxu0 0
        %2669 = vmatpush2.bf16.msra.mxu0 0
        %2670 = vmatprep.subr.bf16.mxu0 0
        %2671 = vmatpush2.bf16.msra.mxu0 0
        %2672 = vmatprep.mubr.bf16.mxu0 0
        %2673 = vmatmul.mubr.bf16.gmra.mxu0 %v2638
        %v2674 = vpop.f32.mrf.mxu0
        %v2675 = vadd.f32 0.0, %v2674
        %v2676 = vpop.f32.mrf.mxu0
        %v2677 = vpop.f32.mrf.mxu0
        %v2678 = vpop.f32.mrf.mxu0
        %2679 = vdwg.mxu0
        %v2680 = vadd.f32 %v2598, %v2675
        %v2681 = vld [vmem:[#allocation4 + $0x7] sm:$0x7]
        %v2682 = vpack.c.bf16 %v2681, %v2681
        %v2683 = vld [vmem:[%s7 + $0x60] sm:$0xf]
        %v2684 = vld [vmem:[%s7 + $0x64] sm:$0xf]
        %v2685 = vld [vmem:[%s7 + $0x68] sm:$0xf]
        %v2686 = vld [vmem:[%s7 + $0x6c] sm:$0xf]
        %v2687 = vld [vmem:[%s7 + $0x70] sm:$0xf]
        %v2688 = vld [vmem:[%s7 + $0x74] sm:$0xf]
        %v2689 = vld [vmem:[%s7 + $0x78] sm:$0xf]
        %v2690 = vld [vmem:[%s7 + $0x7c] sm:$0xf]
        %v2699 = vunpack.c.l.b16 %v2683
        %v2700 = vunpack.c.l.b16 %v2684
        %v2701 = vunpack.c.l.b16 %v2685
        %v2702 = vunpack.c.l.b16 %v2686
        %v2703 = vunpack.c.l.b16 %v2687
        %v2704 = vunpack.c.l.b16 %v2688
        %v2705 = vunpack.c.l.b16 %v2689
        %v2706 = vunpack.c.l.b16 %v2690
        %v2707 = vpack.c.b16 %v2700, %v2699
        %v2708 = vpack.c.b16 %v2702, %v2701
        %v2709 = vpack.c.b16 %v2704, %v2703
        %v2710 = vpack.c.b16 %v2706, %v2705
        %v2716 = vsel %vm2444, %v2682, 0
        %2718 = vmatprep.subr.bf16.mxu0 0
        %2719 = vmatpush1.bf16.msra.mxu0 0
        %2720 = vmatprep.subr.bf16.mxu0 0
        %2721 = vmatpush1.bf16.msra.mxu0 0
        %2722 = vmatprep.subr.bf16.mxu0 0
        %2723 = vmatpush1.bf16.msra.mxu0 0
        %2724 = vmatprep.subr.bf16.mxu0 0
        %2725 = vmatpush1.bf16.msra.mxu0 0
        %2726 = vmatprep.subr.bf16.mxu0 0
        %2727 = vmatpush1.bf16.msra.mxu0 %v2710
        %2728 = vmatprep.subr.bf16.mxu0 0
        %2729 = vmatpush1.bf16.msra.mxu0 %v2709
        %2730 = vmatprep.subr.bf16.mxu0 0
        %2731 = vmatpush1.bf16.msra.mxu0 %v2708
        %2732 = vmatprep.subr.bf16.mxu0 0
        %2733 = vmatpush1.bf16.msra.mxu0 %v2707
        %2734 = vmatprep.subr.bf16.mxu0 0
        %2735 = vmatpush2.bf16.msra.mxu0 0
        %2736 = vmatprep.subr.bf16.mxu0 0
        %2737 = vmatpush2.bf16.msra.mxu0 0
        %2738 = vmatprep.subr.bf16.mxu0 0
        %2739 = vmatpush2.bf16.msra.mxu0 0
        %2740 = vmatprep.subr.bf16.mxu0 0
        %2741 = vmatpush2.bf16.msra.mxu0 0
        %2742 = vmatprep.subr.bf16.mxu0 0
        %2743 = vmatpush2.bf16.msra.mxu0 0
        %2744 = vmatprep.subr.bf16.mxu0 0
        %2745 = vmatpush2.bf16.msra.mxu0 0
        %2746 = vmatprep.subr.bf16.mxu0 0
        %2747 = vmatpush2.bf16.msra.mxu0 0
        %2748 = vmatprep.subr.bf16.mxu0 0
        %2749 = vmatpush2.bf16.msra.mxu0 0
        %2750 = vmatprep.mubr.bf16.mxu0 0
        %2751 = vmatmul.mubr.bf16.gmra.mxu0 %v2716
        %v2752 = vpop.f32.mrf.mxu0
        %v2753 = vadd.f32 0.0, %v2752
        %v2754 = vpop.f32.mrf.mxu0
        %v2755 = vpop.f32.mrf.mxu0
        %v2756 = vpop.f32.mrf.mxu0
        %2757 = vdwg.mxu0
        %v2758 = vadd.f32 %v2680, %v2753
        %v2759 = vld [vmem:[%s7 + $0x80] sm:$0xf]
        %v2760 = vld [vmem:[%s7 + $0x84] sm:$0xf]
        %v2761 = vld [vmem:[%s7 + $0x88] sm:$0xf]
        %v2762 = vld [vmem:[%s7 + $0x8c] sm:$0xf]
        %v2763 = vld [vmem:[%s7 + $0x90] sm:$0xf]
        %v2764 = vld [vmem:[%s7 + $0x94] sm:$0xf]
        %v2765 = vld [vmem:[%s7 + $0x98] sm:$0xf]
        %v2766 = vld [vmem:[%s7 + $0x9c] sm:$0xf]
        %v2767 = vshrl.u32 %v2682, 16
        %v2777 = vunpack.c.l.b16 %v2759
        %v2778 = vunpack.c.l.b16 %v2760
        %v2779 = vunpack.c.l.b16 %v2761
        %v2780 = vunpack.c.l.b16 %v2762
        %v2781 = vunpack.c.l.b16 %v2763
        %v2782 = vunpack.c.l.b16 %v2764
        %v2783 = vunpack.c.l.b16 %v2765
        %v2784 = vunpack.c.l.b16 %v2766
        %v2785 = vpack.c.b16 %v2778, %v2777
        %v2786 = vpack.c.b16 %v2780, %v2779
        %v2787 = vpack.c.b16 %v2782, %v2781
        %v2788 = vpack.c.b16 %v2784, %v2783
        %v2794 = vsel %vm2444, %v2767, 0
        %2796 = vmatprep.subr.bf16.mxu0 0
        %2797 = vmatpush1.bf16.msra.mxu0 0
        %2798 = vmatprep.subr.bf16.mxu0 0
        %2799 = vmatpush1.bf16.msra.mxu0 0
        %2800 = vmatprep.subr.bf16.mxu0 0
        %2801 = vmatpush1.bf16.msra.mxu0 0
        %2802 = vmatprep.subr.bf16.mxu0 0
        %2803 = vmatpush1.bf16.msra.mxu0 0
        %2804 = vmatprep.subr.bf16.mxu0 0
        %2805 = vmatpush1.bf16.msra.mxu0 %v2788
        %2806 = vmatprep.subr.bf16.mxu0 0
        %2807 = vmatpush1.bf16.msra.mxu0 %v2787
        %2808 = vmatprep.subr.bf16.mxu0 0
        %2809 = vmatpush1.bf16.msra.mxu0 %v2786
        %2810 = vmatprep.subr.bf16.mxu0 0
        %2811 = vmatpush1.bf16.msra.mxu0 %v2785
        %2812 = vmatprep.subr.bf16.mxu0 0
        %2813 = vmatpush2.bf16.msra.mxu0 0
        %2814 = vmatprep.subr.bf16.mxu0 0
        %2815 = vmatpush2.bf16.msra.mxu0 0
        %2816 = vmatprep.subr.bf16.mxu0 0
        %2817 = vmatpush2.bf16.msra.mxu0 0
        %2818 = vmatprep.subr.bf16.mxu0 0
        %2819 = vmatpush2.bf16.msra.mxu0 0
        %2820 = vmatprep.subr.bf16.mxu0 0
        %2821 = vmatpush2.bf16.msra.mxu0 0
        %2822 = vmatprep.subr.bf16.mxu0 0
        %2823 = vmatpush2.bf16.msra.mxu0 0
        %2824 = vmatprep.subr.bf16.mxu0 0
        %2825 = vmatpush2.bf16.msra.mxu0 0
        %2826 = vmatprep.subr.bf16.mxu0 0
        %2827 = vmatpush2.bf16.msra.mxu0 0
        %2828 = vmatprep.mubr.bf16.mxu0 0
        %2829 = vmatmul.mubr.bf16.gmra.mxu0 %v2794
        %v2830 = vpop.f32.mrf.mxu0
        %v2831 = vadd.f32 0.0, %v2830
        %v2832 = vpop.f32.mrf.mxu0
        %v2833 = vpop.f32.mrf.mxu0
        %v2834 = vpop.f32.mrf.mxu0
        %2835 = vdwg.mxu0
        %v2836 = vadd.f32 %v2758, %v2831
        %v2837 = vld [vmem:[%s7 + $0xa0] sm:$0xf]
        %v2838 = vld [vmem:[%s7 + $0xa4] sm:$0xf]
        %v2839 = vld [vmem:[%s7 + $0xa8] sm:$0xf]
        %v2840 = vld [vmem:[%s7 + $0xac] sm:$0xf]
        %v2841 = vld [vmem:[%s7 + $0xb0] sm:$0xf]
        %v2842 = vld [vmem:[%s7 + $0xb4] sm:$0xf]
        %v2843 = vld [vmem:[%s7 + $0xb8] sm:$0xf]
        %v2844 = vld [vmem:[%s7 + $0xbc] sm:$0xf]
        %v2846 = vrot.slane %v2682, 1
        %v2855 = vunpack.c.l.b16 %v2837
        %v2856 = vunpack.c.l.b16 %v2838
        %v2857 = vunpack.c.l.b16 %v2839
        %v2858 = vunpack.c.l.b16 %v2840
        %v2859 = vunpack.c.l.b16 %v2841
        %v2860 = vunpack.c.l.b16 %v2842
        %v2861 = vunpack.c.l.b16 %v2843
        %v2862 = vunpack.c.l.b16 %v2844
        %v2863 = vpack.c.b16 %v2856, %v2855
        %v2864 = vpack.c.b16 %v2858, %v2857
        %v2865 = vpack.c.b16 %v2860, %v2859
        %v2866 = vpack.c.b16 %v2862, %v2861
        %v2872 = vsel %vm2444, %v2846, 0
        %2874 = vmatprep.subr.bf16.mxu0 0
        %2875 = vmatpush1.bf16.msra.mxu0 0
        %2876 = vmatprep.subr.bf16.mxu0 0
        %2877 = vmatpush1.bf16.msra.mxu0 0
        %2878 = vmatprep.subr.bf16.mxu0 0
        %2879 = vmatpush1.bf16.msra.mxu0 0
        %2880 = vmatprep.subr.bf16.mxu0 0
        %2881 = vmatpush1.bf16.msra.mxu0 0
        %2882 = vmatprep.subr.bf16.mxu0 0
        %2883 = vmatpush1.bf16.msra.mxu0 %v2866
        %2884 = vmatprep.subr.bf16.mxu0 0
        %2885 = vmatpush1.bf16.msra.mxu0 %v2865
        %2886 = vmatprep.subr.bf16.mxu0 0
        %2887 = vmatpush1.bf16.msra.mxu0 %v2864
        %2888 = vmatprep.subr.bf16.mxu0 0
        %2889 = vmatpush1.bf16.msra.mxu0 %v2863
        %2890 = vmatprep.subr.bf16.mxu0 0
        %2891 = vmatpush2.bf16.msra.mxu0 0
        %2892 = vmatprep.subr.bf16.mxu0 0
        %2893 = vmatpush2.bf16.msra.mxu0 0
        %2894 = vmatprep.subr.bf16.mxu0 0
        %2895 = vmatpush2.bf16.msra.mxu0 0
        %2896 = vmatprep.subr.bf16.mxu0 0
        %2897 = vmatpush2.bf16.msra.mxu0 0
        %2898 = vmatprep.subr.bf16.mxu0 0
        %2899 = vmatpush2.bf16.msra.mxu0 0
        %2900 = vmatprep.subr.bf16.mxu0 0
        %2901 = vmatpush2.bf16.msra.mxu0 0
        %2902 = vmatprep.subr.bf16.mxu0 0
        %2903 = vmatpush2.bf16.msra.mxu0 0
        %2904 = vmatprep.subr.bf16.mxu0 0
        %2905 = vmatpush2.bf16.msra.mxu0 0
        %2906 = vmatprep.mubr.bf16.mxu0 0
        %2907 = vmatmul.mubr.bf16.gmra.mxu0 %v2872
        %v2908 = vpop.f32.mrf.mxu0
        %v2909 = vadd.f32 0.0, %v2908
        %v2910 = vpop.f32.mrf.mxu0
        %v2911 = vpop.f32.mrf.mxu0
        %v2912 = vpop.f32.mrf.mxu0
        %2913 = vdwg.mxu0
        %v2914 = vadd.f32 %v2836, %v2909
        %v2915 = vld [vmem:[#allocation4 + $0xe] sm:$0x7]
        %v2916 = vpack.c.bf16 %v2915, %v2915
        %v2917 = vld [vmem:[%s7 + $0xc0] sm:$0xf]
        %v2918 = vld [vmem:[%s7 + $0xc4] sm:$0xf]
        %v2919 = vld [vmem:[%s7 + $0xc8] sm:$0xf]
        %v2920 = vld [vmem:[%s7 + $0xcc] sm:$0xf]
        %v2921 = vld [vmem:[%s7 + $0xd0] sm:$0xf]
        %v2922 = vld [vmem:[%s7 + $0xd4] sm:$0xf]
        %v2923 = vld [vmem:[%s7 + $0xd8] sm:$0xf]
        %v2924 = vld [vmem:[%s7 + $0xdc] sm:$0xf]
        %v2933 = vunpack.c.l.b16 %v2917
        %v2934 = vunpack.c.l.b16 %v2918
        %v2935 = vunpack.c.l.b16 %v2919
        %v2936 = vunpack.c.l.b16 %v2920
        %v2937 = vunpack.c.l.b16 %v2921
        %v2938 = vunpack.c.l.b16 %v2922
        %v2939 = vunpack.c.l.b16 %v2923
        %v2940 = vunpack.c.l.b16 %v2924
        %v2941 = vpack.c.b16 %v2934, %v2933
        %v2942 = vpack.c.b16 %v2936, %v2935
        %v2943 = vpack.c.b16 %v2938, %v2937
        %v2944 = vpack.c.b16 %v2940, %v2939
        %v2950 = vsel %vm2444, %v2916, 0
        %2952 = vmatprep.subr.bf16.mxu0 0
        %2953 = vmatpush1.bf16.msra.mxu0 0
        %2954 = vmatprep.subr.bf16.mxu0 0
        %2955 = vmatpush1.bf16.msra.mxu0 0
        %2956 = vmatprep.subr.bf16.mxu0 0
        %2957 = vmatpush1.bf16.msra.mxu0 0
        %2958 = vmatprep.subr.bf16.mxu0 0
        %2959 = vmatpush1.bf16.msra.mxu0 0
        %2960 = vmatprep.subr.bf16.mxu0 0
        %2961 = vmatpush1.bf16.msra.mxu0 %v2944
        %2962 = vmatprep.subr.bf16.mxu0 0
        %2963 = vmatpush1.bf16.msra.mxu0 %v2943
        %2964 = vmatprep.subr.bf16.mxu0 0
        %2965 = vmatpush1.bf16.msra.mxu0 %v2942
        %2966 = vmatprep.subr.bf16.mxu0 0
        %2967 = vmatpush1.bf16.msra.mxu0 %v2941
        %2968 = vmatprep.subr.bf16.mxu0 0
        %2969 = vmatpush2.bf16.msra.mxu0 0
        %2970 = vmatprep.subr.bf16.mxu0 0
        %2971 = vmatpush2.bf16.msra.mxu0 0
        %2972 = vmatprep.subr.bf16.mxu0 0
        %2973 = vmatpush2.bf16.msra.mxu0 0
        %2974 = vmatprep.subr.bf16.mxu0 0
        %2975 = vmatpush2.bf16.msra.mxu0 0
        %2976 = vmatprep.subr.bf16.mxu0 0
        %2977 = vmatpush2.bf16.msra.mxu0 0
        %2978 = vmatprep.subr.bf16.mxu0 0
        %2979 = vmatpush2.bf16.msra.mxu0 0
        %2980 = vmatprep.subr.bf16.mxu0 0
        %2981 = vmatpush2.bf16.msra.mxu0 0
        %2982 = vmatprep.subr.bf16.mxu0 0
        %2983 = vmatpush2.bf16.msra.mxu0 0
        %2984 = vmatprep.mubr.bf16.mxu0 0
        %2985 = vmatmul.mubr.bf16.gmra.mxu0 %v2950
        %v2986 = vpop.f32.mrf.mxu0
        %v2987 = vadd.f32 0.0, %v2986
        %v2988 = vpop.f32.mrf.mxu0
        %v2989 = vpop.f32.mrf.mxu0
        %v2990 = vpop.f32.mrf.mxu0
        %2991 = vdwg.mxu0
        %v2992 = vadd.f32 %v2914, %v2987
        %v2993 = vld [vmem:[%s7 + $0xe0] sm:$0xf]
        %v2994 = vld [vmem:[%s7 + $0xe4] sm:$0xf]
        %v2995 = vld [vmem:[%s7 + $0xe8] sm:$0xf]
        %v2996 = vld [vmem:[%s7 + $0xec] sm:$0xf]
        %v2997 = vld [vmem:[%s7 + $0xf0] sm:$0xf]
        %v2998 = vld [vmem:[%s7 + $0xf4] sm:$0xf]
        %v2999 = vld [vmem:[%s7 + $0xf8] sm:$0xf]
        %v3000 = vld [vmem:[%s7 + $0xfc] sm:$0xf]
        %v3001 = vshrl.u32 %v2916, 16
        %v3011 = vunpack.c.l.b16 %v2993
        %v3012 = vunpack.c.l.b16 %v2994
        %v3013 = vunpack.c.l.b16 %v2995
        %v3014 = vunpack.c.l.b16 %v2996
        %v3015 = vunpack.c.l.b16 %v2997
        %v3016 = vunpack.c.l.b16 %v2998
        %v3017 = vunpack.c.l.b16 %v2999
        %v3018 = vunpack.c.l.b16 %v3000
        %v3019 = vpack.c.b16 %v3012, %v3011
        %v3020 = vpack.c.b16 %v3014, %v3013
        %v3021 = vpack.c.b16 %v3016, %v3015
        %v3022 = vpack.c.b16 %v3018, %v3017
        %v3028 = vsel %vm2444, %v3001, 0
        %3030 = vmatprep.subr.bf16.mxu0 0
        %3031 = vmatpush1.bf16.msra.mxu0 0
        %3032 = vmatprep.subr.bf16.mxu0 0
        %3033 = vmatpush1.bf16.msra.mxu0 0
        %3034 = vmatprep.subr.bf16.mxu0 0
        %3035 = vmatpush1.bf16.msra.mxu0 0
        %3036 = vmatprep.subr.bf16.mxu0 0
        %3037 = vmatpush1.bf16.msra.mxu0 0
        %3038 = vmatprep.subr.bf16.mxu0 0
        %3039 = vmatpush1.bf16.msra.mxu0 %v3022
        %3040 = vmatprep.subr.bf16.mxu0 0
        %3041 = vmatpush1.bf16.msra.mxu0 %v3021
        %3042 = vmatprep.subr.bf16.mxu0 0
        %3043 = vmatpush1.bf16.msra.mxu0 %v3020
        %3044 = vmatprep.subr.bf16.mxu0 0
        %3045 = vmatpush1.bf16.msra.mxu0 %v3019
        %3046 = vmatprep.subr.bf16.mxu0 0
        %3047 = vmatpush2.bf16.msra.mxu0 0
        %3048 = vmatprep.subr.bf16.mxu0 0
        %3049 = vmatpush2.bf16.msra.mxu0 0
        %3050 = vmatprep.subr.bf16.mxu0 0
        %3051 = vmatpush2.bf16.msra.mxu0 0
        %3052 = vmatprep.subr.bf16.mxu0 0
        %3053 = vmatpush2.bf16.msra.mxu0 0
        %3054 = vmatprep.subr.bf16.mxu0 0
        %3055 = vmatpush2.bf16.msra.mxu0 0
        %3056 = vmatprep.subr.bf16.mxu0 0
        %3057 = vmatpush2.bf16.msra.mxu0 0
        %3058 = vmatprep.subr.bf16.mxu0 0
        %3059 = vmatpush2.bf16.msra.mxu0 0
        %3060 = vmatprep.subr.bf16.mxu0 0
        %3061 = vmatpush2.bf16.msra.mxu0 0
        %3062 = vmatprep.mubr.bf16.mxu0 0
        %3063 = vmatmul.mubr.bf16.gmra.mxu0 %v3028
        %v3064 = vpop.f32.mrf.mxu0
        %v3065 = vadd.f32 0.0, %v3064
        %v3066 = vpop.f32.mrf.mxu0
        %v3067 = vpop.f32.mrf.mxu0
        %v3068 = vpop.f32.mrf.mxu0
        %3069 = vdwg.mxu0
        %v3070 = vadd.f32 %v2992, %v3065
        %v3071 = vld [vmem:[%s7 + $0x100] sm:$0xf]
        %v3072 = vld [vmem:[%s7 + $0x104] sm:$0xf]
        %v3073 = vld [vmem:[%s7 + $0x108] sm:$0xf]
        %v3074 = vld [vmem:[%s7 + $0x10c] sm:$0xf]
        %v3075 = vld [vmem:[%s7 + $0x110] sm:$0xf]
        %v3076 = vld [vmem:[%s7 + $0x114] sm:$0xf]
        %v3077 = vld [vmem:[%s7 + $0x118] sm:$0xf]
        %v3078 = vld [vmem:[%s7 + $0x11c] sm:$0xf]
        %v3080 = vrot.slane %v2916, 1
        %v3089 = vunpack.c.l.b16 %v3071
        %v3090 = vunpack.c.l.b16 %v3072
        %v3091 = vunpack.c.l.b16 %v3073
        %v3092 = vunpack.c.l.b16 %v3074
        %v3093 = vunpack.c.l.b16 %v3075
        %v3094 = vunpack.c.l.b16 %v3076
        %v3095 = vunpack.c.l.b16 %v3077
        %v3096 = vunpack.c.l.b16 %v3078
        %v3097 = vpack.c.b16 %v3090, %v3089
        %v3098 = vpack.c.b16 %v3092, %v3091
        %v3099 = vpack.c.b16 %v3094, %v3093
        %v3100 = vpack.c.b16 %v3096, %v3095
        %v3106 = vsel %vm2444, %v3080, 0
        %3108 = vmatprep.subr.bf16.mxu0 0
        %3109 = vmatpush1.bf16.msra.mxu0 0
        %3110 = vmatprep.subr.bf16.mxu0 0
        %3111 = vmatpush1.bf16.msra.mxu0 0
        %3112 = vmatprep.subr.bf16.mxu0 0
        %3113 = vmatpush1.bf16.msra.mxu0 0
        %3114 = vmatprep.subr.bf16.mxu0 0
        %3115 = vmatpush1.bf16.msra.mxu0 0
        %3116 = vmatprep.subr.bf16.mxu0 0
        %3117 = vmatpush1.bf16.msra.mxu0 %v3100
        %3118 = vmatprep.subr.bf16.mxu0 0
        %3119 = vmatpush1.bf16.msra.mxu0 %v3099
        %3120 = vmatprep.subr.bf16.mxu0 0
        %3121 = vmatpush1.bf16.msra.mxu0 %v3098
        %3122 = vmatprep.subr.bf16.mxu0 0
        %3123 = vmatpush1.bf16.msra.mxu0 %v3097
        %3124 = vmatprep.subr.bf16.mxu0 0
        %3125 = vmatpush2.bf16.msra.mxu0 0
        %3126 = vmatprep.subr.bf16.mxu0 0
        %3127 = vmatpush2.bf16.msra.mxu0 0
        %3128 = vmatprep.subr.bf16.mxu0 0
        %3129 = vmatpush2.bf16.msra.mxu0 0
        %3130 = vmatprep.subr.bf16.mxu0 0
        %3131 = vmatpush2.bf16.msra.mxu0 0
        %3132 = vmatprep.subr.bf16.mxu0 0
        %3133 = vmatpush2.bf16.msra.mxu0 0
        %3134 = vmatprep.subr.bf16.mxu0 0
        %3135 = vmatpush2.bf16.msra.mxu0 0
        %3136 = vmatprep.subr.bf16.mxu0 0
        %3137 = vmatpush2.bf16.msra.mxu0 0
        %3138 = vmatprep.subr.bf16.mxu0 0
        %3139 = vmatpush2.bf16.msra.mxu0 0
        %3140 = vmatprep.mubr.bf16.mxu0 0
        %3141 = vmatmul.mubr.bf16.gmra.mxu0 %v3106
        %v3142 = vpop.f32.mrf.mxu0
        %v3143 = vadd.f32 0.0, %v3142
        %v3144 = vpop.f32.mrf.mxu0
        %v3145 = vpop.f32.mrf.mxu0
        %v3146 = vpop.f32.mrf.mxu0
        %3147 = vdwg.mxu0
        %v3148 = vadd.f32 %v3070, %v3143
        %v3149 = vld [vmem:[%s8] sm:$0x1]
        %v3150 = vadd.f32 %v3148, %v3149
        %3151 = vst [vmem:[%s324] sm:$0x1] %v3150
        %s3152 = sand.u32 %s225, 1
        %s3153 = scalar_lea.sflag [#allocation6], %s3152
        %s3154 = sand.u32 %s225, 1
        %s3155 = scalar_lea.vmem [#allocation5], %s3154
        // Predicated region
        $region57: #{stem_forward.1} parent=55 // pred_check
          %p3156 = pneg %p235
        $region58: #{stem_forward.1} parent=55 // pred_check_branch
          %3158 = sbr.rel (%p3156) target = $region60
        $region59: #{stem_forward.1} parent=55 // pred_region
          %s3160 = ssub.s32 16, 16
          %3161 = vsyncadd %s3153, %s3160
          %s3162 = smul.addr %s23, 16
          %s3163 = scalar_lea.hbm %s9, %s3162
          %s3165 = sshll.u32 %s3155, 4
          %s3166 = int_to_ptr.vmem [resolvable:$true] %s3165
          %3168 = dma.vmem_to_hbm [thread:$0]  %s3166, 16, %s3163, %s3153
        $region60: #{stem_forward.1} parent=55 // pred_fallthru
          _
      $region56: #{stem_forward.1} parent=5 // pred_fallthru
        _
      %p3169 = scmp.le.s32.totalorder 2, %s18
      // Predicated region
      $region61: #{stem_forward.1} parent=5 // pred_check
        %p3170 = pneg %p3169
      $region62: #{stem_forward.1} parent=5 // pred_check_branch
        %3172 = sbr.rel (%p3170) target = $region64
      $region63: #{stem_forward.1} parent=5 // pred_region
        %s3173 = ssub.s32 %s18, 2
        // Predicated region
        $region65: #{stem_forward.1} parent=63 // pred_check
          %p3174 = pneg %p241
        $region66: #{stem_forward.1} parent=63 // pred_check_branch
          %3176 = sbr.rel (%p3174) target = $region68
        $region67: #{stem_forward.1} parent=63 // pred_region
          %s3177 = sand.u32 %s226, 1
          %s3178 = scalar_lea.sflag [#allocation6], %s3177
          %s3179 = sand.u32 %s226, 1
          %s3180 = scalar_lea.vmem [#allocation5], %s3179
          %3181 = dma.done %s3178, 16
        $region68: #{stem_forward.1} parent=63 // pred_fallthru
          _
      $region64: #{stem_forward.1} parent=5 // pred_fallthru
        _
    $region6: #{stem_forward.1} parent=1 // loop_footer
      %s22 = sadd.s32 1, %s18
    $region7: #{stem_forward.1} parent=1 // loop_footer_branch
      %17 = sbr.rel target = $region3
    $region8: #{stem_forward.1} parent=1 // loop_exit
      _
    %3182 = vsyncpa [#allocation6], 1
    %s3183 = scalar_lea.sflag [#allocation6], 1
    %3184 = vsyncpa %s3183, 1

</llo_original>
